<compile_context>
chip_gen: v7x
topology: tpu7x:2x2x1
jax: 0.10.0
libtpu: 0.0.40
codegen_flags: <defaults>
</compile_context>

<pallas_src>
import math

import jax
import jax.numpy as jnp
from jax.experimental import pallas as pl
from jax.experimental.pallas import tpu as pltpu

# ---------------- synthetic PhoBERT config (small) ----------------
VOCAB = 100
HIDDEN = 32
N_HEADS = 4
HEAD_DIM = HIDDEN // N_HEADS
FFN = 64
N_LAYERS = 2
MAX_POS = 64
N_CLASSES = 3
EPS = 1e-5

LANES = 128                # lane-dense padded width for the classifier output
MXU_DTYPE = jnp.bfloat16   # matmul-operand dtype (f32 accumulate everywhere)


def _layernorm(x, g, b):
    # One-pass LN: two independent cross-lane sums (E[x], E[x^2]) instead of the
    # mean -> subtract -> square -> mean dependency chain (shorter XLU chain).
    mean = jnp.mean(x, axis=-1, keepdims=True)
    mean_sq = jnp.mean(x * x, axis=-1, keepdims=True)
    var = mean_sq - mean * mean
    return (x - mean) * jax.lax.rsqrt(var + EPS) * g + b


# ------------- single fused kernel: embeddings-LN + full encoder + head -------------
def fused_forward_kernel(
    emb_ref, emb_g_ref, emb_b_ref, mask_ref,
    wqkv_ref, bqkv_ref, wo_ref, bo_ref, ln1g_ref, ln1b_ref,
    w1_ref, b1_ref, w2_ref, b2_ref, ln2g_ref, ln2b_ref,
    fcw_ref, fcb_ref,
    out_ref,
):
    # embedding LayerNorm seeds the hidden state for this batch row
    h = _layernorm(emb_ref[0], emb_g_ref[...], emb_b_ref[...])     # (S, H) f32
    mask = mask_ref[0]                                              # (1, S) additive bias
    S = h.shape[0]

    # Static unroll over layers; all weights are VMEM-resident (constant index_map),
    # so w_ref[li] with a static li is just a view.
    for li in range(N_LAYERS):
        # ---- fused QKV projection: one MXU pass (bf16 operands, f32 accumulate) ----
        x_bf = h.astype(MXU_DTYPE)
        qkv = jnp.dot(x_bf, wqkv_ref[li],
                      preferred_element_type=jnp.float32) + bqkv_ref[li]     # (S, 3H)
        qkv_bf = qkv.astype(MXU_DTYPE)            # single cast, reused by all heads

        # head-major (N_HEADS, S, HEAD_DIM) operands; batched dot_general for
        # scores / context instead of a per-head loop of tiny matmuls.
        qh = qkv_bf[:, 0 * HIDDEN:1 * HIDDEN].reshape(S, N_HEADS, HEAD_DIM).swapaxes(0, 1)
        kh = qkv_bf[:, 1 * HIDDEN:2 * HIDDEN].reshape(S, N_HEADS, HEAD_DIM).swapaxes(0, 1)
        vh = qkv_bf[:, 2 * HIDDEN:3 * HIDDEN].reshape(S, N_HEADS, HEAD_DIM).swapaxes(0, 1)

        # 1/sqrt(HEAD_DIM) is folded into the q columns of wqkv at init time.
        s = jnp.einsum("nqd,nkd->nqk", qh, kh,
                       preferred_element_type=jnp.float32) + mask            # (N, S, S)
        s = s - jnp.max(s, axis=-1, keepdims=True)
        p = jnp.exp(s)
        p = p / jnp.sum(p, axis=-1, keepdims=True)        # exact softmax normalization
        ctx = jnp.einsum("nqk,nkd->nqd", p.astype(MXU_DTYPE), vh,
                         preferred_element_type=jnp.float32)                 # (N, S, D)
        ctx = ctx.swapaxes(0, 1).reshape(S, HIDDEN)                          # (S, H)

        # ---- attention output proj + residual + LayerNorm ----
        attn_out = jnp.dot(ctx.astype(MXU_DTYPE), wo_ref[li],
                           preferred_element_type=jnp.float32) + bo_ref[li]
        h1 = _layernorm(attn_out + h, ln1g_ref[li], ln1b_ref[li])

        # ---- FFN + residual + LayerNorm ----
        hmid = jnp.dot(h1.astype(MXU_DTYPE), w1_ref[li],
                       preferred_element_type=jnp.float32) + b1_ref[li]
        # TODO(synk): HF RoBERTa uses exact erf-GELU; tanh approximation used here.
        hmid = jax.nn.gelu(hmid, approximate=True)
        ffn_out = jnp.dot(hmid.astype(MXU_DTYPE), w2_ref[li],
                          preferred_element_type=jnp.float32) + b2_ref[li]
        h = _layernorm(ffn_out + h1, ln2g_ref[li], ln2b_ref[li])

    # ---- classifier head on CLS token; dropout(p=0.3) is identity in eval mode ----
    pooled = h[0:1, :]                                                       # (1, H)
    logits = jnp.dot(pooled.astype(MXU_DTYPE), fcw_ref[...],
                     preferred_element_type=jnp.float32) + fcb_ref[...]      # (1, LANES)
    out_ref[0] = logits                              # single lane-dense row store


def _pallas_forward(emb, mask_bias, p):
    B, S, H = emb.shape

    def batch3(shape):                  # indexed by batch row
        return pl.BlockSpec(shape, lambda b: (b, 0, 0))

    def const_spec(shape):              # whole array, VMEM-resident across the grid
        nd = len(shape)
        return pl.BlockSpec(shape, lambda b, _n=nd: (0,) * _n)

    grid_spec = pltpu.PrefetchScalarGridSpec(
        num_scalar_prefetch=0,
        grid=(B,),
        in_specs=[
            batch3((1, S, H)),                       # emb
            const_spec((1, H)),                      # emb_ln_g
            const_spec((1, H)),                      # emb_ln_b
            batch3((1, 1, S)),                       # mask_bias
            const_spec((N_LAYERS, H, 3 * H)),        # wqkv (bf16, scale folded into q)
            const_spec((N_LAYERS, 1, 3 * H)),        # bqkv
            const_spec((N_LAYERS, H, H)),            # wo (bf16)
            const_spec((N_LAYERS, 1, H)),            # bo
            const_spec((N_LAYERS, 1, H)),            # ln1_g
            const_spec((N_LAYERS, 1, H)),            # ln1_b
            const_spec((N_LAYERS, H, FFN)),          # w1 (bf16)
            const_spec((N_LAYERS, 1, FFN)),          # b1
            const_spec((N_LAYERS, FFN, H)),          # w2 (bf16)
            const_spec((N_LAYERS, 1, H)),            # b2
            const_spec((N_LAYERS, 1, H)),            # ln2_g
            const_spec((N_LAYERS, 1, H)),            # ln2_b
            const_spec((H, LANES)),                  # fc_w padded (bf16)
            const_spec((1, LANES)),                  # fc_b padded
        ],
        out_specs=pl.BlockSpec((1, 1, LANES), lambda b: (b, 0, 0)),
    )
    out = pl.pallas_call(
        fused_forward_kernel,
        out_shape=jax.ShapeDtypeStruct((B, 1, LANES), jnp.float32),
        grid_spec=grid_spec,
        compiler_params=pltpu.CompilerParams(
            dimension_semantics=("parallel",)),
    )(emb, p["emb_ln_g"], p["emb_ln_b"], mask_bias,
      p["wqkv"], p["bqkv"], p["wo"], p["bo"], p["ln1_g"], p["ln1_b"],
      p["w1"], p["b1"], p["w2"], p["b2"], p["ln2_g"], p["ln2_b"],
      p["fc_w_pad"], p["fc_b_pad"])
    return out[:, 0, :N_CLASSES]


# ------------- synthetic parameters (stacked / padded for the fused kernel) -------------
def init_params(key):
    def dense(k, fan_in, fan_out):
        return jax.random.normal(k, (fan_in, fan_out), jnp.float32) * 0.02

    keys = jax.random.split(key, 4 + N_LAYERS)
    params = {
        "word_emb": jax.random.normal(keys[0], (VOCAB, HIDDEN)) * 0.02,
        "pos_emb": jax.random.normal(keys[1], (MAX_POS, HIDDEN)) * 0.02,
        "type_emb": jax.random.normal(keys[2], (1, HIDDEN)) * 0.02,
        "emb_ln_g": jnp.ones((1, HIDDEN), jnp.float32),
        "emb_ln_b": jnp.zeros((1, HIDDEN), jnp.float32),
    }
    fc_w = dense(keys[3], HIDDEN, N_CLASSES)
    fc_w_pad = jnp.zeros((HIDDEN, LANES), jnp.float32).at[:, :N_CLASSES].set(fc_w)
    params["fc_w_pad"] = fc_w_pad.astype(MXU_DTYPE)
    params["fc_b_pad"] = jnp.zeros((1, LANES), jnp.float32)

    attn_scale = 1.0 / math.sqrt(HEAD_DIM)   # folded into q projection columns

    wqkv, bqkv, wo, bo = [], [], [], []
    ln1g, ln1b, w1, b1, w2, b2, ln2g, ln2b = [], [], [], [], [], [], [], []
    for li in range(N_LAYERS):
        lk = jax.random.split(keys[4 + li], 6)
        wq = dense(lk[0], HIDDEN, HIDDEN)
        wk = dense(lk[1], HIDDEN, HIDDEN)
        wv = dense(lk[2], HIDDEN, HIDDEN)
        wqkv.append(jnp.concatenate([wq * attn_scale, wk, wv], axis=1))      # (H, 3H)
        bqkv.append(jnp.zeros((1, 3 * HIDDEN), jnp.float32))
        wo.append(dense(lk[3], HIDDEN, HIDDEN))
        bo.append(jnp.zeros((1, HIDDEN), jnp.float32))
        ln1g.append(jnp.ones((1, HIDDEN), jnp.float32))
        ln1b.append(jnp.zeros((1, HIDDEN), jnp.float32))
        w1.append(dense(lk[4], HIDDEN, FFN))
        b1.append(jnp.zeros((1, FFN), jnp.float32))
        w2.append(dense(lk[5], FFN, HIDDEN))
        b2.append(jnp.zeros((1, HIDDEN), jnp.float32))
        ln2g.append(jnp.ones((1, HIDDEN), jnp.float32))
        ln2b.append(jnp.zeros((1, HIDDEN), jnp.float32))

    params["wqkv"] = jnp.stack(wqkv).astype(MXU_DTYPE)   # (L, H, 3H) bf16
    params["bqkv"] = jnp.stack(bqkv)
    params["wo"] = jnp.stack(wo).astype(MXU_DTYPE)
    params["bo"] = jnp.stack(bo)
    params["ln1_g"] = jnp.stack(ln1g)
    params["ln1_b"] = jnp.stack(ln1b)
    params["w1"] = jnp.stack(w1).astype(MXU_DTYPE)
    params["b1"] = jnp.stack(b1)
    params["w2"] = jnp.stack(w2).astype(MXU_DTYPE)
    params["b2"] = jnp.stack(b2)
    params["ln2_g"] = jnp.stack(ln2g)
    params["ln2_b"] = jnp.stack(ln2b)
    return params


# -------- forward (embedding gather is glue; the rest is one Pallas kernel) --------
def phobert_classifier_forward(params, input_ids, attention_mask):
    B, S = input_ids.shape
    word = jnp.take(params["word_emb"], input_ids, axis=0)          # (B, S, H)
    pos = params["pos_emb"][:S][None, :, :]                         # (1, S, H)
    typ = params["type_emb"][0][None, None, :]                      # (1, 1, H)
    emb = word + pos + typ                                          # (B, S, H)
    # additive attention-mask bias: (B, 1, S), 0 where valid, -1e9 where masked
    mask_bias = (1.0 - attention_mask.astype(jnp.float32))[:, None, :] * -1e9
    return _pallas_forward(emb, mask_bias, params)


if __name__ == "__main__":
    B, S = 2, 8
    key = jax.random.PRNGKey(0)
    k_param, k_ids = jax.random.split(key)
    params = init_params(k_param)

    input_ids = jax.random.randint(k_ids, (B, S), 0, VOCAB, dtype=jnp.int32)
    attention_mask = jnp.ones((B, S), jnp.float32).at[1, S - 2:].set(0.0)

    logits = jax.jit(phobert_classifier_forward)(params, input_ids, attention_mask)
    jax.block_until_ready(logits)
    assert logits.shape == (B, N_CLASSES)
    print("KERNEL_OK")
</pallas_src>

<mosaic_0001>
module attributes {stable_mosaic.version = 11 : i64} {
  func.func @fused_forward_kernel(%arg0: i32, %arg1: memref<1x8x32xf32, #tpu.memory_space<vmem>>, %arg2: memref<1x32xf32, #tpu.memory_space<vmem>>, %arg3: memref<1x32xf32, #tpu.memory_space<vmem>>, %arg4: memref<1x1x8xf32, #tpu.memory_space<vmem>>, %arg5: memref<2x32x96xbf16, #tpu.memory_space<vmem>>, %arg6: memref<2x1x96xf32, #tpu.memory_space<vmem>>, %arg7: memref<2x32x32xbf16, #tpu.memory_space<vmem>>, %arg8: memref<2x1x32xf32, #tpu.memory_space<vmem>>, %arg9: memref<2x1x32xf32, #tpu.memory_space<vmem>>, %arg10: memref<2x1x32xf32, #tpu.memory_space<vmem>>, %arg11: memref<2x32x64xbf16, #tpu.memory_space<vmem>>, %arg12: memref<2x1x64xf32, #tpu.memory_space<vmem>>, %arg13: memref<2x64x32xbf16, #tpu.memory_space<vmem>>, %arg14: memref<2x1x32xf32, #tpu.memory_space<vmem>>, %arg15: memref<2x1x32xf32, #tpu.memory_space<vmem>>, %arg16: memref<2x1x32xf32, #tpu.memory_space<vmem>>, %arg17: memref<32x128xbf16, #tpu.memory_space<vmem>>, %arg18: memref<1x128xf32, #tpu.memory_space<vmem>>, %arg19: memref<1x1x128xf32, #tpu.memory_space<vmem>>) attributes {dimension_semantics = [#tpu.dimension_semantics<parallel>], iteration_bounds = array<i64: 2>, scalar_prefetch = 0 : i64, scratch_operands = 0 : i64, tpu.core_type = #tpu.core_type<tc>, window_params = [{transform_indices = @transform_0, window_bounds = array<i64: 1, 8, 32>}, {pipeline_mode = #tpu.pipeline_mode<synchronous>, transform_indices = @transform_1, window_bounds = array<i64: 1, 32>}, {pipeline_mode = #tpu.pipeline_mode<synchronous>, transform_indices = @transform_2, window_bounds = array<i64: 1, 32>}, {transform_indices = @transform_3, window_bounds = array<i64: 1, 1, 8>}, {pipeline_mode = #tpu.pipeline_mode<synchronous>, transform_indices = @transform_4, window_bounds = array<i64: 2, 32, 96>}, {pipeline_mode = #tpu.pipeline_mode<synchronous>, transform_indices = @transform_5, window_bounds = array<i64: 2, 1, 96>}, {pipeline_mode = #tpu.pipeline_mode<synchronous>, transform_indices = @transform_6, window_bounds = array<i64: 2, 32, 32>}, {pipeline_mode = #tpu.pipeline_mode<synchronous>, transform_indices = @transform_7, window_bounds = array<i64: 2, 1, 32>}, {pipeline_mode = #tpu.pipeline_mode<synchronous>, transform_indices = @transform_8, window_bounds = array<i64: 2, 1, 32>}, {pipeline_mode = #tpu.pipeline_mode<synchronous>, transform_indices = @transform_9, window_bounds = array<i64: 2, 1, 32>}, {pipeline_mode = #tpu.pipeline_mode<synchronous>, transform_indices = @transform_10, window_bounds = array<i64: 2, 32, 64>}, {pipeline_mode = #tpu.pipeline_mode<synchronous>, transform_indices = @transform_11, window_bounds = array<i64: 2, 1, 64>}, {pipeline_mode = #tpu.pipeline_mode<synchronous>, transform_indices = @transform_12, window_bounds = array<i64: 2, 64, 32>}, {pipeline_mode = #tpu.pipeline_mode<synchronous>, transform_indices = @transform_13, window_bounds = array<i64: 2, 1, 32>}, {pipeline_mode = #tpu.pipeline_mode<synchronous>, transform_indices = @transform_14, window_bounds = array<i64: 2, 1, 32>}, {pipeline_mode = #tpu.pipeline_mode<synchronous>, transform_indices = @transform_15, window_bounds = array<i64: 2, 1, 32>}, {pipeline_mode = #tpu.pipeline_mode<synchronous>, transform_indices = @transform_16, window_bounds = array<i64: 32, 128>}, {pipeline_mode = #tpu.pipeline_mode<synchronous>, transform_indices = @transform_17, window_bounds = array<i64: 1, 128>}, {transform_indices = @transform_18, window_bounds = array<i64: 1, 1, 128>}]} {
    %c0 = arith.constant 0 : index
    %c0_0 = arith.constant 0 : index
    %c0_1 = arith.constant 0 : index
    %0 = vector.load %arg1[%c0, %c0_0, %c0_1] : memref<1x8x32xf32, #tpu.memory_space<vmem>>, vector<1x8x32xf32>
    %1 = vector.shape_cast %0 : vector<1x8x32xf32> to vector<8x32xf32>
    %c0_2 = arith.constant 0 : index
    %c0_3 = arith.constant 0 : index
    %2 = vector.load %arg2[%c0_2, %c0_3] : memref<1x32xf32, #tpu.memory_space<vmem>>, vector<1x32xf32>
    %c0_4 = arith.constant 0 : index
    %c0_5 = arith.constant 0 : index
    %3 = vector.load %arg3[%c0_4, %c0_5] : memref<1x32xf32, #tpu.memory_space<vmem>>, vector<1x32xf32>
    %cst = arith.constant dense<0.000000e+00> : vector<8xf32>
    %4 = vector.multi_reduction <add>, %1, %cst [1] : vector<8x32xf32> to vector<8xf32>
    %5 = vector.shape_cast %4 : vector<8xf32> to vector<8x1xf32>
    %cst_6 = arith.constant 3.200000e+01 : f32
    %6 = vector.broadcast %cst_6 : f32 to vector<8x1xf32>
    %7 = arith.divf %5, %6 : vector<8x1xf32>
    %8 = arith.mulf %1, %1 : vector<8x32xf32>
    %cst_7 = arith.constant dense<0.000000e+00> : vector<8xf32>
    %9 = vector.multi_reduction <add>, %8, %cst_7 [1] : vector<8x32xf32> to vector<8xf32>
    %10 = vector.shape_cast %9 : vector<8xf32> to vector<8x1xf32>
    %cst_8 = arith.constant 3.200000e+01 : f32
    %11 = vector.broadcast %cst_8 : f32 to vector<8x1xf32>
    %12 = arith.divf %10, %11 : vector<8x1xf32>
    %13 = arith.mulf %7, %7 : vector<8x1xf32>
    %14 = arith.subf %12, %13 : vector<8x1xf32>
    %15 = vector.broadcast %7 : vector<8x1xf32> to vector<8x32xf32>
    %16 = arith.subf %1, %15 : vector<8x32xf32>
    %cst_9 = arith.constant 9.99999974E-6 : f32
    %17 = vector.broadcast %cst_9 : f32 to vector<8x1xf32>
    %18 = arith.addf %14, %17 : vector<8x1xf32>
    %19 = math.rsqrt %18 : vector<8x1xf32>
    %20 = vector.broadcast %19 : vector<8x1xf32> to vector<8x32xf32>
    %21 = arith.mulf %16, %20 : vector<8x32xf32>
    %22 = vector.broadcast %2 : vector<1x32xf32> to vector<8x32xf32>
    %23 = arith.mulf %21, %22 : vector<8x32xf32>
    %24 = vector.broadcast %3 : vector<1x32xf32> to vector<8x32xf32>
    %25 = arith.addf %23, %24 : vector<8x32xf32>
    %c0_10 = arith.constant 0 : index
    %c0_11 = arith.constant 0 : index
    %c0_12 = arith.constant 0 : index
    %26 = vector.load %arg4[%c0_10, %c0_11, %c0_12] : memref<1x1x8xf32, #tpu.memory_space<vmem>>, vector<1x1x8xf32>
    %27 = vector.shape_cast %26 : vector<1x1x8xf32> to vector<1x8xf32>
    %28 = arith.truncf %25 : vector<8x32xf32> to vector<8x32xbf16>
    %c0_13 = arith.constant 0 : index
    %c0_14 = arith.constant 0 : index
    %c0_15 = arith.constant 0 : index
    %29 = vector.load %arg5[%c0_13, %c0_14, %c0_15] : memref<2x32x96xbf16, #tpu.memory_space<vmem>>, vector<1x32x96xbf16>
    %30 = vector.shape_cast %29 : vector<1x32x96xbf16> to vector<32x96xbf16>
    %cst_16 = arith.constant dense<0.000000e+00> : vector<8x96xf32>
    %31 = tpu.matmul %28, %30, %cst_16 {dimension_numbers = #tpu.dot_dimension_numbers<[1], [0], [0], [1], [0, 0, 1, 1], [], []>} : vector<8x32xbf16>, vector<32x96xbf16>, vector<8x96xf32> -> vector<8x96xf32>
    %c0_17 = arith.constant 0 : index
    %c0_18 = arith.constant 0 : index
    %c0_19 = arith.constant 0 : index
    %32 = vector.load %arg6[%c0_17, %c0_18, %c0_19] : memref<2x1x96xf32, #tpu.memory_space<vmem>>, vector<1x1x96xf32>
    %33 = vector.shape_cast %32 : vector<1x1x96xf32> to vector<1x96xf32>
    %34 = vector.broadcast %33 : vector<1x96xf32> to vector<8x96xf32>
    %35 = arith.addf %31, %34 : vector<8x96xf32>
    %36 = arith.truncf %35 : vector<8x96xf32> to vector<8x96xbf16>
    %37 = vector.extract_strided_slice %36 {offsets = [0, 0], sizes = [8, 32], strides = [1, 1]} : vector<8x96xbf16> to vector<8x32xbf16>
    %38 = vector.shape_cast %37 : vector<8x32xbf16> to vector<8x4x8xbf16>
    %39 = tpu.transpose %38, [1, 0, 2] : vector<8x4x8xbf16> -> vector<4x8x8xbf16>
    %40 = vector.extract_strided_slice %36 {offsets = [0, 32], sizes = [8, 32], strides = [1, 1]} : vector<8x96xbf16> to vector<8x32xbf16>
    %41 = vector.shape_cast %40 : vector<8x32xbf16> to vector<8x4x8xbf16>
    %42 = tpu.transpose %41, [1, 0, 2] : vector<8x4x8xbf16> -> vector<4x8x8xbf16>
    %43 = vector.extract_strided_slice %36 {offsets = [0, 64], sizes = [8, 32], strides = [1, 1]} : vector<8x96xbf16> to vector<8x32xbf16>
    %44 = vector.shape_cast %43 : vector<8x32xbf16> to vector<8x4x8xbf16>
    %45 = tpu.transpose %44, [1, 0, 2] : vector<8x4x8xbf16> -> vector<4x8x8xbf16>
    "tpu.trace_start"() <{level = 10 : i32, message = "nqd,nkd->nqk"}> : () -> ()
    %cst_20 = arith.constant dense<0.000000e+00> : vector<4x8x8xf32>
    %46 = tpu.matmul %39, %42, %cst_20 {dimension_numbers = #tpu.dot_dimension_numbers<[2], [2], [1], [1], [0, 0, 0, 1, 1, 1], [0], [0]>} : vector<4x8x8xbf16>, vector<4x8x8xbf16>, vector<4x8x8xf32> -> vector<4x8x8xf32>
    "tpu.trace_stop"() : () -> ()
    %47 = vector.shape_cast %27 : vector<1x8xf32> to vector<1x1x8xf32>
    %48 = vector.broadcast %47 : vector<1x1x8xf32> to vector<4x8x8xf32>
    %49 = arith.addf %46, %48 : vector<4x8x8xf32>
    %cst_21 = arith.constant dense<0xFF800000> : vector<4x8xf32>
    %50 = vector.multi_reduction <maximumf>, %49, %cst_21 [2] : vector<4x8x8xf32> to vector<4x8xf32>
    %51 = vector.shape_cast %50 : vector<4x8xf32> to vector<4x8x1xf32>
    %52 = vector.broadcast %51 : vector<4x8x1xf32> to vector<4x8x8xf32>
    %53 = arith.subf %49, %52 : vector<4x8x8xf32>
    %54 = math.exp %53 : vector<4x8x8xf32>
    %cst_22 = arith.constant dense<0.000000e+00> : vector<4x8xf32>
    %55 = vector.multi_reduction <add>, %54, %cst_22 [2] : vector<4x8x8xf32> to vector<4x8xf32>
    %56 = vector.shape_cast %55 : vector<4x8xf32> to vector<4x8x1xf32>
    %57 = vector.broadcast %56 : vector<4x8x1xf32> to vector<4x8x8xf32>
    %58 = arith.divf %54, %57 : vector<4x8x8xf32>
    %59 = arith.truncf %58 : vector<4x8x8xf32> to vector<4x8x8xbf16>
    "tpu.trace_start"() <{level = 10 : i32, message = "nqk,nkd->nqd"}> : () -> ()
    %cst_23 = arith.constant dense<0.000000e+00> : vector<4x8x8xf32>
    %60 = tpu.matmul %59, %45, %cst_23 {dimension_numbers = #tpu.dot_dimension_numbers<[2], [1], [1], [2], [0, 0, 0, 1, 1, 2], [0], [0]>} : vector<4x8x8xbf16>, vector<4x8x8xbf16>, vector<4x8x8xf32> -> vector<4x8x8xf32>
    "tpu.trace_stop"() : () -> ()
    %61 = tpu.transpose %60, [1, 0, 2] : vector<4x8x8xf32> -> vector<8x4x8xf32>
    %62 = vector.shape_cast %61 : vector<8x4x8xf32> to vector<8x32xf32>
    %63 = arith.truncf %62 : vector<8x32xf32> to vector<8x32xbf16>
    %c0_24 = arith.constant 0 : index
    %c0_25 = arith.constant 0 : index
    %c0_26 = arith.constant 0 : index
    %64 = vector.load %arg7[%c0_24, %c0_25, %c0_26] : memref<2x32x32xbf16, #tpu.memory_space<vmem>>, vector<1x32x32xbf16>
    %65 = vector.shape_cast %64 : vector<1x32x32xbf16> to vector<32x32xbf16>
    %cst_27 = arith.constant dense<0.000000e+00> : vector<8x32xf32>
    %66 = tpu.matmul %63, %65, %cst_27 {dimension_numbers = #tpu.dot_dimension_numbers<[1], [0], [0], [1], [0, 0, 1, 1], [], []>} : vector<8x32xbf16>, vector<32x32xbf16>, vector<8x32xf32> -> vector<8x32xf32>
    %c0_28 = arith.constant 0 : index
    %c0_29 = arith.constant 0 : index
    %c0_30 = arith.constant 0 : index
    %67 = vector.load %arg8[%c0_28, %c0_29, %c0_30] : memref<2x1x32xf32, #tpu.memory_space<vmem>>, vector<1x1x32xf32>
    %68 = vector.shape_cast %67 : vector<1x1x32xf32> to vector<1x32xf32>
    %69 = vector.broadcast %68 : vector<1x32xf32> to vector<8x32xf32>
    %70 = arith.addf %66, %69 : vector<8x32xf32>
    %71 = arith.addf %70, %25 : vector<8x32xf32>
    %c0_31 = arith.constant 0 : index
    %c0_32 = arith.constant 0 : index
    %c0_33 = arith.constant 0 : index
    %72 = vector.load %arg9[%c0_31, %c0_32, %c0_33] : memref<2x1x32xf32, #tpu.memory_space<vmem>>, vector<1x1x32xf32>
    %73 = vector.shape_cast %72 : vector<1x1x32xf32> to vector<1x32xf32>
    %c0_34 = arith.constant 0 : index
    %c0_35 = arith.constant 0 : index
    %c0_36 = arith.constant 0 : index
    %74 = vector.load %arg10[%c0_34, %c0_35, %c0_36] : memref<2x1x32xf32, #tpu.memory_space<vmem>>, vector<1x1x32xf32>
    %75 = vector.shape_cast %74 : vector<1x1x32xf32> to vector<1x32xf32>
    %cst_37 = arith.constant dense<0.000000e+00> : vector<8xf32>
    %76 = vector.multi_reduction <add>, %71, %cst_37 [1] : vector<8x32xf32> to vector<8xf32>
    %77 = vector.shape_cast %76 : vector<8xf32> to vector<8x1xf32>
    %cst_38 = arith.constant 3.200000e+01 : f32
    %78 = vector.broadcast %cst_38 : f32 to vector<8x1xf32>
    %79 = arith.divf %77, %78 : vector<8x1xf32>
    %80 = arith.mulf %71, %71 : vector<8x32xf32>
    %cst_39 = arith.constant dense<0.000000e+00> : vector<8xf32>
    %81 = vector.multi_reduction <add>, %80, %cst_39 [1] : vector<8x32xf32> to vector<8xf32>
    %82 = vector.shape_cast %81 : vector<8xf32> to vector<8x1xf32>
    %cst_40 = arith.constant 3.200000e+01 : f32
    %83 = vector.broadcast %cst_40 : f32 to vector<8x1xf32>
    %84 = arith.divf %82, %83 : vector<8x1xf32>
    %85 = arith.mulf %79, %79 : vector<8x1xf32>
    %86 = arith.subf %84, %85 : vector<8x1xf32>
    %87 = vector.broadcast %79 : vector<8x1xf32> to vector<8x32xf32>
    %88 = arith.subf %71, %87 : vector<8x32xf32>
    %cst_41 = arith.constant 9.99999974E-6 : f32
    %89 = vector.broadcast %cst_41 : f32 to vector<8x1xf32>
    %90 = arith.addf %86, %89 : vector<8x1xf32>
    %91 = math.rsqrt %90 : vector<8x1xf32>
    %92 = vector.broadcast %91 : vector<8x1xf32> to vector<8x32xf32>
    %93 = arith.mulf %88, %92 : vector<8x32xf32>
    %94 = vector.broadcast %73 : vector<1x32xf32> to vector<8x32xf32>
    %95 = arith.mulf %93, %94 : vector<8x32xf32>
    %96 = vector.broadcast %75 : vector<1x32xf32> to vector<8x32xf32>
    %97 = arith.addf %95, %96 : vector<8x32xf32>
    %98 = arith.truncf %97 : vector<8x32xf32> to vector<8x32xbf16>
    %c0_42 = arith.constant 0 : index
    %c0_43 = arith.constant 0 : index
    %c0_44 = arith.constant 0 : index
    %99 = vector.load %arg11[%c0_42, %c0_43, %c0_44] : memref<2x32x64xbf16, #tpu.memory_space<vmem>>, vector<1x32x64xbf16>
    %100 = vector.shape_cast %99 : vector<1x32x64xbf16> to vector<32x64xbf16>
    %cst_45 = arith.constant dense<0.000000e+00> : vector<8x64xf32>
    %101 = tpu.matmul %98, %100, %cst_45 {dimension_numbers = #tpu.dot_dimension_numbers<[1], [0], [0], [1], [0, 0, 1, 1], [], []>} : vector<8x32xbf16>, vector<32x64xbf16>, vector<8x64xf32> -> vector<8x64xf32>
    %c0_46 = arith.constant 0 : index
    %c0_47 = arith.constant 0 : index
    %c0_48 = arith.constant 0 : index
    %102 = vector.load %arg12[%c0_46, %c0_47, %c0_48] : memref<2x1x64xf32, #tpu.memory_space<vmem>>, vector<1x1x64xf32>
    %103 = vector.shape_cast %102 : vector<1x1x64xf32> to vector<1x64xf32>
    %104 = vector.broadcast %103 : vector<1x64xf32> to vector<8x64xf32>
    %105 = arith.addf %101, %104 : vector<8x64xf32>
    %106 = arith.mulf %105, %105 : vector<8x64xf32>
    %107 = arith.mulf %105, %106 : vector<8x64xf32>
    %cst_49 = arith.constant 4.471500e-02 : f32
    %108 = vector.broadcast %cst_49 : f32 to vector<8x64xf32>
    %109 = arith.mulf %108, %107 : vector<8x64xf32>
    %110 = arith.addf %105, %109 : vector<8x64xf32>
    %cst_50 = arith.constant 0.797884583 : f32
    %111 = vector.broadcast %cst_50 : f32 to vector<8x64xf32>
    %112 = arith.mulf %111, %110 : vector<8x64xf32>
    %113 = math.tanh %112 : vector<8x64xf32>
    %cst_51 = arith.constant 1.000000e+00 : f32
    %114 = vector.broadcast %cst_51 : f32 to vector<8x64xf32>
    %115 = arith.addf %114, %113 : vector<8x64xf32>
    %cst_52 = arith.constant 5.000000e-01 : f32
    %116 = vector.broadcast %cst_52 : f32 to vector<8x64xf32>
    %117 = arith.mulf %116, %115 : vector<8x64xf32>
    %118 = arith.mulf %105, %117 : vector<8x64xf32>
    %119 = arith.truncf %118 : vector<8x64xf32> to vector<8x64xbf16>
    %c0_53 = arith.constant 0 : index
    %c0_54 = arith.constant 0 : index
    %c0_55 = arith.constant 0 : index
    %120 = vector.load %arg13[%c0_53, %c0_54, %c0_55] : memref<2x64x32xbf16, #tpu.memory_space<vmem>>, vector<1x64x32xbf16>
    %121 = vector.shape_cast %120 : vector<1x64x32xbf16> to vector<64x32xbf16>
    %cst_56 = arith.constant dense<0.000000e+00> : vector<8x32xf32>
    %122 = tpu.matmul %119, %121, %cst_56 {dimension_numbers = #tpu.dot_dimension_numbers<[1], [0], [0], [1], [0, 0, 1, 1], [], []>} : vector<8x64xbf16>, vector<64x32xbf16>, vector<8x32xf32> -> vector<8x32xf32>
    %c0_57 = arith.constant 0 : index
    %c0_58 = arith.constant 0 : index
    %c0_59 = arith.constant 0 : index
    %123 = vector.load %arg14[%c0_57, %c0_58, %c0_59] : memref<2x1x32xf32, #tpu.memory_space<vmem>>, vector<1x1x32xf32>
    %124 = vector.shape_cast %123 : vector<1x1x32xf32> to vector<1x32xf32>
    %125 = vector.broadcast %124 : vector<1x32xf32> to vector<8x32xf32>
    %126 = arith.addf %122, %125 : vector<8x32xf32>
    %127 = arith.addf %126, %97 : vector<8x32xf32>
    %c0_60 = arith.constant 0 : index
    %c0_61 = arith.constant 0 : index
    %c0_62 = arith.constant 0 : index
    %128 = vector.load %arg15[%c0_60, %c0_61, %c0_62] : memref<2x1x32xf32, #tpu.memory_space<vmem>>, vector<1x1x32xf32>
    %129 = vector.shape_cast %128 : vector<1x1x32xf32> to vector<1x32xf32>
    %c0_63 = arith.constant 0 : index
    %c0_64 = arith.constant 0 : index
    %c0_65 = arith.constant 0 : index
    %130 = vector.load %arg16[%c0_63, %c0_64, %c0_65] : memref<2x1x32xf32, #tpu.memory_space<vmem>>, vector<1x1x32xf32>
    %131 = vector.shape_cast %130 : vector<1x1x32xf32> to vector<1x32xf32>
    %cst_66 = arith.constant dense<0.000000e+00> : vector<8xf32>
    %132 = vector.multi_reduction <add>, %127, %cst_66 [1] : vector<8x32xf32> to vector<8xf32>
    %133 = vector.shape_cast %132 : vector<8xf32> to vector<8x1xf32>
    %cst_67 = arith.constant 3.200000e+01 : f32
    %134 = vector.broadcast %cst_67 : f32 to vector<8x1xf32>
    %135 = arith.divf %133, %134 : vector<8x1xf32>
    %136 = arith.mulf %127, %127 : vector<8x32xf32>
    %cst_68 = arith.constant dense<0.000000e+00> : vector<8xf32>
    %137 = vector.multi_reduction <add>, %136, %cst_68 [1] : vector<8x32xf32> to vector<8xf32>
    %138 = vector.shape_cast %137 : vector<8xf32> to vector<8x1xf32>
    %cst_69 = arith.constant 3.200000e+01 : f32
    %139 = vector.broadcast %cst_69 : f32 to vector<8x1xf32>
    %140 = arith.divf %138, %139 : vector<8x1xf32>
    %141 = arith.mulf %135, %135 : vector<8x1xf32>
    %142 = arith.subf %140, %141 : vector<8x1xf32>
    %143 = vector.broadcast %135 : vector<8x1xf32> to vector<8x32xf32>
    %144 = arith.subf %127, %143 : vector<8x32xf32>
    %cst_70 = arith.constant 9.99999974E-6 : f32
    %145 = vector.broadcast %cst_70 : f32 to vector<8x1xf32>
    %146 = arith.addf %142, %145 : vector<8x1xf32>
    %147 = math.rsqrt %146 : vector<8x1xf32>
    %148 = vector.broadcast %147 : vector<8x1xf32> to vector<8x32xf32>
    %149 = arith.mulf %144, %148 : vector<8x32xf32>
    %150 = vector.broadcast %129 : vector<1x32xf32> to vector<8x32xf32>
    %151 = arith.mulf %149, %150 : vector<8x32xf32>
    %152 = vector.broadcast %131 : vector<1x32xf32> to vector<8x32xf32>
    %153 = arith.addf %151, %152 : vector<8x32xf32>
    %154 = arith.truncf %153 : vector<8x32xf32> to vector<8x32xbf16>
    %c1 = arith.constant 1 : index
    %c0_71 = arith.constant 0 : index
    %c0_72 = arith.constant 0 : index
    %155 = vector.load %arg5[%c1, %c0_71, %c0_72] : memref<2x32x96xbf16, #tpu.memory_space<vmem>>, vector<1x32x96xbf16>
    %156 = vector.shape_cast %155 : vector<1x32x96xbf16> to vector<32x96xbf16>
    %cst_73 = arith.constant dense<0.000000e+00> : vector<8x96xf32>
    %157 = tpu.matmul %154, %156, %cst_73 {dimension_numbers = #tpu.dot_dimension_numbers<[1], [0], [0], [1], [0, 0, 1, 1], [], []>} : vector<8x32xbf16>, vector<32x96xbf16>, vector<8x96xf32> -> vector<8x96xf32>
    %c1_74 = arith.constant 1 : index
    %c0_75 = arith.constant 0 : index
    %c0_76 = arith.constant 0 : index
    %158 = vector.load %arg6[%c1_74, %c0_75, %c0_76] : memref<2x1x96xf32, #tpu.memory_space<vmem>>, vector<1x1x96xf32>
    %159 = vector.shape_cast %158 : vector<1x1x96xf32> to vector<1x96xf32>
    %160 = vector.broadcast %159 : vector<1x96xf32> to vector<8x96xf32>
    %161 = arith.addf %157, %160 : vector<8x96xf32>
    %162 = arith.truncf %161 : vector<8x96xf32> to vector<8x96xbf16>
    %163 = vector.extract_strided_slice %162 {offsets = [0, 0], sizes = [8, 32], strides = [1, 1]} : vector<8x96xbf16> to vector<8x32xbf16>
    %164 = vector.shape_cast %163 : vector<8x32xbf16> to vector<8x4x8xbf16>
    %165 = tpu.transpose %164, [1, 0, 2] : vector<8x4x8xbf16> -> vector<4x8x8xbf16>
    %166 = vector.extract_strided_slice %162 {offsets = [0, 32], sizes = [8, 32], strides = [1, 1]} : vector<8x96xbf16> to vector<8x32xbf16>
    %167 = vector.shape_cast %166 : vector<8x32xbf16> to vector<8x4x8xbf16>
    %168 = tpu.transpose %167, [1, 0, 2] : vector<8x4x8xbf16> -> vector<4x8x8xbf16>
    %169 = vector.extract_strided_slice %162 {offsets = [0, 64], sizes = [8, 32], strides = [1, 1]} : vector<8x96xbf16> to vector<8x32xbf16>
    %170 = vector.shape_cast %169 : vector<8x32xbf16> to vector<8x4x8xbf16>
    %171 = tpu.transpose %170, [1, 0, 2] : vector<8x4x8xbf16> -> vector<4x8x8xbf16>
    "tpu.trace_start"() <{level = 10 : i32, message = "nqd,nkd->nqk"}> : () -> ()
    %cst_77 = arith.constant dense<0.000000e+00> : vector<4x8x8xf32>
    %172 = tpu.matmul %165, %168, %cst_77 {dimension_numbers = #tpu.dot_dimension_numbers<[2], [2], [1], [1], [0, 0, 0, 1, 1, 1], [0], [0]>} : vector<4x8x8xbf16>, vector<4x8x8xbf16>, vector<4x8x8xf32> -> vector<4x8x8xf32>
    "tpu.trace_stop"() : () -> ()
    %173 = vector.shape_cast %27 : vector<1x8xf32> to vector<1x1x8xf32>
    %174 = vector.broadcast %173 : vector<1x1x8xf32> to vector<4x8x8xf32>
    %175 = arith.addf %172, %174 : vector<4x8x8xf32>
    %cst_78 = arith.constant dense<0xFF800000> : vector<4x8xf32>
    %176 = vector.multi_reduction <maximumf>, %175, %cst_78 [2] : vector<4x8x8xf32> to vector<4x8xf32>
    %177 = vector.shape_cast %176 : vector<4x8xf32> to vector<4x8x1xf32>
    %178 = vector.broadcast %177 : vector<4x8x1xf32> to vector<4x8x8xf32>
    %179 = arith.subf %175, %178 : vector<4x8x8xf32>
    %180 = math.exp %179 : vector<4x8x8xf32>
    %cst_79 = arith.constant dense<0.000000e+00> : vector<4x8xf32>
    %181 = vector.multi_reduction <add>, %180, %cst_79 [2] : vector<4x8x8xf32> to vector<4x8xf32>
    %182 = vector.shape_cast %181 : vector<4x8xf32> to vector<4x8x1xf32>
    %183 = vector.broadcast %182 : vector<4x8x1xf32> to vector<4x8x8xf32>
    %184 = arith.divf %180, %183 : vector<4x8x8xf32>
    %185 = arith.truncf %184 : vector<4x8x8xf32> to vector<4x8x8xbf16>
    "tpu.trace_start"() <{level = 10 : i32, message = "nqk,nkd->nqd"}> : () -> ()
    %cst_80 = arith.constant dense<0.000000e+00> : vector<4x8x8xf32>
    %186 = tpu.matmul %185, %171, %cst_80 {dimension_numbers = #tpu.dot_dimension_numbers<[2], [1], [1], [2], [0, 0, 0, 1, 1, 2], [0], [0]>} : vector<4x8x8xbf16>, vector<4x8x8xbf16>, vector<4x8x8xf32> -> vector<4x8x8xf32>
    "tpu.trace_stop"() : () -> ()
    %187 = tpu.transpose %186, [1, 0, 2] : vector<4x8x8xf32> -> vector<8x4x8xf32>
    %188 = vector.shape_cast %187 : vector<8x4x8xf32> to vector<8x32xf32>
    %189 = arith.truncf %188 : vector<8x32xf32> to vector<8x32xbf16>
    %c1_81 = arith.constant 1 : index
    %c0_82 = arith.constant 0 : index
    %c0_83 = arith.constant 0 : index
    %190 = vector.load %arg7[%c1_81, %c0_82, %c0_83] : memref<2x32x32xbf16, #tpu.memory_space<vmem>>, vector<1x32x32xbf16>
    %191 = vector.shape_cast %190 : vector<1x32x32xbf16> to vector<32x32xbf16>
    %cst_84 = arith.constant dense<0.000000e+00> : vector<8x32xf32>
    %192 = tpu.matmul %189, %191, %cst_84 {dimension_numbers = #tpu.dot_dimension_numbers<[1], [0], [0], [1], [0, 0, 1, 1], [], []>} : vector<8x32xbf16>, vector<32x32xbf16>, vector<8x32xf32> -> vector<8x32xf32>
    %c1_85 = arith.constant 1 : index
    %c0_86 = arith.constant 0 : index
    %c0_87 = arith.constant 0 : index
    %193 = vector.load %arg8[%c1_85, %c0_86, %c0_87] : memref<2x1x32xf32, #tpu.memory_space<vmem>>, vector<1x1x32xf32>
    %194 = vector.shape_cast %193 : vector<1x1x32xf32> to vector<1x32xf32>
    %195 = vector.broadcast %194 : vector<1x32xf32> to vector<8x32xf32>
    %196 = arith.addf %192, %195 : vector<8x32xf32>
    %197 = arith.addf %196, %153 : vector<8x32xf32>
    %c1_88 = arith.constant 1 : index
    %c0_89 = arith.constant 0 : index
    %c0_90 = arith.constant 0 : index
    %198 = vector.load %arg9[%c1_88, %c0_89, %c0_90] : memref<2x1x32xf32, #tpu.memory_space<vmem>>, vector<1x1x32xf32>
    %199 = vector.shape_cast %198 : vector<1x1x32xf32> to vector<1x32xf32>
    %c1_91 = arith.constant 1 : index
    %c0_92 = arith.constant 0 : index
    %c0_93 = arith.constant 0 : index
    %200 = vector.load %arg10[%c1_91, %c0_92, %c0_93] : memref<2x1x32xf32, #tpu.memory_space<vmem>>, vector<1x1x32xf32>
    %201 = vector.shape_cast %200 : vector<1x1x32xf32> to vector<1x32xf32>
    %cst_94 = arith.constant dense<0.000000e+00> : vector<8xf32>
    %202 = vector.multi_reduction <add>, %197, %cst_94 [1] : vector<8x32xf32> to vector<8xf32>
    %203 = vector.shape_cast %202 : vector<8xf32> to vector<8x1xf32>
    %cst_95 = arith.constant 3.200000e+01 : f32
    %204 = vector.broadcast %cst_95 : f32 to vector<8x1xf32>
    %205 = arith.divf %203, %204 : vector<8x1xf32>
    %206 = arith.mulf %197, %197 : vector<8x32xf32>
    %cst_96 = arith.constant dense<0.000000e+00> : vector<8xf32>
    %207 = vector.multi_reduction <add>, %206, %cst_96 [1] : vector<8x32xf32> to vector<8xf32>
    %208 = vector.shape_cast %207 : vector<8xf32> to vector<8x1xf32>
    %cst_97 = arith.constant 3.200000e+01 : f32
    %209 = vector.broadcast %cst_97 : f32 to vector<8x1xf32>
    %210 = arith.divf %208, %209 : vector<8x1xf32>
    %211 = arith.mulf %205, %205 : vector<8x1xf32>
    %212 = arith.subf %210, %211 : vector<8x1xf32>
    %213 = vector.broadcast %205 : vector<8x1xf32> to vector<8x32xf32>
    %214 = arith.subf %197, %213 : vector<8x32xf32>
    %cst_98 = arith.constant 9.99999974E-6 : f32
    %215 = vector.broadcast %cst_98 : f32 to vector<8x1xf32>
    %216 = arith.addf %212, %215 : vector<8x1xf32>
    %217 = math.rsqrt %216 : vector<8x1xf32>
    %218 = vector.broadcast %217 : vector<8x1xf32> to vector<8x32xf32>
    %219 = arith.mulf %214, %218 : vector<8x32xf32>
    %220 = vector.broadcast %199 : vector<1x32xf32> to vector<8x32xf32>
    %221 = arith.mulf %219, %220 : vector<8x32xf32>
    %222 = vector.broadcast %201 : vector<1x32xf32> to vector<8x32xf32>
    %223 = arith.addf %221, %222 : vector<8x32xf32>
    %224 = arith.truncf %223 : vector<8x32xf32> to vector<8x32xbf16>
    %c1_99 = arith.constant 1 : index
    %c0_100 = arith.constant 0 : index
    %c0_101 = arith.constant 0 : index
    %225 = vector.load %arg11[%c1_99, %c0_100, %c0_101] : memref<2x32x64xbf16, #tpu.memory_space<vmem>>, vector<1x32x64xbf16>
    %226 = vector.shape_cast %225 : vector<1x32x64xbf16> to vector<32x64xbf16>
    %cst_102 = arith.constant dense<0.000000e+00> : vector<8x64xf32>
    %227 = tpu.matmul %224, %226, %cst_102 {dimension_numbers = #tpu.dot_dimension_numbers<[1], [0], [0], [1], [0, 0, 1, 1], [], []>} : vector<8x32xbf16>, vector<32x64xbf16>, vector<8x64xf32> -> vector<8x64xf32>
    %c1_103 = arith.constant 1 : index
    %c0_104 = arith.constant 0 : index
    %c0_105 = arith.constant 0 : index
    %228 = vector.load %arg12[%c1_103, %c0_104, %c0_105] : memref<2x1x64xf32, #tpu.memory_space<vmem>>, vector<1x1x64xf32>
    %229 = vector.shape_cast %228 : vector<1x1x64xf32> to vector<1x64xf32>
    %230 = vector.broadcast %229 : vector<1x64xf32> to vector<8x64xf32>
    %231 = arith.addf %227, %230 : vector<8x64xf32>
    %232 = arith.mulf %231, %231 : vector<8x64xf32>
    %233 = arith.mulf %231, %232 : vector<8x64xf32>
    %cst_106 = arith.constant 4.471500e-02 : f32
    %234 = vector.broadcast %cst_106 : f32 to vector<8x64xf32>
    %235 = arith.mulf %234, %233 : vector<8x64xf32>
    %236 = arith.addf %231, %235 : vector<8x64xf32>
    %cst_107 = arith.constant 0.797884583 : f32
    %237 = vector.broadcast %cst_107 : f32 to vector<8x64xf32>
    %238 = arith.mulf %237, %236 : vector<8x64xf32>
    %239 = math.tanh %238 : vector<8x64xf32>
    %cst_108 = arith.constant 1.000000e+00 : f32
    %240 = vector.broadcast %cst_108 : f32 to vector<8x64xf32>
    %241 = arith.addf %240, %239 : vector<8x64xf32>
    %cst_109 = arith.constant 5.000000e-01 : f32
    %242 = vector.broadcast %cst_109 : f32 to vector<8x64xf32>
    %243 = arith.mulf %242, %241 : vector<8x64xf32>
    %244 = arith.mulf %231, %243 : vector<8x64xf32>
    %245 = arith.truncf %244 : vector<8x64xf32> to vector<8x64xbf16>
    %c1_110 = arith.constant 1 : index
    %c0_111 = arith.constant 0 : index
    %c0_112 = arith.constant 0 : index
    %246 = vector.load %arg13[%c1_110, %c0_111, %c0_112] : memref<2x64x32xbf16, #tpu.memory_space<vmem>>, vector<1x64x32xbf16>
    %247 = vector.shape_cast %246 : vector<1x64x32xbf16> to vector<64x32xbf16>
    %cst_113 = arith.constant dense<0.000000e+00> : vector<8x32xf32>
    %248 = tpu.matmul %245, %247, %cst_113 {dimension_numbers = #tpu.dot_dimension_numbers<[1], [0], [0], [1], [0, 0, 1, 1], [], []>} : vector<8x64xbf16>, vector<64x32xbf16>, vector<8x32xf32> -> vector<8x32xf32>
    %c1_114 = arith.constant 1 : index
    %c0_115 = arith.constant 0 : index
    %c0_116 = arith.constant 0 : index
    %249 = vector.load %arg14[%c1_114, %c0_115, %c0_116] : memref<2x1x32xf32, #tpu.memory_space<vmem>>, vector<1x1x32xf32>
    %250 = vector.shape_cast %249 : vector<1x1x32xf32> to vector<1x32xf32>
    %251 = vector.broadcast %250 : vector<1x32xf32> to vector<8x32xf32>
    %252 = arith.addf %248, %251 : vector<8x32xf32>
    %253 = arith.addf %252, %223 : vector<8x32xf32>
    %c1_117 = arith.constant 1 : index
    %c0_118 = arith.constant 0 : index
    %c0_119 = arith.constant 0 : index
    %254 = vector.load %arg15[%c1_117, %c0_118, %c0_119] : memref<2x1x32xf32, #tpu.memory_space<vmem>>, vector<1x1x32xf32>
    %255 = vector.shape_cast %254 : vector<1x1x32xf32> to vector<1x32xf32>
    %c1_120 = arith.constant 1 : index
    %c0_121 = arith.constant 0 : index
    %c0_122 = arith.constant 0 : index
    %256 = vector.load %arg16[%c1_120, %c0_121, %c0_122] : memref<2x1x32xf32, #tpu.memory_space<vmem>>, vector<1x1x32xf32>
    %257 = vector.shape_cast %256 : vector<1x1x32xf32> to vector<1x32xf32>
    %cst_123 = arith.constant dense<0.000000e+00> : vector<8xf32>
    %258 = vector.multi_reduction <add>, %253, %cst_123 [1] : vector<8x32xf32> to vector<8xf32>
    %259 = vector.shape_cast %258 : vector<8xf32> to vector<8x1xf32>
    %cst_124 = arith.constant 3.200000e+01 : f32
    %260 = vector.broadcast %cst_124 : f32 to vector<8x1xf32>
    %261 = arith.divf %259, %260 : vector<8x1xf32>
    %262 = arith.mulf %253, %253 : vector<8x32xf32>
    %cst_125 = arith.constant dense<0.000000e+00> : vector<8xf32>
    %263 = vector.multi_reduction <add>, %262, %cst_125 [1] : vector<8x32xf32> to vector<8xf32>
    %264 = vector.shape_cast %263 : vector<8xf32> to vector<8x1xf32>
    %cst_126 = arith.constant 3.200000e+01 : f32
    %265 = vector.broadcast %cst_126 : f32 to vector<8x1xf32>
    %266 = arith.divf %264, %265 : vector<8x1xf32>
    %267 = arith.mulf %261, %261 : vector<8x1xf32>
    %268 = arith.subf %266, %267 : vector<8x1xf32>
    %269 = vector.broadcast %261 : vector<8x1xf32> to vector<8x32xf32>
    %270 = arith.subf %253, %269 : vector<8x32xf32>
    %cst_127 = arith.constant 9.99999974E-6 : f32
    %271 = vector.broadcast %cst_127 : f32 to vector<8x1xf32>
    %272 = arith.addf %268, %271 : vector<8x1xf32>
    %273 = math.rsqrt %272 : vector<8x1xf32>
    %274 = vector.broadcast %273 : vector<8x1xf32> to vector<8x32xf32>
    %275 = arith.mulf %270, %274 : vector<8x32xf32>
    %276 = vector.broadcast %255 : vector<1x32xf32> to vector<8x32xf32>
    %277 = arith.mulf %275, %276 : vector<8x32xf32>
    %278 = vector.broadcast %257 : vector<1x32xf32> to vector<8x32xf32>
    %279 = arith.addf %277, %278 : vector<8x32xf32>
    %280 = vector.extract_strided_slice %279 {offsets = [0, 0], sizes = [1, 32], strides = [1, 1]} : vector<8x32xf32> to vector<1x32xf32>
    %281 = arith.truncf %280 : vector<1x32xf32> to vector<1x32xbf16>
    %c0_128 = arith.constant 0 : index
    %c0_129 = arith.constant 0 : index
    %282 = vector.load %arg17[%c0_128, %c0_129] : memref<32x128xbf16, #tpu.memory_space<vmem>>, vector<32x128xbf16>
    %cst_130 = arith.constant dense<0.000000e+00> : vector<1x128xf32>
    %283 = tpu.matmul %281, %282, %cst_130 {dimension_numbers = #tpu.dot_dimension_numbers<[1], [0], [0], [1], [0, 0, 1, 1], [], []>} : vector<1x32xbf16>, vector<32x128xbf16>, vector<1x128xf32> -> vector<1x128xf32>
    %c0_131 = arith.constant 0 : index
    %c0_132 = arith.constant 0 : index
    %284 = vector.load %arg18[%c0_131, %c0_132] : memref<1x128xf32, #tpu.memory_space<vmem>>, vector<1x128xf32>
    %285 = arith.addf %283, %284 : vector<1x128xf32>
    %c0_133 = arith.constant 0 : index
    %c0_134 = arith.constant 0 : index
    %c0_135 = arith.constant 0 : index
    %286 = vector.load %arg19[%c0_133, %c0_134, %c0_135] : memref<1x1x128xf32, #tpu.memory_space<vmem>>, vector<1x1x128xf32>
    %287 = vector.shape_cast %286 : vector<1x1x128xf32> to vector<1x128xf32>
    %288 = vector.shape_cast %285 : vector<1x128xf32> to vector<1x1x128xf32>
    tpu.vector_store %arg19[%c0_133, %c0_134, %c0_135], %288 {strides = array<i32>} : memref<1x1x128xf32, #tpu.memory_space<vmem>>, vector<1x1x128xf32>,
    return
  }
  func.func @transform_0(%arg0: i32) -> (i32, i32, i32) {
    %c0_i32 = arith.constant 0 : i32
    %c0_i32_0 = arith.constant 0 : i32
    %c0_i32_1 = arith.constant 0 : i32
    return %arg0, %c0_i32, %c0_i32_0 : i32, i32, i32
  }
  func.func @transform_1(%arg0: i32) -> (i32, i32) {
    %c0_i32 = arith.constant 0 : i32
    %c0_i32_0 = arith.constant 0 : i32
    %c0_i32_1 = arith.constant 0 : i32
    return %c0_i32, %c0_i32_0 : i32, i32
  }
  func.func @transform_2(%arg0: i32) -> (i32, i32) {
    %c0_i32 = arith.constant 0 : i32
    %c0_i32_0 = arith.constant 0 : i32
    %c0_i32_1 = arith.constant 0 : i32
    return %c0_i32, %c0_i32_0 : i32, i32
  }
  func.func @transform_3(%arg0: i32) -> (i32, i32, i32) {
    %c0_i32 = arith.constant 0 : i32
    %c0_i32_0 = arith.constant 0 : i32
    %c0_i32_1 = arith.constant 0 : i32
    return %arg0, %c0_i32, %c0_i32_0 : i32, i32, i32
  }
  func.func @transform_4(%arg0: i32) -> (i32, i32, i32) {
    %c0_i32 = arith.constant 0 : i32
    %c0_i32_0 = arith.constant 0 : i32
    %c0_i32_1 = arith.constant 0 : i32
    %c0_i32_2 = arith.constant 0 : i32
    return %c0_i32, %c0_i32_0, %c0_i32_1 : i32, i32, i32
  }
  func.func @transform_5(%arg0: i32) -> (i32, i32, i32) {
    %c0_i32 = arith.constant 0 : i32
    %c0_i32_0 = arith.constant 0 : i32
    %c0_i32_1 = arith.constant 0 : i32
    %c0_i32_2 = arith.constant 0 : i32
    return %c0_i32, %c0_i32_0, %c0_i32_1 : i32, i32, i32
  }
  func.func @transform_6(%arg0: i32) -> (i32, i32, i32) {
    %c0_i32 = arith.constant 0 : i32
    %c0_i32_0 = arith.constant 0 : i32
    %c0_i32_1 = arith.constant 0 : i32
    %c0_i32_2 = arith.constant 0 : i32
    return %c0_i32, %c0_i32_0, %c0_i32_1 : i32, i32, i32
  }
  func.func @transform_7(%arg0: i32) -> (i32, i32, i32) {
    %c0_i32 = arith.constant 0 : i32
    %c0_i32_0 = arith.constant 0 : i32
    %c0_i32_1 = arith.constant 0 : i32
    %c0_i32_2 = arith.constant 0 : i32
    return %c0_i32, %c0_i32_0, %c0_i32_1 : i32, i32, i32
  }
  func.func @transform_8(%arg0: i32) -> (i32, i32, i32) {
    %c0_i32 = arith.constant 0 : i32
    %c0_i32_0 = arith.constant 0 : i32
    %c0_i32_1 = arith.constant 0 : i32
    %c0_i32_2 = arith.constant 0 : i32
    return %c0_i32, %c0_i32_0, %c0_i32_1 : i32, i32, i32
  }
  func.func @transform_9(%arg0: i32) -> (i32, i32, i32) {
    %c0_i32 = arith.constant 0 : i32
    %c0_i32_0 = arith.constant 0 : i32
    %c0_i32_1 = arith.constant 0 : i32
    %c0_i32_2 = arith.constant 0 : i32
    return %c0_i32, %c0_i32_0, %c0_i32_1 : i32, i32, i32
  }
  func.func @transform_10(%arg0: i32) -> (i32, i32, i32) {
    %c0_i32 = arith.constant 0 : i32
    %c0_i32_0 = arith.constant 0 : i32
    %c0_i32_1 = arith.constant 0 : i32
    %c0_i32_2 = arith.constant 0 : i32
    return %c0_i32, %c0_i32_0, %c0_i32_1 : i32, i32, i32
  }
  func.func @transform_11(%arg0: i32) -> (i32, i32, i32) {
    %c0_i32 = arith.constant 0 : i32
    %c0_i32_0 = arith.constant 0 : i32
    %c0_i32_1 = arith.constant 0 : i32
    %c0_i32_2 = arith.constant 0 : i32
    return %c0_i32, %c0_i32_0, %c0_i32_1 : i32, i32, i32
  }
  func.func @transform_12(%arg0: i32) -> (i32, i32, i32) {
    %c0_i32 = arith.constant 0 : i32
    %c0_i32_0 = arith.constant 0 : i32
    %c0_i32_1 = arith.constant 0 : i32
    %c0_i32_2 = arith.constant 0 : i32
    return %c0_i32, %c0_i32_0, %c0_i32_1 : i32, i32, i32
  }
  func.func @transform_13(%arg0: i32) -> (i32, i32, i32) {
    %c0_i32 = arith.constant 0 : i32
    %c0_i32_0 = arith.constant 0 : i32
    %c0_i32_1 = arith.constant 0 : i32
    %c0_i32_2 = arith.constant 0 : i32
    return %c0_i32, %c0_i32_0, %c0_i32_1 : i32, i32, i32
  }
  func.func @transform_14(%arg0: i32) -> (i32, i32, i32) {
    %c0_i32 = arith.constant 0 : i32
    %c0_i32_0 = arith.constant 0 : i32
    %c0_i32_1 = arith.constant 0 : i32
    %c0_i32_2 = arith.constant 0 : i32
    return %c0_i32, %c0_i32_0, %c0_i32_1 : i32, i32, i32
  }
  func.func @transform_15(%arg0: i32) -> (i32, i32, i32) {
    %c0_i32 = arith.constant 0 : i32
    %c0_i32_0 = arith.constant 0 : i32
    %c0_i32_1 = arith.constant 0 : i32
    %c0_i32_2 = arith.constant 0 : i32
    return %c0_i32, %c0_i32_0, %c0_i32_1 : i32, i32, i32
  }
  func.func @transform_16(%arg0: i32) -> (i32, i32) {
    %c0_i32 = arith.constant 0 : i32
    %c0_i32_0 = arith.constant 0 : i32
    %c0_i32_1 = arith.constant 0 : i32
    return %c0_i32, %c0_i32_0 : i32, i32
  }
  func.func @transform_17(%arg0: i32) -> (i32, i32) {
    %c0_i32 = arith.constant 0 : i32
    %c0_i32_0 = arith.constant 0 : i32
    %c0_i32_1 = arith.constant 0 : i32
    return %c0_i32, %c0_i32_0 : i32, i32
  }
  func.func @transform_18(%arg0: i32) -> (i32, i32, i32) {
    %c0_i32 = arith.constant 0 : i32
    %c0_i32_0 = arith.constant 0 : i32
    %c0_i32_1 = arith.constant 0 : i32
    return %arg0, %c0_i32, %c0_i32_0 : i32, i32, i32
  }
}

</mosaic_0001>

<llo_original>
// kernel: phobert_classifier_forward.1
$region0: #{phobert_classifier_forward.1}
  #allocation0 [shape = 'u32[]', space=smem, size = 0x4, offset = 0x4, fixed_abs, tag = 'smem constant byte address 0x4 - core index']
  #allocation1 [shape = 'u32[144,128]{1,0:T(1,128)}', space=vmem, size = 0x12000, scoped, tag = 'internal scratch']
  %s0 = inlined_call_operand.vmem [shape: f32[2,8,32], index: 0, kind: input, shape index: {}]
  %s1 = inlined_call_operand.vmem [shape: f32[1,32], index: 1, kind: input, shape index: {}]
  %s2 = inlined_call_operand.vmem [shape: f32[1,32], index: 2, kind: input, shape index: {}]
  %s3 = inlined_call_operand.vmem [shape: f32[2,1,8], index: 3, kind: input, shape index: {}]
  %s4 = inlined_call_operand.vmem [shape: bf16[2,32,96], index: 4, kind: input, shape index: {}]
  %s5 = inlined_call_operand.vmem [shape: f32[2,1,96], index: 5, kind: input, shape index: {}]
  %s6 = inlined_call_operand.vmem [shape: bf16[2,32,32], index: 6, kind: input, shape index: {}]
  %s7 = inlined_call_operand.vmem [shape: f32[2,1,32], index: 7, kind: input, shape index: {}]
  %s8 = inlined_call_operand.vmem [shape: f32[2,1,32], index: 8, kind: input, shape index: {}]
  %s9 = inlined_call_operand.vmem [shape: f32[2,1,32], index: 9, kind: input, shape index: {}]
  %s10 = inlined_call_operand.vmem [shape: bf16[2,32,64], index: 10, kind: input, shape index: {}]
  %s11 = inlined_call_operand.vmem [shape: f32[2,1,64], index: 11, kind: input, shape index: {}]
  %s12 = inlined_call_operand.vmem [shape: bf16[2,64,32], index: 12, kind: input, shape index: {}]
  %s13 = inlined_call_operand.vmem [shape: f32[2,1,32], index: 13, kind: input, shape index: {}]
  %s14 = inlined_call_operand.vmem [shape: f32[2,1,32], index: 14, kind: input, shape index: {}]
  %s15 = inlined_call_operand.vmem [shape: f32[2,1,32], index: 15, kind: input, shape index: {}]
  %s16 = inlined_call_operand.vmem [shape: bf16[32,128], index: 16, kind: input, shape index: {}]
  %s17 = inlined_call_operand.vmem [shape: f32[1,128], index: 17, kind: input, shape index: {}]
  %s18 = inlined_call_operand.hbm [shape: f32[2,1,128], index: 18, kind: output, shape index: {}]
  %s19 = sld [smem:[#allocation0]]
  $region105: #{phobert_classifier_forward.1} parent=0
    _
  %s21 = ssub.s32 1, %s19
  %s22 = scalar_select 0, %s21, %s19
  $region1: #{phobert_classifier_forward.1} parent=0
    #allocation2 [shape = 'u8[1024]{0}', space=vmem, size = 0x400, scoped, tag = 'output window, operand 0']
    #allocation3 [shape = 's32[2]{0}', space=sflag, size = 0x8, scoped, tag = 'scoped memory for phobert_classifier_forward.1']
    %23 = vsyncpa [#allocation3], 0
    %s24 = scalar_lea.sflag [#allocation3], 1
    %25 = vsyncpa %s24, 0
    loop: start=0, step=1, limit=4
    $region2: #{phobert_classifier_forward.1} parent=1 // loop_pre_header
      _
    $region3: #{phobert_classifier_forward.1} parent=1 // loop_header
      %s27 = sphi 0, %s31
      %p28 = scmp.ge.s32.totalorder %s27, 4
      %s37 = sphi 0, %s39
      %s40 = sphi 0, %s37
      %s41 = sphi 0, %s40
      %s57 = sphi 0, %s41
      %s61 = sphi 0, %s61
      %s63 = sphi 0, %s61
      %s64 = sphi 0, %s63
      %s78 = sphi 0, %s64
      %s82 = sphi 0, %s82
      %s84 = sphi 0, %s82
      %s85 = sphi 0, %s84
      %s99 = sphi 0, %s85
      %s105 = sphi 0, %s107
      %s108 = sphi 0, %s105
      %s109 = sphi 0, %s108
      %s125 = sphi 0, %s109
      %s129 = sphi 0, %s129
      %s131 = sphi 0, %s129
      %s132 = sphi 0, %s131
      %s146 = sphi 0, %s132
      %s150 = sphi 0, %s150
      %s152 = sphi 0, %s150
      %s153 = sphi 0, %s152
      %s167 = sphi 0, %s153
      %s171 = sphi 0, %s171
      %s173 = sphi 0, %s171
      %s174 = sphi 0, %s173
      %s188 = sphi 0, %s174
      %s192 = sphi 0, %s192
      %s194 = sphi 0, %s192
      %s195 = sphi 0, %s194
      %s209 = sphi 0, %s195
      %s213 = sphi 0, %s213
      %s215 = sphi 0, %s213
      %s216 = sphi 0, %s215
      %s230 = sphi 0, %s216
      %s234 = sphi 0, %s234
      %s236 = sphi 0, %s234
      %s237 = sphi 0, %s236
      %s251 = sphi 0, %s237
      %s255 = sphi 0, %s255
      %s257 = sphi 0, %s255
      %s258 = sphi 0, %s257
      %s272 = sphi 0, %s258
      %s276 = sphi 0, %s276
      %s278 = sphi 0, %s276
      %s279 = sphi 0, %s278
      %s293 = sphi 0, %s279
      %s297 = sphi 0, %s297
      %s299 = sphi 0, %s297
      %s300 = sphi 0, %s299
      %s314 = sphi 0, %s300
      %s318 = sphi 0, %s318
      %s320 = sphi 0, %s318
      %s321 = sphi 0, %s320
      %s335 = sphi 0, %s321
      %s339 = sphi 0, %s339
      %s341 = sphi 0, %s339
      %s342 = sphi 0, %s341
      %s356 = sphi 0, %s342
      %s360 = sphi 0, %s360
      %s362 = sphi 0, %s360
      %s363 = sphi 0, %s362
      %s377 = sphi 0, %s363
      %s381 = sphi 0, %s381
      %s383 = sphi 0, %s381
      %s384 = sphi 0, %s383
      %s398 = sphi 0, %s384
      %s402 = sphi 0, %s402
      %s404 = sphi 0, %s402
      %s405 = sphi 0, %s404
      %s419 = sphi 0, %s405
      %s425 = sphi 0, %s427
      %s428 = sphi 0, %s425
      %s429 = sphi 0, %s428
      %s445 = sphi 0, %s429
    $region4: #{phobert_classifier_forward.1} parent=1 // loop_header_branch
      %30 = sbr.rel (%p28) target = $region8
    $region5: #{phobert_classifier_forward.1} parent=1 // loop_body
      %s32 = ssub.s32 %s27, 1
      %s33 = ssub.s32 %s27, 2
      %s34 = sadd.s32 %s27, 1
      %s35 = ssub.s32 %s27, %s34
      %p36 = scmp.eq.s32.totalorder %s35, 0
      %s38 = sadd.s32 %s37, 1
      %s39 = scalar_select %p36, %s37, %s38
      %p42 = pneg %p36
      %p43 = scmp.eq.s32.totalorder %s27, 1
      %p44 = por %p42, %p43
      %p45 = scmp.ne.s32.totalorder %s37, %s40
      %p46 = scmp.eq.s32.totalorder %s27, 0
      %p47 = por %p45, %p46
      %p48 = scmp.ne.s32.totalorder %s37, %s40
      %p49 = scmp.eq.s32.totalorder %s32, 1
      %p50 = por %p48, %p49
      %p51 = scmp.ne.s32.totalorder %s40, %s41
      %p52 = scmp.eq.s32.totalorder %s32, 0
      %p53 = por %p51, %p52
      %p54 = scmp.ne.s32.totalorder %s40, %s41
      %p55 = scmp.eq.s32.totalorder %s33, 1
      %p56 = por %p54, %p55
      %p58 = scmp.ne.s32.totalorder %s41, %s57
      %p59 = scmp.eq.s32.totalorder %s33, 0
      %p60 = por %p58, %p59
      %s62 = sadd.s32 %s61, 1
      %p65 = scmp.eq.s32.totalorder %s27, 1
      %p66 = scmp.ne.s32.totalorder %s61, %s63
      %p67 = scmp.eq.s32.totalorder %s27, 0
      %p68 = por %p66, %p67
      %p69 = scmp.ne.s32.totalorder %s61, %s63
      %p70 = scmp.eq.s32.totalorder %s32, 1
      %p71 = por %p69, %p70
      %p72 = scmp.ne.s32.totalorder %s63, %s64
      %p73 = scmp.eq.s32.totalorder %s32, 0
      %p74 = por %p72, %p73
      %p75 = scmp.ne.s32.totalorder %s63, %s64
      %p76 = scmp.eq.s32.totalorder %s33, 1
      %p77 = por %p75, %p76
      %p79 = scmp.ne.s32.totalorder %s64, %s78
      %p80 = scmp.eq.s32.totalorder %s33, 0
      %p81 = por %p79, %p80
      %s83 = sadd.s32 %s82, 1
      %p86 = scmp.eq.s32.totalorder %s27, 1
      %p87 = scmp.ne.s32.totalorder %s82, %s84
      %p88 = scmp.eq.s32.totalorder %s27, 0
      %p89 = por %p87, %p88
      %p90 = scmp.ne.s32.totalorder %s82, %s84
      %p91 = scmp.eq.s32.totalorder %s32, 1
      %p92 = por %p90, %p91
      %p93 = scmp.ne.s32.totalorder %s84, %s85
      %p94 = scmp.eq.s32.totalorder %s32, 0
      %p95 = por %p93, %p94
      %p96 = scmp.ne.s32.totalorder %s84, %s85
      %p97 = scmp.eq.s32.totalorder %s33, 1
      %p98 = por %p96, %p97
      %p100 = scmp.ne.s32.totalorder %s85, %s99
      %p101 = scmp.eq.s32.totalorder %s33, 0
      %p102 = por %p100, %p101
      %s103 = ssub.s32 %s27, %s34
      %p104 = scmp.eq.s32.totalorder %s103, 0
      %s106 = sadd.s32 %s105, 1
      %s107 = scalar_select %p104, %s105, %s106
      %p110 = pneg %p104
      %p111 = scmp.eq.s32.totalorder %s27, 1
      %p112 = por %p110, %p111
      %p113 = scmp.ne.s32.totalorder %s105, %s108
      %p114 = scmp.eq.s32.totalorder %s27, 0
      %p115 = por %p113, %p114
      %p116 = scmp.ne.s32.totalorder %s105, %s108
      %p117 = scmp.eq.s32.totalorder %s32, 1
      %p118 = por %p116, %p117
      %p119 = scmp.ne.s32.totalorder %s108, %s109
      %p120 = scmp.eq.s32.totalorder %s32, 0
      %p121 = por %p119, %p120
      %p122 = scmp.ne.s32.totalorder %s108, %s109
      %p123 = scmp.eq.s32.totalorder %s33, 1
      %p124 = por %p122, %p123
      %p126 = scmp.ne.s32.totalorder %s109, %s125
      %p127 = scmp.eq.s32.totalorder %s33, 0
      %p128 = por %p126, %p127
      %s130 = sadd.s32 %s129, 1
      %p133 = scmp.eq.s32.totalorder %s27, 1
      %p134 = scmp.ne.s32.totalorder %s129, %s131
      %p135 = scmp.eq.s32.totalorder %s27, 0
      %p136 = por %p134, %p135
      %p137 = scmp.ne.s32.totalorder %s129, %s131
      %p138 = scmp.eq.s32.totalorder %s32, 1
      %p139 = por %p137, %p138
      %p140 = scmp.ne.s32.totalorder %s131, %s132
      %p141 = scmp.eq.s32.totalorder %s32, 0
      %p142 = por %p140, %p141
      %p143 = scmp.ne.s32.totalorder %s131, %s132
      %p144 = scmp.eq.s32.totalorder %s33, 1
      %p145 = por %p143, %p144
      %p147 = scmp.ne.s32.totalorder %s132, %s146
      %p148 = scmp.eq.s32.totalorder %s33, 0
      %p149 = por %p147, %p148
      %s151 = sadd.s32 %s150, 1
      %p154 = scmp.eq.s32.totalorder %s27, 1
      %p155 = scmp.ne.s32.totalorder %s150, %s152
      %p156 = scmp.eq.s32.totalorder %s27, 0
      %p157 = por %p155, %p156
      %p158 = scmp.ne.s32.totalorder %s150, %s152
      %p159 = scmp.eq.s32.totalorder %s32, 1
      %p160 = por %p158, %p159
      %p161 = scmp.ne.s32.totalorder %s152, %s153
      %p162 = scmp.eq.s32.totalorder %s32, 0
      %p163 = por %p161, %p162
      %p164 = scmp.ne.s32.totalorder %s152, %s153
      %p165 = scmp.eq.s32.totalorder %s33, 1
      %p166 = por %p164, %p165
      %p168 = scmp.ne.s32.totalorder %s153, %s167
      %p169 = scmp.eq.s32.totalorder %s33, 0
      %p170 = por %p168, %p169
      %s172 = sadd.s32 %s171, 1
      %p175 = scmp.eq.s32.totalorder %s27, 1
      %p176 = scmp.ne.s32.totalorder %s171, %s173
      %p177 = scmp.eq.s32.totalorder %s27, 0
      %p178 = por %p176, %p177
      %p179 = scmp.ne.s32.totalorder %s171, %s173
      %p180 = scmp.eq.s32.totalorder %s32, 1
      %p181 = por %p179, %p180
      %p182 = scmp.ne.s32.totalorder %s173, %s174
      %p183 = scmp.eq.s32.totalorder %s32, 0
      %p184 = por %p182, %p183
      %p185 = scmp.ne.s32.totalorder %s173, %s174
      %p186 = scmp.eq.s32.totalorder %s33, 1
      %p187 = por %p185, %p186
      %p189 = scmp.ne.s32.totalorder %s174, %s188
      %p190 = scmp.eq.s32.totalorder %s33, 0
      %p191 = por %p189, %p190
      %s193 = sadd.s32 %s192, 1
      %p196 = scmp.eq.s32.totalorder %s27, 1
      %p197 = scmp.ne.s32.totalorder %s192, %s194
      %p198 = scmp.eq.s32.totalorder %s27, 0
      %p199 = por %p197, %p198
      %p200 = scmp.ne.s32.totalorder %s192, %s194
      %p201 = scmp.eq.s32.totalorder %s32, 1
      %p202 = por %p200, %p201
      %p203 = scmp.ne.s32.totalorder %s194, %s195
      %p204 = scmp.eq.s32.totalorder %s32, 0
      %p205 = por %p203, %p204
      %p206 = scmp.ne.s32.totalorder %s194, %s195
      %p207 = scmp.eq.s32.totalorder %s33, 1
      %p208 = por %p206, %p207
      %p210 = scmp.ne.s32.totalorder %s195, %s209
      %p211 = scmp.eq.s32.totalorder %s33, 0
      %p212 = por %p210, %p211
      %s214 = sadd.s32 %s213, 1
      %p217 = scmp.eq.s32.totalorder %s27, 1
      %p218 = scmp.ne.s32.totalorder %s213, %s215
      %p219 = scmp.eq.s32.totalorder %s27, 0
      %p220 = por %p218, %p219
      %p221 = scmp.ne.s32.totalorder %s213, %s215
      %p222 = scmp.eq.s32.totalorder %s32, 1
      %p223 = por %p221, %p222
      %p224 = scmp.ne.s32.totalorder %s215, %s216
      %p225 = scmp.eq.s32.totalorder %s32, 0
      %p226 = por %p224, %p225
      %p227 = scmp.ne.s32.totalorder %s215, %s216
      %p228 = scmp.eq.s32.totalorder %s33, 1
      %p229 = por %p227, %p228
      %p231 = scmp.ne.s32.totalorder %s216, %s230
      %p232 = scmp.eq.s32.totalorder %s33, 0
      %p233 = por %p231, %p232
      %s235 = sadd.s32 %s234, 1
      %p238 = scmp.eq.s32.totalorder %s27, 1
      %p239 = scmp.ne.s32.totalorder %s234, %s236
      %p240 = scmp.eq.s32.totalorder %s27, 0
      %p241 = por %p239, %p240
      %p242 = scmp.ne.s32.totalorder %s234, %s236
      %p243 = scmp.eq.s32.totalorder %s32, 1
      %p244 = por %p242, %p243
      %p245 = scmp.ne.s32.totalorder %s236, %s237
      %p246 = scmp.eq.s32.totalorder %s32, 0
      %p247 = por %p245, %p246
      %p248 = scmp.ne.s32.totalorder %s236, %s237
      %p249 = scmp.eq.s32.totalorder %s33, 1
      %p250 = por %p248, %p249
      %p252 = scmp.ne.s32.totalorder %s237, %s251
      %p253 = scmp.eq.s32.totalorder %s33, 0
      %p254 = por %p252, %p253
      %s256 = sadd.s32 %s255, 1
      %p259 = scmp.eq.s32.totalorder %s27, 1
      %p260 = scmp.ne.s32.totalorder %s255, %s257
      %p261 = scmp.eq.s32.totalorder %s27, 0
      %p262 = por %p260, %p261
      %p263 = scmp.ne.s32.totalorder %s255, %s257
      %p264 = scmp.eq.s32.totalorder %s32, 1
      %p265 = por %p263, %p264
      %p266 = scmp.ne.s32.totalorder %s257, %s258
      %p267 = scmp.eq.s32.totalorder %s32, 0
      %p268 = por %p266, %p267
      %p269 = scmp.ne.s32.totalorder %s257, %s258
      %p270 = scmp.eq.s32.totalorder %s33, 1
      %p271 = por %p269, %p270
      %p273 = scmp.ne.s32.totalorder %s258, %s272
      %p274 = scmp.eq.s32.totalorder %s33, 0
      %p275 = por %p273, %p274
      %s277 = sadd.s32 %s276, 1
      %p280 = scmp.eq.s32.totalorder %s27, 1
      %p281 = scmp.ne.s32.totalorder %s276, %s278
      %p282 = scmp.eq.s32.totalorder %s27, 0
      %p283 = por %p281, %p282
      %p284 = scmp.ne.s32.totalorder %s276, %s278
      %p285 = scmp.eq.s32.totalorder %s32, 1
      %p286 = por %p284, %p285
      %p287 = scmp.ne.s32.totalorder %s278, %s279
      %p288 = scmp.eq.s32.totalorder %s32, 0
      %p289 = por %p287, %p288
      %p290 = scmp.ne.s32.totalorder %s278, %s279
      %p291 = scmp.eq.s32.totalorder %s33, 1
      %p292 = por %p290, %p291
      %p294 = scmp.ne.s32.totalorder %s279, %s293
      %p295 = scmp.eq.s32.totalorder %s33, 0
      %p296 = por %p294, %p295
      %s298 = sadd.s32 %s297, 1
      %p301 = scmp.eq.s32.totalorder %s27, 1
      %p302 = scmp.ne.s32.totalorder %s297, %s299
      %p303 = scmp.eq.s32.totalorder %s27, 0
      %p304 = por %p302, %p303
      %p305 = scmp.ne.s32.totalorder %s297, %s299
      %p306 = scmp.eq.s32.totalorder %s32, 1
      %p307 = por %p305, %p306
      %p308 = scmp.ne.s32.totalorder %s299, %s300
      %p309 = scmp.eq.s32.totalorder %s32, 0
      %p310 = por %p308, %p309
      %p311 = scmp.ne.s32.totalorder %s299, %s300
      %p312 = scmp.eq.s32.totalorder %s33, 1
      %p313 = por %p311, %p312
      %p315 = scmp.ne.s32.totalorder %s300, %s314
      %p316 = scmp.eq.s32.totalorder %s33, 0
      %p317 = por %p315, %p316
      %s319 = sadd.s32 %s318, 1
      %p322 = scmp.eq.s32.totalorder %s27, 1
      %p323 = scmp.ne.s32.totalorder %s318, %s320
      %p324 = scmp.eq.s32.totalorder %s27, 0
      %p325 = por %p323, %p324
      %p326 = scmp.ne.s32.totalorder %s318, %s320
      %p327 = scmp.eq.s32.totalorder %s32, 1
      %p328 = por %p326, %p327
      %p329 = scmp.ne.s32.totalorder %s320, %s321
      %p330 = scmp.eq.s32.totalorder %s32, 0
      %p331 = por %p329, %p330
      %p332 = scmp.ne.s32.totalorder %s320, %s321
      %p333 = scmp.eq.s32.totalorder %s33, 1
      %p334 = por %p332, %p333
      %p336 = scmp.ne.s32.totalorder %s321, %s335
      %p337 = scmp.eq.s32.totalorder %s33, 0
      %p338 = por %p336, %p337
      %s340 = sadd.s32 %s339, 1
      %p343 = scmp.eq.s32.totalorder %s27, 1
      %p344 = scmp.ne.s32.totalorder %s339, %s341
      %p345 = scmp.eq.s32.totalorder %s27, 0
      %p346 = por %p344, %p345
      %p347 = scmp.ne.s32.totalorder %s339, %s341
      %p348 = scmp.eq.s32.totalorder %s32, 1
      %p349 = por %p347, %p348
      %p350 = scmp.ne.s32.totalorder %s341, %s342
      %p351 = scmp.eq.s32.totalorder %s32, 0
      %p352 = por %p350, %p351
      %p353 = scmp.ne.s32.totalorder %s341, %s342
      %p354 = scmp.eq.s32.totalorder %s33, 1
      %p355 = por %p353, %p354
      %p357 = scmp.ne.s32.totalorder %s342, %s356
      %p358 = scmp.eq.s32.totalorder %s33, 0
      %p359 = por %p357, %p358
      %s361 = sadd.s32 %s360, 1
      %p364 = scmp.eq.s32.totalorder %s27, 1
      %p365 = scmp.ne.s32.totalorder %s360, %s362
      %p366 = scmp.eq.s32.totalorder %s27, 0
      %p367 = por %p365, %p366
      %p368 = scmp.ne.s32.totalorder %s360, %s362
      %p369 = scmp.eq.s32.totalorder %s32, 1
      %p370 = por %p368, %p369
      %p371 = scmp.ne.s32.totalorder %s362, %s363
      %p372 = scmp.eq.s32.totalorder %s32, 0
      %p373 = por %p371, %p372
      %p374 = scmp.ne.s32.totalorder %s362, %s363
      %p375 = scmp.eq.s32.totalorder %s33, 1
      %p376 = por %p374, %p375
      %p378 = scmp.ne.s32.totalorder %s363, %s377
      %p379 = scmp.eq.s32.totalorder %s33, 0
      %p380 = por %p378, %p379
      %s382 = sadd.s32 %s381, 1
      %p385 = scmp.eq.s32.totalorder %s27, 1
      %p386 = scmp.ne.s32.totalorder %s381, %s383
      %p387 = scmp.eq.s32.totalorder %s27, 0
      %p388 = por %p386, %p387
      %p389 = scmp.ne.s32.totalorder %s381, %s383
      %p390 = scmp.eq.s32.totalorder %s32, 1
      %p391 = por %p389, %p390
      %p392 = scmp.ne.s32.totalorder %s383, %s384
      %p393 = scmp.eq.s32.totalorder %s32, 0
      %p394 = por %p392, %p393
      %p395 = scmp.ne.s32.totalorder %s383, %s384
      %p396 = scmp.eq.s32.totalorder %s33, 1
      %p397 = por %p395, %p396
      %p399 = scmp.ne.s32.totalorder %s384, %s398
      %p400 = scmp.eq.s32.totalorder %s33, 0
      %p401 = por %p399, %p400
      %s403 = sadd.s32 %s402, 1
      %p406 = scmp.eq.s32.totalorder %s27, 1
      %p407 = scmp.ne.s32.totalorder %s402, %s404
      %p408 = scmp.eq.s32.totalorder %s27, 0
      %p409 = por %p407, %p408
      %p410 = scmp.ne.s32.totalorder %s402, %s404
      %p411 = scmp.eq.s32.totalorder %s32, 1
      %p412 = por %p410, %p411
      %p413 = scmp.ne.s32.totalorder %s404, %s405
      %p414 = scmp.eq.s32.totalorder %s32, 0
      %p415 = por %p413, %p414
      %p416 = scmp.ne.s32.totalorder %s404, %s405
      %p417 = scmp.eq.s32.totalorder %s33, 1
      %p418 = por %p416, %p417
      %p420 = scmp.ne.s32.totalorder %s405, %s419
      %p421 = scmp.eq.s32.totalorder %s33, 0
      %p422 = por %p420, %p421
      %s423 = ssub.s32 %s27, %s34
      %p424 = scmp.eq.s32.totalorder %s423, 0
      %s426 = sadd.s32 %s425, 1
      %s427 = scalar_select %p424, %s425, %s426
      %p430 = pneg %p424
      %p431 = scmp.eq.s32.totalorder %s27, 1
      %p432 = por %p430, %p431
      %p433 = scmp.ne.s32.totalorder %s425, %s428
      %p434 = scmp.eq.s32.totalorder %s27, 0
      %p435 = por %p433, %p434
      %p436 = scmp.ne.s32.totalorder %s425, %s428
      %p437 = scmp.eq.s32.totalorder %s32, 1
      %p438 = por %p436, %p437
      %p439 = scmp.ne.s32.totalorder %s428, %s429
      %p440 = scmp.eq.s32.totalorder %s32, 0
      %p441 = por %p439, %p440
      %p442 = scmp.ne.s32.totalorder %s428, %s429
      %p443 = scmp.eq.s32.totalorder %s33, 1
      %p444 = por %p442, %p443
      %p446 = scmp.ne.s32.totalorder %s429, %s445
      %p447 = scmp.eq.s32.totalorder %s33, 0
      %p448 = por %p446, %p447
      %p449 = scmp.le.s32.totalorder 1, %s27
      %p450 = scmp.lt.s32.totalorder %s27, 3
      %p451 = pnand %p449, %p450
      %p452 = pneg %p451
      // Predicated region
      $region9: #{phobert_classifier_forward.1} parent=5 // pred_check
        _
      $region10: #{phobert_classifier_forward.1} parent=5 // pred_check_branch
        %454 = sbr.rel (%p451) target = $region12
      $region11: #{phobert_classifier_forward.1} parent=5 // pred_region
        %s455 = ssub.s32 %s27, 1
        // Predicated region
        $region13: #{phobert_classifier_forward.1} parent=11 // pred_check
          %p456 = pneg %p74
        $region14: #{phobert_classifier_forward.1} parent=11 // pred_check_branch
          %458 = sbr.rel (%p456) target = $region16
        $region15: #{phobert_classifier_forward.1} parent=11 // pred_region
          _
        $region16: #{phobert_classifier_forward.1} parent=11 // pred_fallthru
          _
        // Predicated region
        $region17: #{phobert_classifier_forward.1} parent=11 // pred_check
          %p459 = pneg %p95
        $region18: #{phobert_classifier_forward.1} parent=11 // pred_check_branch
          %461 = sbr.rel (%p459) target = $region20
        $region19: #{phobert_classifier_forward.1} parent=11 // pred_region
          _
        $region20: #{phobert_classifier_forward.1} parent=11 // pred_fallthru
          _
        // Predicated region
        $region21: #{phobert_classifier_forward.1} parent=11 // pred_check
          %p462 = pneg %p142
        $region22: #{phobert_classifier_forward.1} parent=11 // pred_check_branch
          %464 = sbr.rel (%p462) target = $region24
        $region23: #{phobert_classifier_forward.1} parent=11 // pred_region
          _
        $region24: #{phobert_classifier_forward.1} parent=11 // pred_fallthru
          _
        // Predicated region
        $region25: #{phobert_classifier_forward.1} parent=11 // pred_check
          %p465 = pneg %p163
        $region26: #{phobert_classifier_forward.1} parent=11 // pred_check_branch
          %467 = sbr.rel (%p465) target = $region28
        $region27: #{phobert_classifier_forward.1} parent=11 // pred_region
          _
        $region28: #{phobert_classifier_forward.1} parent=11 // pred_fallthru
          _
        // Predicated region
        $region29: #{phobert_classifier_forward.1} parent=11 // pred_check
          %p468 = pneg %p184
        $region30: #{phobert_classifier_forward.1} parent=11 // pred_check_branch
          %470 = sbr.rel (%p468) target = $region32
        $region31: #{phobert_classifier_forward.1} parent=11 // pred_region
          _
        $region32: #{phobert_classifier_forward.1} parent=11 // pred_fallthru
          _
        // Predicated region
        $region33: #{phobert_classifier_forward.1} parent=11 // pred_check
          %p471 = pneg %p205
        $region34: #{phobert_classifier_forward.1} parent=11 // pred_check_branch
          %473 = sbr.rel (%p471) target = $region36
        $region35: #{phobert_classifier_forward.1} parent=11 // pred_region
          _
        $region36: #{phobert_classifier_forward.1} parent=11 // pred_fallthru
          _
        // Predicated region
        $region37: #{phobert_classifier_forward.1} parent=11 // pred_check
          %p474 = pneg %p226
        $region38: #{phobert_classifier_forward.1} parent=11 // pred_check_branch
          %476 = sbr.rel (%p474) target = $region40
        $region39: #{phobert_classifier_forward.1} parent=11 // pred_region
          _
        $region40: #{phobert_classifier_forward.1} parent=11 // pred_fallthru
          _
        // Predicated region
        $region41: #{phobert_classifier_forward.1} parent=11 // pred_check
          %p477 = pneg %p247
        $region42: #{phobert_classifier_forward.1} parent=11 // pred_check_branch
          %479 = sbr.rel (%p477) target = $region44
        $region43: #{phobert_classifier_forward.1} parent=11 // pred_region
          _
        $region44: #{phobert_classifier_forward.1} parent=11 // pred_fallthru
          _
        // Predicated region
        $region45: #{phobert_classifier_forward.1} parent=11 // pred_check
          %p480 = pneg %p268
        $region46: #{phobert_classifier_forward.1} parent=11 // pred_check_branch
          %482 = sbr.rel (%p480) target = $region48
        $region47: #{phobert_classifier_forward.1} parent=11 // pred_region
          _
        $region48: #{phobert_classifier_forward.1} parent=11 // pred_fallthru
          _
        // Predicated region
        $region49: #{phobert_classifier_forward.1} parent=11 // pred_check
          %p483 = pneg %p289
        $region50: #{phobert_classifier_forward.1} parent=11 // pred_check_branch
          %485 = sbr.rel (%p483) target = $region52
        $region51: #{phobert_classifier_forward.1} parent=11 // pred_region
          _
        $region52: #{phobert_classifier_forward.1} parent=11 // pred_fallthru
          _
        // Predicated region
        $region53: #{phobert_classifier_forward.1} parent=11 // pred_check
          %p486 = pneg %p310
        $region54: #{phobert_classifier_forward.1} parent=11 // pred_check_branch
          %488 = sbr.rel (%p486) target = $region56
        $region55: #{phobert_classifier_forward.1} parent=11 // pred_region
          _
        $region56: #{phobert_classifier_forward.1} parent=11 // pred_fallthru
          _
        // Predicated region
        $region57: #{phobert_classifier_forward.1} parent=11 // pred_check
          %p489 = pneg %p331
        $region58: #{phobert_classifier_forward.1} parent=11 // pred_check_branch
          %491 = sbr.rel (%p489) target = $region60
        $region59: #{phobert_classifier_forward.1} parent=11 // pred_region
          _
        $region60: #{phobert_classifier_forward.1} parent=11 // pred_fallthru
          _
        // Predicated region
        $region61: #{phobert_classifier_forward.1} parent=11 // pred_check
          %p492 = pneg %p352
        $region62: #{phobert_classifier_forward.1} parent=11 // pred_check_branch
          %494 = sbr.rel (%p492) target = $region64
        $region63: #{phobert_classifier_forward.1} parent=11 // pred_region
          _
        $region64: #{phobert_classifier_forward.1} parent=11 // pred_fallthru
          _
        // Predicated region
        $region65: #{phobert_classifier_forward.1} parent=11 // pred_check
          %p495 = pneg %p373
        $region66: #{phobert_classifier_forward.1} parent=11 // pred_check_branch
          %497 = sbr.rel (%p495) target = $region68
        $region67: #{phobert_classifier_forward.1} parent=11 // pred_region
          _
        $region68: #{phobert_classifier_forward.1} parent=11 // pred_fallthru
          _
        // Predicated region
        $region69: #{phobert_classifier_forward.1} parent=11 // pred_check
          %p498 = pneg %p394
        $region70: #{phobert_classifier_forward.1} parent=11 // pred_check_branch
          %500 = sbr.rel (%p498) target = $region72
        $region71: #{phobert_classifier_forward.1} parent=11 // pred_region
          _
        $region72: #{phobert_classifier_forward.1} parent=11 // pred_fallthru
          _
        // Predicated region
        $region73: #{phobert_classifier_forward.1} parent=11 // pred_check
          %p501 = pneg %p415
        $region74: #{phobert_classifier_forward.1} parent=11 // pred_check_branch
          %503 = sbr.rel (%p501) target = $region76
        $region75: #{phobert_classifier_forward.1} parent=11 // pred_region
          _
        $region76: #{phobert_classifier_forward.1} parent=11 // pred_fallthru
          _
      $region12: #{phobert_classifier_forward.1} parent=5 // pred_fallthru
        _
      %p504 = scmp.lt.s32.totalorder %s27, 2
      // Predicated region
      $region77: #{phobert_classifier_forward.1} parent=5 // pred_check
        %p505 = pneg %p504
      $region78: #{phobert_classifier_forward.1} parent=5 // pred_check_branch
        %507 = sbr.rel (%p505) target = $region80
      $region79: #{phobert_classifier_forward.1} parent=5 // pred_region
        // Predicated region
        $region81: #{phobert_classifier_forward.1} parent=79 // pred_check
          %p508 = pneg %p47
        $region82: #{phobert_classifier_forward.1} parent=79 // pred_check_branch
          %510 = sbr.rel (%p508) target = $region84
        $region83: #{phobert_classifier_forward.1} parent=79 // pred_region
          %p511 = scmp.lt.s32.totalorder %s27, 1
          %s512 = scalar_select %p511, %s27, 1
          %s513 = smul.addr %s512, 8
          %s514 = scalar_lea.vmem %s0, %s513
        $region84: #{phobert_classifier_forward.1} parent=79 // pred_fallthru
          _
        // Predicated region
        $region85: #{phobert_classifier_forward.1} parent=79 // pred_check
          %p515 = pneg %p115
        $region86: #{phobert_classifier_forward.1} parent=79 // pred_check_branch
          %517 = sbr.rel (%p515) target = $region88
        $region87: #{phobert_classifier_forward.1} parent=79 // pred_region
          %p518 = scmp.lt.s32.totalorder %s27, 1
          %s519 = scalar_select %p518, %s27, 1
          %s520 = scalar_lea.vmem %s3, %s519
        $region88: #{phobert_classifier_forward.1} parent=79 // pred_fallthru
          _
      $region80: #{phobert_classifier_forward.1} parent=5 // pred_fallthru
        _
      %p521 = scmp.le.s32.totalorder 1, %s27
      %p522 = scmp.lt.s32.totalorder %s27, 3
      %p523 = pnand %p521, %p522
      %p524 = pneg %p523
      // Predicated region
      $region89: #{phobert_classifier_forward.1} parent=5 // pred_check
        _
      $region90: #{phobert_classifier_forward.1} parent=5 // pred_check_branch
        %526 = sbr.rel (%p523) target = $region92
      $region91: #{phobert_classifier_forward.1} parent=5 // pred_region
        %s527 = ssub.s32 %s27, 1
        %p528 = scmp.lt.s32.totalorder %s32, 1
        %s529 = scalar_select %p528, %s32, 1
        %s530 = smul.addr %s529, 8
        %s531 = scalar_lea.vmem %s0, %s530
        %p532 = pneg %p53
        %p533 = pneg %p50
        %p534 = pneg %p74
        %p535 = pneg %p71
        %p536 = pneg %p95
        %p537 = pneg %p92
        %p538 = scmp.lt.s32.totalorder %s32, 1
        %s539 = scalar_select %p538, %s32, 1
        %s540 = scalar_lea.vmem %s3, %s539
        %p541 = pneg %p121
        %p542 = pneg %p118
        %p543 = pneg %p142
        %p544 = pneg %p139
        %p545 = pneg %p163
        %p546 = pneg %p160
        %p547 = pneg %p184
        %p548 = pneg %p181
        %p549 = pneg %p205
        %p550 = pneg %p202
        %p551 = pneg %p226
        %p552 = pneg %p223
        %p553 = pneg %p247
        %p554 = pneg %p244
        %p555 = pneg %p268
        %p556 = pneg %p265
        %p557 = pneg %p289
        %p558 = pneg %p286
        %p559 = pneg %p310
        %p560 = pneg %p307
        %p561 = pneg %p331
        %p562 = pneg %p328
        %p563 = pneg %p352
        %p564 = pneg %p349
        %p565 = pneg %p373
        %p566 = pneg %p370
        %p567 = pneg %p394
        %p568 = pneg %p391
        %p569 = pneg %p415
        %p570 = pneg %p412
        %p571 = pneg %p441
        %p572 = pneg %p438
        %s573 = sand.u32 %s428, 1
        %s574 = scalar_lea.sflag [#allocation3], %s573
        %s575 = sand.u32 %s428, 1
        %s576 = scalar_lea.vmem [#allocation2], %s575
        %p577 = scmp.lt.s32.totalorder %s32, 1
        %s578 = scalar_select %p577, %s32, 1
        %s579 = smul.addr %s578, 8
        %s580 = scalar_lea.vmem %s0, %s579
        %p581 = scmp.lt.s32.totalorder %s32, 1
        %s582 = scalar_select %p581, %s32, 1
        %s583 = scalar_lea.vmem %s3, %s582
        %v585 = vld [vmem:[%s580] sm:$0xff]
        %v586 = vld [vmem:[%s1] sm:$0x1]
        %v587 = vld [vmem:[%s2] sm:$0x1]
        %vm588 = vcmask 261120
        %v589 = vsel %vm588, %v585, 0.0
        %590 = vadd.xlane.f32.xlu0 %v589
        %v591 = vpop.xlane.xlu0 %590
        %v592 = vrcp.pop 32.0
        %v593 = vmul.f32 %v591, %v592
        %v594 = vmul.f32 %v585, %v585
        %v595 = vsel %vm588, %v594, 0.0
        %596 = vadd.xlane.f32.xlu0 %v595
        %v597 = vpop.xlane.xlu0 %596
        %v598 = vmul.f32 %v597, %v592
        %v599 = vmul.f32 %v593, %v593
        %v600 = vsub.f32 %v598, %v599
        %v601 = vsub.f32 %v585, %v593
        %v602 = vadd.f32 %v600, 1e-05
        %v603 = vrsqrt.pop %v602
        %v604 = vmul.f32 %v601, %v603
        %v606 = vlaneseq
        %v607 = vshrl.u32 %v606, 7
        %v608 = vsub.s32 0, %v607
        %v609 = vrot.slane %v586, %v608
        %v611 = vmul.f32 %v604, %v609
        %v613 = vlaneseq
        %v614 = vshrl.u32 %v613, 7
        %v615 = vsub.s32 0, %v614
        %v616 = vrot.slane %v587, %v615
        %v618 = vadd.f32 %v611, %v616
        %v619 = vld [vmem:[%s583] sm:$0x1]
        %v620 = vpack.c.bf16 %v618, %v618
        %v621 = vld [vmem:[%s4] sm:$0xf]
        %v622 = vld [vmem:[%s4 + $0x4] sm:$0xf]
        %v623 = vld [vmem:[%s4 + $0x8] sm:$0xf]
        %v624 = vld [vmem:[%s4 + $0xc] sm:$0xf]
        %v625 = vld [vmem:[%s5] sm:$0x1]
        %v627 = vlaneseq
        %v628 = vshrl.u32 %v627, 7
        %v629 = vsub.s32 0, %v628
        %v630 = vrot.slane %v625, %v629
        %v636 = vunpack.c.l.b16 %v621
        %v637 = vunpack.c.l.b16 %v622
        %v638 = vunpack.c.l.b16 %v623
        %v639 = vunpack.c.l.b16 %v624
        %v640 = vpack.c.b16 %v637, %v636
        %v641 = vpack.c.b16 %v639, %v638
        %v645 = vsel %vm588, %v620, 0
        %647 = vmatprep.subr.bf16.mxu0 0
        %648 = vmatpush1.bf16.msra.mxu0 %v640
        %649 = vmatprep.subr.bf16.mxu0 0
        %650 = vmatpush1.bf16.msra.mxu0 %v641
        %651 = vmatprep.subr.bf16.mxu0 0
        %652 = vmatpush1.bf16.msra.mxu0 0
        %653 = vmatprep.subr.bf16.mxu0 0
        %654 = vmatpush1.bf16.msra.mxu0 0
        %655 = vmatprep.subr.bf16.mxu0 0
        %656 = vmatpush1.bf16.msra.mxu0 0
        %657 = vmatprep.subr.bf16.mxu0 0
        %658 = vmatpush1.bf16.msra.mxu0 0
        %659 = vmatprep.subr.bf16.mxu0 0
        %660 = vmatpush1.bf16.msra.mxu0 0
        %661 = vmatprep.subr.bf16.mxu0 0
        %662 = vmatpush1.bf16.msra.mxu0 0
        %663 = vmatprep.subr.bf16.mxu0 0
        %664 = vmatpush1.bf16.msra.mxu0 0
        %665 = vmatprep.subr.bf16.mxu0 0
        %666 = vmatpush1.bf16.msra.mxu0 0
        %667 = vmatprep.subr.bf16.mxu0 0
        %668 = vmatpush1.bf16.msra.mxu0 0
        %669 = vmatprep.subr.bf16.mxu0 0
        %670 = vmatpush1.bf16.msra.mxu0 0
        %671 = vmatprep.subr.bf16.mxu0 0
        %672 = vmatpush1.bf16.msra.mxu0 0
        %673 = vmatprep.subr.bf16.mxu0 0
        %674 = vmatpush1.bf16.msra.mxu0 0
        %675 = vmatprep.subr.bf16.mxu0 0
        %676 = vmatpush1.bf16.msra.mxu0 0
        %677 = vmatprep.subr.bf16.mxu0 0
        %678 = vmatpush1.bf16.msra.mxu0 0
        %679 = vmatprep.mubr.bf16.mxu0 0
        %680 = vmatmul.mubr.bf16.gmra.mrb[0].mxu0 %v645
        %v681 = vpop.f32.mrb[0].mxu0
        %v682 = vadd.f32 %v630, %v681
        %v683 = vpop.f32.mrb[0].mxu0
        %v684 = vpop.f32.mrb[0].mxu0
        %v685 = vpop.f32.mrb[0].mxu0
        %686 = vdwg.mxu0
        %v687 = vpack.c.bf16 %v682, %v682
        %689 = vrot.lane.b32.xlu0 %v687, 120
        %v690 = vpop.permute.xlu0 %689
        %691 = vrot.lane.b32.xlu0 %v687, 112
        %v692 = vpop.permute.xlu0 %691
        %693 = vrot.lane.b32.xlu0 %v687, 104
        %v694 = vpop.permute.xlu0 %693
        %v696 = vunpack.c.l.s4 1983009808
        %v697 = vunpack.c.0.s8 %v696
        %v698 = vlaneseq
        %v699 = vshrl.u32 %v698, 7
        %v700 = vsub.s32 %v697, %v699
        %v701 = vrot.slane %v687, %v700
        %v704 = vunpack.c.l.s4 1983009808
        %v705 = vunpack.c.0.s8 %v704
        %v706 = vlaneseq
        %v707 = vshrl.u32 %v706, 7
        %v708 = vsub.s32 %v705, %v707
        %v709 = vrot.slane %v692, %v708
        %v710 = vcombine.low %v701, %v709
        %v711 = vcombine.high %v701, %v709
        %v713 = vunpack.c.l.s4 1934713408
        %v714 = vunpack.c.0.s8 %v713
        %v715 = vlaneseq
        %v716 = vshrl.u32 %v715, 7
        %v717 = vsub.s32 %v714, %v716
        %v718 = vrot.slane %v710, %v717
        %v720 = vunpack.c.l.s4 1934713408
        %v721 = vunpack.c.0.s8 %v720
        %v722 = vlaneseq
        %v723 = vshrl.u32 %v722, 7
        %v724 = vsub.s32 %v721, %v723
        %v725 = vrot.slane %v711, %v724
        %v726 = vcombine.high %v718, 0
        %v727 = vcombine.high %v725, 0
        %v730 = vunpack.c.l.s4 1983009808
        %v731 = vunpack.c.0.s8 %v730
        %v732 = vlaneseq
        %v733 = vshrl.u32 %v732, 7
        %v734 = vsub.s32 %v731, %v733
        %v735 = vrot.slane %v690, %v734
        %v738 = vunpack.c.l.s4 1983009808
        %v739 = vunpack.c.0.s8 %v738
        %v740 = vlaneseq
        %v741 = vshrl.u32 %v740, 7
        %v742 = vsub.s32 %v739, %v741
        %v743 = vrot.slane %v694, %v742
        %v744 = vcombine.low %v735, %v743
        %v745 = vcombine.high %v735, %v743
        %v747 = vunpack.c.l.s4 1934713408
        %v748 = vunpack.c.0.s8 %v747
        %v749 = vlaneseq
        %v750 = vshrl.u32 %v749, 7
        %v751 = vsub.s32 %v748, %v750
        %v752 = vrot.slane %v744, %v751
        %v754 = vunpack.c.l.s4 1934713408
        %v755 = vunpack.c.0.s8 %v754
        %v756 = vlaneseq
        %v757 = vshrl.u32 %v756, 7
        %v758 = vsub.s32 %v755, %v757
        %v759 = vrot.slane %v745, %v758
        %v760 = vcombine.high %v752, 0
        %v761 = vcombine.high %v759, 0
        %v764 = vpack.i.b16 %v752, %v718
        %v766 = vshrl.u32 %v718, 16
        %v767 = vshrl.u32 %v752, 16
        %v768 = vpack.i.b16 %v767, %v766
        %v772 = vpack.i.b16 %v760, %v726
        %v774 = vshrl.u32 %v726, 16
        %v775 = vshrl.u32 %v760, 16
        %v776 = vpack.i.b16 %v775, %v774
        %v780 = vpack.i.b16 %v759, %v725
        %v782 = vshrl.u32 %v725, 16
        %v783 = vshrl.u32 %v759, 16
        %v784 = vpack.i.b16 %v783, %v782
        %v788 = vpack.i.b16 %v761, %v727
        %v790 = vshrl.u32 %v727, 16
        %v791 = vshrl.u32 %v761, 16
        %v792 = vpack.i.b16 %v791, %v790
        %v794 = vcombine.low %v764, %v780
        %v796 = vunpack.c.l.s4 1983009808
        %v797 = vunpack.c.0.s8 %v796
        %v798 = vlaneseq
        %v799 = vshrl.u32 %v798, 7
        %v800 = vsub.s32 %v797, %v799
        %v801 = vrot.slane %v794, %v800
        %v802 = vcombine.low %v772, %v788
        %v804 = vunpack.c.l.s4 1983009808
        %v805 = vunpack.c.0.s8 %v804
        %v806 = vlaneseq
        %v807 = vshrl.u32 %v806, 7
        %v808 = vsub.s32 %v805, %v807
        %v809 = vrot.slane %v802, %v808
        %v810 = vcombine.low %v801, %v809
        %v812 = vunpack.c.l.s4 1934713408
        %v813 = vunpack.c.0.s8 %v812
        %v814 = vlaneseq
        %v815 = vshrl.u32 %v814, 7
        %v816 = vsub.s32 %v813, %v815
        %v817 = vrot.slane %v810, %v816
        %v818 = vcombine.high %v817, 0
        %v819 = vcombine.low %v768, %v784
        %v821 = vunpack.c.l.s4 1983009808
        %v822 = vunpack.c.0.s8 %v821
        %v823 = vlaneseq
        %v824 = vshrl.u32 %v823, 7
        %v825 = vsub.s32 %v822, %v824
        %v826 = vrot.slane %v819, %v825
        %v827 = vcombine.low %v776, %v792
        %v829 = vunpack.c.l.s4 1983009808
        %v830 = vunpack.c.0.s8 %v829
        %v831 = vlaneseq
        %v832 = vshrl.u32 %v831, 7
        %v833 = vsub.s32 %v830, %v832
        %v834 = vrot.slane %v827, %v833
        %v835 = vcombine.low %v826, %v834
        %v837 = vunpack.c.l.s4 1934713408
        %v838 = vunpack.c.0.s8 %v837
        %v839 = vlaneseq
        %v840 = vshrl.u32 %v839, 7
        %v841 = vsub.s32 %v838, %v840
        %v842 = vrot.slane %v835, %v841
        %v843 = vcombine.high %v842, 0
        %v846 = vpack.i.b16 %v842, %v817
        %v847 = vshrl.u32 %v817, 16
        %v848 = vshrl.u32 %v842, 16
        %v849 = vpack.i.b16 %v848, %v847
        %v852 = vpack.i.b16 %v843, %v818
        %v853 = vshrl.u32 %v818, 16
        %v854 = vshrl.u32 %v843, 16
        %v855 = vpack.i.b16 %v854, %v853
        %856 = vrot.lane.b32.xlu0 %v687, 96
        %v857 = vpop.permute.xlu0 %856
        %858 = vrot.lane.b32.xlu0 %v690, 96
        %v859 = vpop.permute.xlu0 %858
        %860 = vrot.lane.b32.xlu0 %v692, 96
        %v861 = vpop.permute.xlu0 %860
        %862 = vrot.lane.b32.xlu0 %v694, 96
        %v863 = vpop.permute.xlu0 %862
        %v866 = vunpack.c.l.s4 1983009808
        %v867 = vunpack.c.0.s8 %v866
        %v868 = vlaneseq
        %v869 = vshrl.u32 %v868, 7
        %v870 = vsub.s32 %v867, %v869
        %v871 = vrot.slane %v857, %v870
        %v874 = vunpack.c.l.s4 1983009808
        %v875 = vunpack.c.0.s8 %v874
        %v876 = vlaneseq
        %v877 = vshrl.u32 %v876, 7
        %v878 = vsub.s32 %v875, %v877
        %v879 = vrot.slane %v861, %v878
        %v880 = vcombine.low %v871, %v879
        %v881 = vcombine.high %v871, %v879
        %v883 = vunpack.c.l.s4 1934713408
        %v884 = vunpack.c.0.s8 %v883
        %v885 = vlaneseq
        %v886 = vshrl.u32 %v885, 7
        %v887 = vsub.s32 %v884, %v886
        %v888 = vrot.slane %v880, %v887
        %v890 = vunpack.c.l.s4 1934713408
        %v891 = vunpack.c.0.s8 %v890
        %v892 = vlaneseq
        %v893 = vshrl.u32 %v892, 7
        %v894 = vsub.s32 %v891, %v893
        %v895 = vrot.slane %v881, %v894
        %v896 = vcombine.high %v888, 0
        %v897 = vcombine.high %v895, 0
        %v900 = vunpack.c.l.s4 1983009808
        %v901 = vunpack.c.0.s8 %v900
        %v902 = vlaneseq
        %v903 = vshrl.u32 %v902, 7
        %v904 = vsub.s32 %v901, %v903
        %v905 = vrot.slane %v859, %v904
        %v908 = vunpack.c.l.s4 1983009808
        %v909 = vunpack.c.0.s8 %v908
        %v910 = vlaneseq
        %v911 = vshrl.u32 %v910, 7
        %v912 = vsub.s32 %v909, %v911
        %v913 = vrot.slane %v863, %v912
        %v914 = vcombine.low %v905, %v913
        %v915 = vcombine.high %v905, %v913
        %v917 = vunpack.c.l.s4 1934713408
        %v918 = vunpack.c.0.s8 %v917
        %v919 = vlaneseq
        %v920 = vshrl.u32 %v919, 7
        %v921 = vsub.s32 %v918, %v920
        %v922 = vrot.slane %v914, %v921
        %v924 = vunpack.c.l.s4 1934713408
        %v925 = vunpack.c.0.s8 %v924
        %v926 = vlaneseq
        %v927 = vshrl.u32 %v926, 7
        %v928 = vsub.s32 %v925, %v927
        %v929 = vrot.slane %v915, %v928
        %v930 = vcombine.high %v922, 0
        %v931 = vcombine.high %v929, 0
        %v934 = vpack.i.b16 %v922, %v888
        %v936 = vshrl.u32 %v888, 16
        %v937 = vshrl.u32 %v922, 16
        %v938 = vpack.i.b16 %v937, %v936
        %v942 = vpack.i.b16 %v930, %v896
        %v944 = vshrl.u32 %v896, 16
        %v945 = vshrl.u32 %v930, 16
        %v946 = vpack.i.b16 %v945, %v944
        %v950 = vpack.i.b16 %v929, %v895
        %v952 = vshrl.u32 %v895, 16
        %v953 = vshrl.u32 %v929, 16
        %v954 = vpack.i.b16 %v953, %v952
        %v958 = vpack.i.b16 %v931, %v897
        %v960 = vshrl.u32 %v897, 16
        %v961 = vshrl.u32 %v931, 16
        %v962 = vpack.i.b16 %v961, %v960
        %v964 = vcombine.low %v934, %v950
        %v966 = vunpack.c.l.s4 1983009808
        %v967 = vunpack.c.0.s8 %v966
        %v968 = vlaneseq
        %v969 = vshrl.u32 %v968, 7
        %v970 = vsub.s32 %v967, %v969
        %v971 = vrot.slane %v964, %v970
        %v972 = vcombine.low %v942, %v958
        %v974 = vunpack.c.l.s4 1983009808
        %v975 = vunpack.c.0.s8 %v974
        %v976 = vlaneseq
        %v977 = vshrl.u32 %v976, 7
        %v978 = vsub.s32 %v975, %v977
        %v979 = vrot.slane %v972, %v978
        %v980 = vcombine.low %v971, %v979
        %v982 = vunpack.c.l.s4 1934713408
        %v983 = vunpack.c.0.s8 %v982
        %v984 = vlaneseq
        %v985 = vshrl.u32 %v984, 7
        %v986 = vsub.s32 %v983, %v985
        %v987 = vrot.slane %v980, %v986
        %v988 = vcombine.high %v987, 0
        %v989 = vcombine.low %v938, %v954
        %v991 = vunpack.c.l.s4 1983009808
        %v992 = vunpack.c.0.s8 %v991
        %v993 = vlaneseq
        %v994 = vshrl.u32 %v993, 7
        %v995 = vsub.s32 %v992, %v994
        %v996 = vrot.slane %v989, %v995
        %v997 = vcombine.low %v946, %v962
        %v999 = vunpack.c.l.s4 1983009808
        %v1000 = vunpack.c.0.s8 %v999
        %v1001 = vlaneseq
        %v1002 = vshrl.u32 %v1001, 7
        %v1003 = vsub.s32 %v1000, %v1002
        %v1004 = vrot.slane %v997, %v1003
        %v1005 = vcombine.low %v996, %v1004
        %v1007 = vunpack.c.l.s4 1934713408
        %v1008 = vunpack.c.0.s8 %v1007
        %v1009 = vlaneseq
        %v1010 = vshrl.u32 %v1009, 7
        %v1011 = vsub.s32 %v1008, %v1010
        %v1012 = vrot.slane %v1005, %v1011
        %v1013 = vcombine.high %v1012, 0
        %v1016 = vpack.i.b16 %v1012, %v987
        %v1017 = vshrl.u32 %v987, 16
        %v1018 = vshrl.u32 %v1012, 16
        %v1019 = vpack.i.b16 %v1018, %v1017
        %v1022 = vpack.i.b16 %v1013, %v988
        %v1023 = vshrl.u32 %v988, 16
        %v1024 = vshrl.u32 %v1013, 16
        %v1025 = vpack.i.b16 %v1024, %v1023
        %1026 = vrot.lane.b32.xlu0 %v687, 64
        %v1027 = vpop.permute.xlu0 %1026
        %1028 = vrot.lane.b32.xlu0 %v690, 64
        %v1029 = vpop.permute.xlu0 %1028
        %1030 = vrot.lane.b32.xlu0 %v692, 64
        %v1031 = vpop.permute.xlu0 %1030
        %1032 = vrot.lane.b32.xlu0 %v694, 64
        %v1033 = vpop.permute.xlu0 %1032
        %v1036 = vunpack.c.l.s4 1983009808
        %v1037 = vunpack.c.0.s8 %v1036
        %v1038 = vlaneseq
        %v1039 = vshrl.u32 %v1038, 7
        %v1040 = vsub.s32 %v1037, %v1039
        %v1041 = vrot.slane %v1027, %v1040
        %v1044 = vunpack.c.l.s4 1983009808
        %v1045 = vunpack.c.0.s8 %v1044
        %v1046 = vlaneseq
        %v1047 = vshrl.u32 %v1046, 7
        %v1048 = vsub.s32 %v1045, %v1047
        %v1049 = vrot.slane %v1031, %v1048
        %v1050 = vcombine.low %v1041, %v1049
        %v1051 = vcombine.high %v1041, %v1049
        %v1053 = vunpack.c.l.s4 1934713408
        %v1054 = vunpack.c.0.s8 %v1053
        %v1055 = vlaneseq
        %v1056 = vshrl.u32 %v1055, 7
        %v1057 = vsub.s32 %v1054, %v1056
        %v1058 = vrot.slane %v1050, %v1057
        %v1060 = vunpack.c.l.s4 1934713408
        %v1061 = vunpack.c.0.s8 %v1060
        %v1062 = vlaneseq
        %v1063 = vshrl.u32 %v1062, 7
        %v1064 = vsub.s32 %v1061, %v1063
        %v1065 = vrot.slane %v1051, %v1064
        %v1066 = vcombine.high %v1058, 0
        %v1067 = vcombine.high %v1065, 0
        %v1070 = vunpack.c.l.s4 1983009808
        %v1071 = vunpack.c.0.s8 %v1070
        %v1072 = vlaneseq
        %v1073 = vshrl.u32 %v1072, 7
        %v1074 = vsub.s32 %v1071, %v1073
        %v1075 = vrot.slane %v1029, %v1074
        %v1078 = vunpack.c.l.s4 1983009808
        %v1079 = vunpack.c.0.s8 %v1078
        %v1080 = vlaneseq
        %v1081 = vshrl.u32 %v1080, 7
        %v1082 = vsub.s32 %v1079, %v1081
        %v1083 = vrot.slane %v1033, %v1082
        %v1084 = vcombine.low %v1075, %v1083
        %v1085 = vcombine.high %v1075, %v1083
        %v1087 = vunpack.c.l.s4 1934713408
        %v1088 = vunpack.c.0.s8 %v1087
        %v1089 = vlaneseq
        %v1090 = vshrl.u32 %v1089, 7
        %v1091 = vsub.s32 %v1088, %v1090
        %v1092 = vrot.slane %v1084, %v1091
        %v1094 = vunpack.c.l.s4 1934713408
        %v1095 = vunpack.c.0.s8 %v1094
        %v1096 = vlaneseq
        %v1097 = vshrl.u32 %v1096, 7
        %v1098 = vsub.s32 %v1095, %v1097
        %v1099 = vrot.slane %v1085, %v1098
        %v1100 = vcombine.high %v1092, 0
        %v1101 = vcombine.high %v1099, 0
        %v1104 = vpack.i.b16 %v1092, %v1058
        %v1106 = vshrl.u32 %v1058, 16
        %v1107 = vshrl.u32 %v1092, 16
        %v1108 = vpack.i.b16 %v1107, %v1106
        %v1112 = vpack.i.b16 %v1100, %v1066
        %v1114 = vshrl.u32 %v1066, 16
        %v1115 = vshrl.u32 %v1100, 16
        %v1116 = vpack.i.b16 %v1115, %v1114
        %v1120 = vpack.i.b16 %v1099, %v1065
        %v1122 = vshrl.u32 %v1065, 16
        %v1123 = vshrl.u32 %v1099, 16
        %v1124 = vpack.i.b16 %v1123, %v1122
        %v1128 = vpack.i.b16 %v1101, %v1067
        %v1130 = vshrl.u32 %v1067, 16
        %v1131 = vshrl.u32 %v1101, 16
        %v1132 = vpack.i.b16 %v1131, %v1130
        %v1134 = vcombine.low %v1104, %v1120
        %v1136 = vunpack.c.l.s4 1983009808
        %v1137 = vunpack.c.0.s8 %v1136
        %v1138 = vlaneseq
        %v1139 = vshrl.u32 %v1138, 7
        %v1140 = vsub.s32 %v1137, %v1139
        %v1141 = vrot.slane %v1134, %v1140
        %v1142 = vcombine.low %v1112, %v1128
        %v1144 = vunpack.c.l.s4 1983009808
        %v1145 = vunpack.c.0.s8 %v1144
        %v1146 = vlaneseq
        %v1147 = vshrl.u32 %v1146, 7
        %v1148 = vsub.s32 %v1145, %v1147
        %v1149 = vrot.slane %v1142, %v1148
        %v1150 = vcombine.low %v1141, %v1149
        %v1152 = vunpack.c.l.s4 1934713408
        %v1153 = vunpack.c.0.s8 %v1152
        %v1154 = vlaneseq
        %v1155 = vshrl.u32 %v1154, 7
        %v1156 = vsub.s32 %v1153, %v1155
        %v1157 = vrot.slane %v1150, %v1156
        %v1158 = vcombine.high %v1157, 0
        %v1159 = vcombine.low %v1108, %v1124
        %v1161 = vunpack.c.l.s4 1983009808
        %v1162 = vunpack.c.0.s8 %v1161
        %v1163 = vlaneseq
        %v1164 = vshrl.u32 %v1163, 7
        %v1165 = vsub.s32 %v1162, %v1164
        %v1166 = vrot.slane %v1159, %v1165
        %v1167 = vcombine.low %v1116, %v1132
        %v1169 = vunpack.c.l.s4 1983009808
        %v1170 = vunpack.c.0.s8 %v1169
        %v1171 = vlaneseq
        %v1172 = vshrl.u32 %v1171, 7
        %v1173 = vsub.s32 %v1170, %v1172
        %v1174 = vrot.slane %v1167, %v1173
        %v1175 = vcombine.low %v1166, %v1174
        %v1177 = vunpack.c.l.s4 1934713408
        %v1178 = vunpack.c.0.s8 %v1177
        %v1179 = vlaneseq
        %v1180 = vshrl.u32 %v1179, 7
        %v1181 = vsub.s32 %v1178, %v1180
        %v1182 = vrot.slane %v1175, %v1181
        %v1183 = vcombine.high %v1182, 0
        %v1186 = vpack.i.b16 %v1182, %v1157
        %v1187 = vshrl.u32 %v1157, 16
        %v1188 = vshrl.u32 %v1182, 16
        %v1189 = vpack.i.b16 %v1188, %v1187
        %v1192 = vpack.i.b16 %v1183, %v1158
        %v1193 = vshrl.u32 %v1158, 16
        %v1194 = vshrl.u32 %v1183, 16
        %v1195 = vpack.i.b16 %v1194, %v1193
        %v1197 = vlaneseq
        %v1198 = vshrl.u32 %v1197, 7
        %v1199 = vsub.s32 0, %v1198
        %v1200 = vrot.slane %v619, %v1199
        %vm1202 = vcmask 64512
        %v1204 = vsel %vm1202, %v846, 0
        %v1207 = vsel %vm1202, %v1016, 0
        %1209 = vmatprep.subr.bf16.mxu0 0
        %1210 = vmatpush1.bf16.xpose.msra.mxu0 %v1207
        %1211 = vmatprep.subr.bf16.mxu0 0
        %1212 = vmatpush1.bf16.xpose.msra.mxu0 0
        %1213 = vmatprep.subr.bf16.mxu0 0
        %1214 = vmatpush1.bf16.xpose.msra.mxu0 0
        %1215 = vmatprep.subr.bf16.mxu0 0
        %1216 = vmatpush1.bf16.xpose.msra.mxu0 0
        %1217 = vmatprep.subr.bf16.mxu0 0
        %1218 = vmatpush1.bf16.xpose.msra.mxu0 0
        %1219 = vmatprep.subr.bf16.mxu0 0
        %1220 = vmatpush1.bf16.xpose.msra.mxu0 0
        %1221 = vmatprep.subr.bf16.mxu0 0
        %1222 = vmatpush1.bf16.xpose.msra.mxu0 0
        %1223 = vmatprep.subr.bf16.mxu0 0
        %1224 = vmatpush1.bf16.xpose.msra.mxu0 0
        %1225 = vmatprep.subr.bf16.mxu0 0
        %1226 = vmatpush1.bf16.xpose.msra.mxu0 0
        %1227 = vmatprep.subr.bf16.mxu0 0
        %1228 = vmatpush1.bf16.xpose.msra.mxu0 0
        %1229 = vmatprep.subr.bf16.mxu0 0
        %1230 = vmatpush1.bf16.xpose.msra.mxu0 0
        %1231 = vmatprep.subr.bf16.mxu0 0
        %1232 = vmatpush1.bf16.xpose.msra.mxu0 0
        %1233 = vmatprep.subr.bf16.mxu0 0
        %1234 = vmatpush1.bf16.xpose.msra.mxu0 0
        %1235 = vmatprep.subr.bf16.mxu0 0
        %1236 = vmatpush1.bf16.xpose.msra.mxu0 0
        %1237 = vmatprep.subr.bf16.mxu0 0
        %1238 = vmatpush1.bf16.xpose.msra.mxu0 0
        %1239 = vmatprep.subr.bf16.mxu0 0
        %1240 = vmatpush1.bf16.xpose.msra.mxu0 0
        %1241 = vmatprep.mubr.bf16.mxu0 0
        %1242 = vmatmul.mubr.bf16.gmra.mrb[0].mxu0 %v1204
        %v1243 = vpop.f32.mrb[0].mxu0
        %v1244 = vadd.f32 %v1200, %v1243
        %v1245 = vpop.f32.mrb[0].mxu0
        %v1246 = vpop.f32.mrb[0].mxu0
        %v1247 = vpop.f32.mrb[0].mxu0
        %1248 = vdwg.mxu0
        %v1250 = vsel %vm1202, %v849, 0
        %v1253 = vsel %vm1202, %v1019, 0
        %1255 = vmatprep.subr.bf16.mxu0 0
        %1256 = vmatpush1.bf16.xpose.msra.mxu0 %v1253
        %1257 = vmatprep.subr.bf16.mxu0 0
        %1258 = vmatpush1.bf16.xpose.msra.mxu0 0
        %1259 = vmatprep.subr.bf16.mxu0 0
        %1260 = vmatpush1.bf16.xpose.msra.mxu0 0
        %1261 = vmatprep.subr.bf16.mxu0 0
        %1262 = vmatpush1.bf16.xpose.msra.mxu0 0
        %1263 = vmatprep.subr.bf16.mxu0 0
        %1264 = vmatpush1.bf16.xpose.msra.mxu0 0
        %1265 = vmatprep.subr.bf16.mxu0 0
        %1266 = vmatpush1.bf16.xpose.msra.mxu0 0
        %1267 = vmatprep.subr.bf16.mxu0 0
        %1268 = vmatpush1.bf16.xpose.msra.mxu0 0
        %1269 = vmatprep.subr.bf16.mxu0 0
        %1270 = vmatpush1.bf16.xpose.msra.mxu0 0
        %1271 = vmatprep.subr.bf16.mxu0 0
        %1272 = vmatpush1.bf16.xpose.msra.mxu0 0
        %1273 = vmatprep.subr.bf16.mxu0 0
        %1274 = vmatpush1.bf16.xpose.msra.mxu0 0
        %1275 = vmatprep.subr.bf16.mxu0 0
        %1276 = vmatpush1.bf16.xpose.msra.mxu0 0
        %1277 = vmatprep.subr.bf16.mxu0 0
        %1278 = vmatpush1.bf16.xpose.msra.mxu0 0
        %1279 = vmatprep.subr.bf16.mxu0 0
        %1280 = vmatpush1.bf16.xpose.msra.mxu0 0
        %1281 = vmatprep.subr.bf16.mxu0 0
        %1282 = vmatpush1.bf16.xpose.msra.mxu0 0
        %1283 = vmatprep.subr.bf16.mxu0 0
        %1284 = vmatpush1.bf16.xpose.msra.mxu0 0
        %1285 = vmatprep.subr.bf16.mxu0 0
        %1286 = vmatpush1.bf16.xpose.msra.mxu0 0
        %1287 = vmatprep.mubr.bf16.mxu0 0
        %1288 = vmatmul.mubr.bf16.gmra.mrb[0].mxu0 %v1250
        %v1289 = vpop.f32.mrb[0].mxu0
        %v1290 = vadd.f32 %v1200, %v1289
        %v1291 = vpop.f32.mrb[0].mxu0
        %v1292 = vpop.f32.mrb[0].mxu0
        %v1293 = vpop.f32.mrb[0].mxu0
        %1294 = vdwg.mxu0
        %v1296 = vsel %vm1202, %v852, 0
        %v1299 = vsel %vm1202, %v1022, 0
        %1301 = vmatprep.subr.bf16.mxu0 0
        %1302 = vmatpush1.bf16.xpose.msra.mxu0 %v1299
        %1303 = vmatprep.subr.bf16.mxu0 0
        %1304 = vmatpush1.bf16.xpose.msra.mxu0 0
        %1305 = vmatprep.subr.bf16.mxu0 0
        %1306 = vmatpush1.bf16.xpose.msra.mxu0 0
        %1307 = vmatprep.subr.bf16.mxu0 0
        %1308 = vmatpush1.bf16.xpose.msra.mxu0 0
        %1309 = vmatprep.subr.bf16.mxu0 0
        %1310 = vmatpush1.bf16.xpose.msra.mxu0 0
        %1311 = vmatprep.subr.bf16.mxu0 0
        %1312 = vmatpush1.bf16.xpose.msra.mxu0 0
        %1313 = vmatprep.subr.bf16.mxu0 0
        %1314 = vmatpush1.bf16.xpose.msra.mxu0 0
        %1315 = vmatprep.subr.bf16.mxu0 0
        %1316 = vmatpush1.bf16.xpose.msra.mxu0 0
        %1317 = vmatprep.subr.bf16.mxu0 0
        %1318 = vmatpush1.bf16.xpose.msra.mxu0 0
        %1319 = vmatprep.subr.bf16.mxu0 0
        %1320 = vmatpush1.bf16.xpose.msra.mxu0 0
        %1321 = vmatprep.subr.bf16.mxu0 0
        %1322 = vmatpush1.bf16.xpose.msra.mxu0 0
        %1323 = vmatprep.subr.bf16.mxu0 0
        %1324 = vmatpush1.bf16.xpose.msra.mxu0 0
        %1325 = vmatprep.subr.bf16.mxu0 0
        %1326 = vmatpush1.bf16.xpose.msra.mxu0 0
        %1327 = vmatprep.subr.bf16.mxu0 0
        %1328 = vmatpush1.bf16.xpose.msra.mxu0 0
        %1329 = vmatprep.subr.bf16.mxu0 0
        %1330 = vmatpush1.bf16.xpose.msra.mxu0 0
        %1331 = vmatprep.subr.bf16.mxu0 0
        %1332 = vmatpush1.bf16.xpose.msra.mxu0 0
        %1333 = vmatprep.mubr.bf16.mxu0 0
        %1334 = vmatmul.mubr.bf16.gmra.mrb[0].mxu0 %v1296
        %v1335 = vpop.f32.mrb[0].mxu0
        %v1336 = vadd.f32 %v1200, %v1335
        %v1337 = vpop.f32.mrb[0].mxu0
        %v1338 = vpop.f32.mrb[0].mxu0
        %v1339 = vpop.f32.mrb[0].mxu0
        %1340 = vdwg.mxu0
        %v1342 = vsel %vm1202, %v855, 0
        %v1345 = vsel %vm1202, %v1025, 0
        %1347 = vmatprep.subr.bf16.mxu0 0
        %1348 = vmatpush1.bf16.xpose.msra.mxu0 %v1345
        %1349 = vmatprep.subr.bf16.mxu0 0
        %1350 = vmatpush1.bf16.xpose.msra.mxu0 0
        %1351 = vmatprep.subr.bf16.mxu0 0
        %1352 = vmatpush1.bf16.xpose.msra.mxu0 0
        %1353 = vmatprep.subr.bf16.mxu0 0
        %1354 = vmatpush1.bf16.xpose.msra.mxu0 0
        %1355 = vmatprep.subr.bf16.mxu0 0
        %1356 = vmatpush1.bf16.xpose.msra.mxu0 0
        %1357 = vmatprep.subr.bf16.mxu0 0
        %1358 = vmatpush1.bf16.xpose.msra.mxu0 0
        %1359 = vmatprep.subr.bf16.mxu0 0
        %1360 = vmatpush1.bf16.xpose.msra.mxu0 0
        %1361 = vmatprep.subr.bf16.mxu0 0
        %1362 = vmatpush1.bf16.xpose.msra.mxu0 0
        %1363 = vmatprep.subr.bf16.mxu0 0
        %1364 = vmatpush1.bf16.xpose.msra.mxu0 0
        %1365 = vmatprep.subr.bf16.mxu0 0
        %1366 = vmatpush1.bf16.xpose.msra.mxu0 0
        %1367 = vmatprep.subr.bf16.mxu0 0
        %1368 = vmatpush1.bf16.xpose.msra.mxu0 0
        %1369 = vmatprep.subr.bf16.mxu0 0
        %1370 = vmatpush1.bf16.xpose.msra.mxu0 0
        %1371 = vmatprep.subr.bf16.mxu0 0
        %1372 = vmatpush1.bf16.xpose.msra.mxu0 0
        %1373 = vmatprep.subr.bf16.mxu0 0
        %1374 = vmatpush1.bf16.xpose.msra.mxu0 0
        %1375 = vmatprep.subr.bf16.mxu0 0
        %1376 = vmatpush1.bf16.xpose.msra.mxu0 0
        %1377 = vmatprep.subr.bf16.mxu0 0
        %1378 = vmatpush1.bf16.xpose.msra.mxu0 0
        %1379 = vmatprep.mubr.bf16.mxu0 0
        %1380 = vmatmul.mubr.bf16.gmra.mrb[0].mxu0 %v1342
        %v1381 = vpop.f32.mrb[0].mxu0
        %v1382 = vadd.f32 %v1200, %v1381
        %v1383 = vpop.f32.mrb[0].mxu0
        %v1384 = vpop.f32.mrb[0].mxu0
        %v1385 = vpop.f32.mrb[0].mxu0
        %1386 = vdwg.mxu0
        %v1387 = vsel %vm1202, %v1244, -inf
        %1388 = vmax.xlane.f32.xlu0 %v1387
        %v1389 = vpop.xlane.xlu0 %1388
        %v1390 = vsel %vm1202, %v1290, -inf
        %1391 = vmax.xlane.f32.xlu0 %v1390
        %v1392 = vpop.xlane.xlu0 %1391
        %v1393 = vsel %vm1202, %v1336, -inf
        %1394 = vmax.xlane.f32.xlu0 %v1393
        %v1395 = vpop.xlane.xlu0 %1394
        %v1396 = vsel %vm1202, %v1382, -inf
        %1397 = vmax.xlane.f32.xlu0 %v1396
        %v1398 = vpop.xlane.xlu0 %1397
        %v1399 = vsub.f32 %v1244, %v1389
        %v1400 = vsub.f32 %v1290, %v1392
        %v1401 = vsub.f32 %v1336, %v1395
        %v1402 = vsub.f32 %v1382, %v1398
        %v1403 = vmul.f32 %v1399, 1.442695
        %v1404 = vpow.pop %v1403
        %v1405 = vmul.f32 %v1400, 1.442695
        %v1406 = vpow.pop %v1405
        %v1407 = vmul.f32 %v1401, 1.442695
        %v1408 = vpow.pop %v1407
        %v1409 = vmul.f32 %v1402, 1.442695
        %v1410 = vpow.pop %v1409
        %v1411 = vsel %vm1202, %v1404, 0.0
        %1412 = vadd.xlane.f32.xlu0 %v1411
        %v1413 = vpop.xlane.xlu0 %1412
        %v1414 = vsel %vm1202, %v1406, 0.0
        %1415 = vadd.xlane.f32.xlu0 %v1414
        %v1416 = vpop.xlane.xlu0 %1415
        %v1417 = vsel %vm1202, %v1408, 0.0
        %1418 = vadd.xlane.f32.xlu0 %v1417
        %v1419 = vpop.xlane.xlu0 %1418
        %v1420 = vsel %vm1202, %v1410, 0.0
        %1421 = vadd.xlane.f32.xlu0 %v1420
        %v1422 = vpop.xlane.xlu0 %1421
        %v1423 = vrcp.pop %v1413
        %v1424 = vmul.f32 %v1404, %v1423
        %v1425 = vrcp.pop %v1416
        %v1426 = vmul.f32 %v1406, %v1425
        %v1427 = vrcp.pop %v1419
        %v1428 = vmul.f32 %v1408, %v1427
        %v1429 = vrcp.pop %v1422
        %v1430 = vmul.f32 %v1410, %v1429
        %v1431 = vpack.c.bf16 %v1424, %v1424
        %v1432 = vpack.c.bf16 %v1426, %v1426
        %v1433 = vpack.c.bf16 %v1428, %v1428
        %v1434 = vpack.c.bf16 %v1430, %v1430
        %v1436 = vsel %vm1202, %v1431, 0
        %vm1438 = vcmask 1043456
        %v1440 = vsel %vm1438, %v1186, 0
        %1442 = vmatprep.subr.bf16.mxu0 0
        %1443 = vmatpush1.bf16.msra.mxu0 %v1440
        %1444 = vmatprep.subr.bf16.mxu0 0
        %1445 = vmatpush1.bf16.msra.mxu0 0
        %1446 = vmatprep.subr.bf16.mxu0 0
        %1447 = vmatpush1.bf16.msra.mxu0 0
        %1448 = vmatprep.subr.bf16.mxu0 0
        %1449 = vmatpush1.bf16.msra.mxu0 0
        %1450 = vmatprep.subr.bf16.mxu0 0
        %1451 = vmatpush1.bf16.msra.mxu0 0
        %1452 = vmatprep.subr.bf16.mxu0 0
        %1453 = vmatpush1.bf16.msra.mxu0 0
        %1454 = vmatprep.subr.bf16.mxu0 0
        %1455 = vmatpush1.bf16.msra.mxu0 0
        %1456 = vmatprep.subr.bf16.mxu0 0
        %1457 = vmatpush1.bf16.msra.mxu0 0
        %1458 = vmatprep.subr.bf16.mxu0 0
        %1459 = vmatpush1.bf16.msra.mxu0 0
        %1460 = vmatprep.subr.bf16.mxu0 0
        %1461 = vmatpush1.bf16.msra.mxu0 0
        %1462 = vmatprep.subr.bf16.mxu0 0
        %1463 = vmatpush1.bf16.msra.mxu0 0
        %1464 = vmatprep.subr.bf16.mxu0 0
        %1465 = vmatpush1.bf16.msra.mxu0 0
        %1466 = vmatprep.subr.bf16.mxu0 0
        %1467 = vmatpush1.bf16.msra.mxu0 0
        %1468 = vmatprep.subr.bf16.mxu0 0
        %1469 = vmatpush1.bf16.msra.mxu0 0
        %1470 = vmatprep.subr.bf16.mxu0 0
        %1471 = vmatpush1.bf16.msra.mxu0 0
        %1472 = vmatprep.subr.bf16.mxu0 0
        %1473 = vmatpush1.bf16.msra.mxu0 0
        %1474 = vmatprep.mubr.bf16.mxu0 0
        %1475 = vmatmul.mubr.bf16.gmra.mrb[0].mxu0 %v1436
        %v1476 = vpop.f32.mrb[0].mxu0
        %v1477 = vadd.f32 0.0, %v1476
        %v1478 = vpop.f32.mrb[0].mxu0
        %v1479 = vpop.f32.mrb[0].mxu0
        %v1480 = vpop.f32.mrb[0].mxu0
        %1481 = vdwg.mxu0
        %v1483 = vsel %vm1202, %v1432, 0
        %v1486 = vsel %vm1438, %v1189, 0
        %1488 = vmatprep.subr.bf16.mxu0 0
        %1489 = vmatpush1.bf16.msra.mxu0 %v1486
        %1490 = vmatprep.subr.bf16.mxu0 0
        %1491 = vmatpush1.bf16.msra.mxu0 0
        %1492 = vmatprep.subr.bf16.mxu0 0
        %1493 = vmatpush1.bf16.msra.mxu0 0
        %1494 = vmatprep.subr.bf16.mxu0 0
        %1495 = vmatpush1.bf16.msra.mxu0 0
        %1496 = vmatprep.subr.bf16.mxu0 0
        %1497 = vmatpush1.bf16.msra.mxu0 0
        %1498 = vmatprep.subr.bf16.mxu0 0
        %1499 = vmatpush1.bf16.msra.mxu0 0
        %1500 = vmatprep.subr.bf16.mxu0 0
        %1501 = vmatpush1.bf16.msra.mxu0 0
        %1502 = vmatprep.subr.bf16.mxu0 0
        %1503 = vmatpush1.bf16.msra.mxu0 0
        %1504 = vmatprep.subr.bf16.mxu0 0
        %1505 = vmatpush1.bf16.msra.mxu0 0
        %1506 = vmatprep.subr.bf16.mxu0 0
        %1507 = vmatpush1.bf16.msra.mxu0 0
        %1508 = vmatprep.subr.bf16.mxu0 0
        %1509 = vmatpush1.bf16.msra.mxu0 0
        %1510 = vmatprep.subr.bf16.mxu0 0
        %1511 = vmatpush1.bf16.msra.mxu0 0
        %1512 = vmatprep.subr.bf16.mxu0 0
        %1513 = vmatpush1.bf16.msra.mxu0 0
        %1514 = vmatprep.subr.bf16.mxu0 0
        %1515 = vmatpush1.bf16.msra.mxu0 0
        %1516 = vmatprep.subr.bf16.mxu0 0
        %1517 = vmatpush1.bf16.msra.mxu0 0
        %1518 = vmatprep.subr.bf16.mxu0 0
        %1519 = vmatpush1.bf16.msra.mxu0 0
        %1520 = vmatprep.mubr.bf16.mxu0 0
        %1521 = vmatmul.mubr.bf16.gmra.mrb[0].mxu0 %v1483
        %v1522 = vpop.f32.mrb[0].mxu0
        %v1523 = vadd.f32 0.0, %v1522
        %v1524 = vpop.f32.mrb[0].mxu0
        %v1525 = vpop.f32.mrb[0].mxu0
        %v1526 = vpop.f32.mrb[0].mxu0
        %1527 = vdwg.mxu0
        %v1529 = vsel %vm1202, %v1433, 0
        %v1532 = vsel %vm1438, %v1192, 0
        %1534 = vmatprep.subr.bf16.mxu0 0
        %1535 = vmatpush1.bf16.msra.mxu0 %v1532
        %1536 = vmatprep.subr.bf16.mxu0 0
        %1537 = vmatpush1.bf16.msra.mxu0 0
        %1538 = vmatprep.subr.bf16.mxu0 0
        %1539 = vmatpush1.bf16.msra.mxu0 0
        %1540 = vmatprep.subr.bf16.mxu0 0
        %1541 = vmatpush1.bf16.msra.mxu0 0
        %1542 = vmatprep.subr.bf16.mxu0 0
        %1543 = vmatpush1.bf16.msra.mxu0 0
        %1544 = vmatprep.subr.bf16.mxu0 0
        %1545 = vmatpush1.bf16.msra.mxu0 0
        %1546 = vmatprep.subr.bf16.mxu0 0
        %1547 = vmatpush1.bf16.msra.mxu0 0
        %1548 = vmatprep.subr.bf16.mxu0 0
        %1549 = vmatpush1.bf16.msra.mxu0 0
        %1550 = vmatprep.subr.bf16.mxu0 0
        %1551 = vmatpush1.bf16.msra.mxu0 0
        %1552 = vmatprep.subr.bf16.mxu0 0
        %1553 = vmatpush1.bf16.msra.mxu0 0
        %1554 = vmatprep.subr.bf16.mxu0 0
        %1555 = vmatpush1.bf16.msra.mxu0 0
        %1556 = vmatprep.subr.bf16.mxu0 0
        %1557 = vmatpush1.bf16.msra.mxu0 0
        %1558 = vmatprep.subr.bf16.mxu0 0
        %1559 = vmatpush1.bf16.msra.mxu0 0
        %1560 = vmatprep.subr.bf16.mxu0 0
        %1561 = vmatpush1.bf16.msra.mxu0 0
        %1562 = vmatprep.subr.bf16.mxu0 0
        %1563 = vmatpush1.bf16.msra.mxu0 0
        %1564 = vmatprep.subr.bf16.mxu0 0
        %1565 = vmatpush1.bf16.msra.mxu0 0
        %1566 = vmatprep.mubr.bf16.mxu0 0
        %1567 = vmatmul.mubr.bf16.gmra.mrb[0].mxu0 %v1529
        %v1568 = vpop.f32.mrb[0].mxu0
        %v1569 = vadd.f32 0.0, %v1568
        %v1570 = vpop.f32.mrb[0].mxu0
        %v1571 = vpop.f32.mrb[0].mxu0
        %v1572 = vpop.f32.mrb[0].mxu0
        %1573 = vdwg.mxu0
        %v1575 = vsel %vm1202, %v1434, 0
        %v1578 = vsel %vm1438, %v1195, 0
        %1580 = vmatprep.subr.bf16.mxu0 0
        %1581 = vmatpush1.bf16.msra.mxu0 %v1578
        %1582 = vmatprep.subr.bf16.mxu0 0
        %1583 = vmatpush1.bf16.msra.mxu0 0
        %1584 = vmatprep.subr.bf16.mxu0 0
        %1585 = vmatpush1.bf16.msra.mxu0 0
        %1586 = vmatprep.subr.bf16.mxu0 0
        %1587 = vmatpush1.bf16.msra.mxu0 0
        %1588 = vmatprep.subr.bf16.mxu0 0
        %1589 = vmatpush1.bf16.msra.mxu0 0
        %1590 = vmatprep.subr.bf16.mxu0 0
        %1591 = vmatpush1.bf16.msra.mxu0 0
        %1592 = vmatprep.subr.bf16.mxu0 0
        %1593 = vmatpush1.bf16.msra.mxu0 0
        %1594 = vmatprep.subr.bf16.mxu0 0
        %1595 = vmatpush1.bf16.msra.mxu0 0
        %1596 = vmatprep.subr.bf16.mxu0 0
        %1597 = vmatpush1.bf16.msra.mxu0 0
        %1598 = vmatprep.subr.bf16.mxu0 0
        %1599 = vmatpush1.bf16.msra.mxu0 0
        %1600 = vmatprep.subr.bf16.mxu0 0
        %1601 = vmatpush1.bf16.msra.mxu0 0
        %1602 = vmatprep.subr.bf16.mxu0 0
        %1603 = vmatpush1.bf16.msra.mxu0 0
        %1604 = vmatprep.subr.bf16.mxu0 0
        %1605 = vmatpush1.bf16.msra.mxu0 0
        %1606 = vmatprep.subr.bf16.mxu0 0
        %1607 = vmatpush1.bf16.msra.mxu0 0
        %1608 = vmatprep.subr.bf16.mxu0 0
        %1609 = vmatpush1.bf16.msra.mxu0 0
        %1610 = vmatprep.subr.bf16.mxu0 0
        %1611 = vmatpush1.bf16.msra.mxu0 0
        %1612 = vmatprep.mubr.bf16.mxu0 0
        %1613 = vmatmul.mubr.bf16.gmra.mrb[0].mxu0 %v1575
        %v1614 = vpop.f32.mrb[0].mxu0
        %v1615 = vadd.f32 0.0, %v1614
        %v1616 = vpop.f32.mrb[0].mxu0
        %v1617 = vpop.f32.mrb[0].mxu0
        %v1618 = vpop.f32.mrb[0].mxu0
        %1619 = vdwg.mxu0
        %v1620 = vcombine.low %v1477, %v1569
        %v1621 = vcombine.high %v1477, %v1569
        %v1623 = vunpack.c.l.s4 1983009808
        %v1624 = vunpack.c.0.s8 %v1623
        %v1625 = vlaneseq
        %v1626 = vshrl.u32 %v1625, 7
        %v1627 = vsub.s32 %v1624, %v1626
        %v1628 = vrot.slane %v1620, %v1627
        %v1630 = vunpack.c.l.s4 1983009808
        %v1631 = vunpack.c.0.s8 %v1630
        %v1632 = vlaneseq
        %v1633 = vshrl.u32 %v1632, 7
        %v1634 = vsub.s32 %v1631, %v1633
        %v1635 = vrot.slane %v1621, %v1634
        %v1636 = vcombine.low %v1523, %v1615
        %v1637 = vcombine.high %v1523, %v1615
        %v1639 = vunpack.c.l.s4 1983009808
        %v1640 = vunpack.c.0.s8 %v1639
        %v1641 = vlaneseq
        %v1642 = vshrl.u32 %v1641, 7
        %v1643 = vsub.s32 %v1640, %v1642
        %v1644 = vrot.slane %v1636, %v1643
        %v1646 = vunpack.c.l.s4 1983009808
        %v1647 = vunpack.c.0.s8 %v1646
        %v1648 = vlaneseq
        %v1649 = vshrl.u32 %v1648, 7
        %v1650 = vsub.s32 %v1647, %v1649
        %v1651 = vrot.slane %v1637, %v1650
        %v1652 = vcombine.low %v1628, %v1644
        %v1653 = vcombine.high %v1628, %v1644
        %v1655 = vunpack.c.l.s4 1934713408
        %v1656 = vunpack.c.0.s8 %v1655
        %v1657 = vlaneseq
        %v1658 = vshrl.u32 %v1657, 7
        %v1659 = vsub.s32 %v1656, %v1658
        %v1660 = vrot.slane %v1652, %v1659
        %v1662 = vunpack.c.l.s4 1934713408
        %v1663 = vunpack.c.0.s8 %v1662
        %v1664 = vlaneseq
        %v1665 = vshrl.u32 %v1664, 7
        %v1666 = vsub.s32 %v1663, %v1665
        %v1667 = vrot.slane %v1653, %v1666
        %v1668 = vcombine.low %v1635, %v1651
        %v1669 = vcombine.high %v1635, %v1651
        %v1671 = vunpack.c.l.s4 1934713408
        %v1672 = vunpack.c.0.s8 %v1671
        %v1673 = vlaneseq
        %v1674 = vshrl.u32 %v1673, 7
        %v1675 = vsub.s32 %v1672, %v1674
        %v1676 = vrot.slane %v1668, %v1675
        %v1678 = vunpack.c.l.s4 1934713408
        %v1679 = vunpack.c.0.s8 %v1678
        %v1680 = vlaneseq
        %v1681 = vshrl.u32 %v1680, 7
        %v1682 = vsub.s32 %v1679, %v1681
        %v1683 = vrot.slane %v1669, %v1682
        %v1684 = vcombine.high %v1660, 0.0
        %v1685 = vcombine.high %v1667, 0.0
        %v1686 = vcombine.high %v1676, 0.0
        %v1687 = vcombine.high %v1683, 0.0
        %v1688 = vcombine.low %v1660, %v1667
        %v1690 = vunpack.c.l.s4 1983009808
        %v1691 = vunpack.c.0.s8 %v1690
        %v1692 = vlaneseq
        %v1693 = vshrl.u32 %v1692, 7
        %v1694 = vsub.s32 %v1691, %v1693
        %v1695 = vrot.slane %v1688, %v1694
        %v1696 = vcombine.low %v1684, %v1685
        %v1698 = vunpack.c.l.s4 1983009808
        %v1699 = vunpack.c.0.s8 %v1698
        %v1700 = vlaneseq
        %v1701 = vshrl.u32 %v1700, 7
        %v1702 = vsub.s32 %v1699, %v1701
        %v1703 = vrot.slane %v1696, %v1702
        %v1704 = vcombine.low %v1676, %v1683
        %v1706 = vunpack.c.l.s4 1983009808
        %v1707 = vunpack.c.0.s8 %v1706
        %v1708 = vlaneseq
        %v1709 = vshrl.u32 %v1708, 7
        %v1710 = vsub.s32 %v1707, %v1709
        %v1711 = vrot.slane %v1704, %v1710
        %v1712 = vcombine.low %v1686, %v1687
        %v1714 = vunpack.c.l.s4 1983009808
        %v1715 = vunpack.c.0.s8 %v1714
        %v1716 = vlaneseq
        %v1717 = vshrl.u32 %v1716, 7
        %v1718 = vsub.s32 %v1715, %v1717
        %v1719 = vrot.slane %v1712, %v1718
        %v1720 = vcombine.low %v1695, %v1703
        %v1721 = vcombine.high %v1695, %v1703
        %v1723 = vunpack.c.l.s4 1934713408
        %v1724 = vunpack.c.0.s8 %v1723
        %v1725 = vlaneseq
        %v1726 = vshrl.u32 %v1725, 7
        %v1727 = vsub.s32 %v1724, %v1726
        %v1728 = vrot.slane %v1720, %v1727
        %v1730 = vunpack.c.l.s4 1934713408
        %v1731 = vunpack.c.0.s8 %v1730
        %v1732 = vlaneseq
        %v1733 = vshrl.u32 %v1732, 7
        %v1734 = vsub.s32 %v1731, %v1733
        %v1735 = vrot.slane %v1721, %v1734
        %v1736 = vcombine.low %v1711, %v1719
        %v1737 = vcombine.high %v1711, %v1719
        %v1739 = vunpack.c.l.s4 1934713408
        %v1740 = vunpack.c.0.s8 %v1739
        %v1741 = vlaneseq
        %v1742 = vshrl.u32 %v1741, 7
        %v1743 = vsub.s32 %v1740, %v1742
        %v1744 = vrot.slane %v1736, %v1743
        %v1746 = vunpack.c.l.s4 1934713408
        %v1747 = vunpack.c.0.s8 %v1746
        %v1748 = vlaneseq
        %v1749 = vshrl.u32 %v1748, 7
        %v1750 = vsub.s32 %v1747, %v1749
        %v1751 = vrot.slane %v1737, %v1750
        %v1752 = vcombine.low %v1728, %v1744
        %v1753 = vcombine.high %v1728, %v1744
        %v1754 = vcombine.low %v1735, %v1751
        %v1755 = vcombine.high %v1735, %v1751
        %1757 = vrot.lane.b32.xlu0 %v1753, 8
        %v1758 = vpop.permute.xlu0 %1757
        %1761 = vrot.lane.b32.xlu0 %v1754, 16
        %v1762 = vpop.permute.xlu0 %1761
        %1765 = vrot.lane.b32.xlu0 %v1755, 24
        %v1766 = vpop.permute.xlu0 %1765
        %v1768 = vsel %vm1202, %v1752, %v1758
        %vm1769 = vcmask 130048
        %v1770 = vsel %vm1769, %v1768, %v1762
        %vm1771 = vcmask 195584
        %v1772 = vsel %vm1771, %v1770, %v1766
        %v1773 = vpack.c.bf16 %v1772, %v1772
        %v1774 = vld [vmem:[%s6] sm:$0xf]
        %v1775 = vld [vmem:[%s6 + $0x4] sm:$0xf]
        %v1776 = vld [vmem:[%s6 + $0x8] sm:$0xf]
        %v1777 = vld [vmem:[%s6 + $0xc] sm:$0xf]
        %v1778 = vld [vmem:[%s7] sm:$0x1]
        %v1780 = vlaneseq
        %v1781 = vshrl.u32 %v1780, 7
        %v1782 = vsub.s32 0, %v1781
        %v1783 = vrot.slane %v1778, %v1782
        %v1789 = vunpack.c.l.b16 %v1774
        %v1790 = vunpack.c.l.b16 %v1775
        %v1791 = vunpack.c.l.b16 %v1776
        %v1792 = vunpack.c.l.b16 %v1777
        %v1793 = vpack.c.b16 %v1790, %v1789
        %v1794 = vpack.c.b16 %v1792, %v1791
        %v1798 = vsel %vm588, %v1773, 0
        %1800 = vmatprep.subr.bf16.mxu0 0
        %1801 = vmatpush1.bf16.msra.mxu0 %v1793
        %1802 = vmatprep.subr.bf16.mxu0 0
        %1803 = vmatpush1.bf16.msra.mxu0 %v1794
        %1804 = vmatprep.subr.bf16.mxu0 0
        %1805 = vmatpush1.bf16.msra.mxu0 0
        %1806 = vmatprep.subr.bf16.mxu0 0
        %1807 = vmatpush1.bf16.msra.mxu0 0
        %1808 = vmatprep.subr.bf16.mxu0 0
        %1809 = vmatpush1.bf16.msra.mxu0 0
        %1810 = vmatprep.subr.bf16.mxu0 0
        %1811 = vmatpush1.bf16.msra.mxu0 0
        %1812 = vmatprep.subr.bf16.mxu0 0
        %1813 = vmatpush1.bf16.msra.mxu0 0
        %1814 = vmatprep.subr.bf16.mxu0 0
        %1815 = vmatpush1.bf16.msra.mxu0 0
        %1816 = vmatprep.subr.bf16.mxu0 0
        %1817 = vmatpush1.bf16.msra.mxu0 0
        %1818 = vmatprep.subr.bf16.mxu0 0
        %1819 = vmatpush1.bf16.msra.mxu0 0
        %1820 = vmatprep.subr.bf16.mxu0 0
        %1821 = vmatpush1.bf16.msra.mxu0 0
        %1822 = vmatprep.subr.bf16.mxu0 0
        %1823 = vmatpush1.bf16.msra.mxu0 0
        %1824 = vmatprep.subr.bf16.mxu0 0
        %1825 = vmatpush1.bf16.msra.mxu0 0
        %1826 = vmatprep.subr.bf16.mxu0 0
        %1827 = vmatpush1.bf16.msra.mxu0 0
        %1828 = vmatprep.subr.bf16.mxu0 0
        %1829 = vmatpush1.bf16.msra.mxu0 0
        %1830 = vmatprep.subr.bf16.mxu0 0
        %1831 = vmatpush1.bf16.msra.mxu0 0
        %1832 = vmatprep.mubr.bf16.mxu0 0
        %1833 = vmatmul.mubr.bf16.gmra.mrb[0].mxu0 %v1798
        %v1834 = vpop.f32.mrb[0].mxu0
        %v1835 = vadd.f32 %v1783, %v1834
        %v1836 = vpop.f32.mrb[0].mxu0
        %v1837 = vpop.f32.mrb[0].mxu0
        %v1838 = vpop.f32.mrb[0].mxu0
        %1839 = vdwg.mxu0
        %v1840 = vadd.f32 %v1835, %v618
        %v1841 = vld [vmem:[%s8] sm:$0x1]
        %v1842 = vld [vmem:[%s9] sm:$0x1]
        %v1843 = vsel %vm588, %v1840, 0.0
        %1844 = vadd.xlane.f32.xlu0 %v1843
        %v1845 = vpop.xlane.xlu0 %1844
        %v1846 = vmul.f32 %v1845, %v592
        %v1847 = vmul.f32 %v1840, %v1840
        %v1848 = vsel %vm588, %v1847, 0.0
        %1849 = vadd.xlane.f32.xlu0 %v1848
        %v1850 = vpop.xlane.xlu0 %1849
        %v1851 = vmul.f32 %v1850, %v592
        %v1852 = vmul.f32 %v1846, %v1846
        %v1853 = vsub.f32 %v1851, %v1852
        %v1854 = vsub.f32 %v1840, %v1846
        %v1855 = vadd.f32 %v1853, 1e-05
        %v1856 = vrsqrt.pop %v1855
        %v1857 = vmul.f32 %v1854, %v1856
        %v1859 = vlaneseq
        %v1860 = vshrl.u32 %v1859, 7
        %v1861 = vsub.s32 0, %v1860
        %v1862 = vrot.slane %v1841, %v1861
        %v1864 = vmul.f32 %v1857, %v1862
        %v1866 = vlaneseq
        %v1867 = vshrl.u32 %v1866, 7
        %v1868 = vsub.s32 0, %v1867
        %v1869 = vrot.slane %v1842, %v1868
        %v1871 = vadd.f32 %v1864, %v1869
        %v1872 = vpack.c.bf16 %v1871, %v1871
        %v1873 = vld [vmem:[%s10] sm:$0xf]
        %v1874 = vld [vmem:[%s10 + $0x4] sm:$0xf]
        %v1875 = vld [vmem:[%s10 + $0x8] sm:$0xf]
        %v1876 = vld [vmem:[%s10 + $0xc] sm:$0xf]
        %v1877 = vld [vmem:[%s11] sm:$0x1]
        %v1879 = vlaneseq
        %v1880 = vshrl.u32 %v1879, 7
        %v1881 = vsub.s32 0, %v1880
        %v1882 = vrot.slane %v1877, %v1881
        %v1888 = vunpack.c.l.b16 %v1873
        %v1889 = vunpack.c.l.b16 %v1874
        %v1890 = vunpack.c.l.b16 %v1875
        %v1891 = vunpack.c.l.b16 %v1876
        %v1892 = vpack.c.b16 %v1889, %v1888
        %v1893 = vpack.c.b16 %v1891, %v1890
        %v1897 = vsel %vm588, %v1872, 0
        %1899 = vmatprep.subr.bf16.mxu0 0
        %1900 = vmatpush1.bf16.msra.mxu0 %v1892
        %1901 = vmatprep.subr.bf16.mxu0 0
        %1902 = vmatpush1.bf16.msra.mxu0 %v1893
        %1903 = vmatprep.subr.bf16.mxu0 0
        %1904 = vmatpush1.bf16.msra.mxu0 0
        %1905 = vmatprep.subr.bf16.mxu0 0
        %1906 = vmatpush1.bf16.msra.mxu0 0
        %1907 = vmatprep.subr.bf16.mxu0 0
        %1908 = vmatpush1.bf16.msra.mxu0 0
        %1909 = vmatprep.subr.bf16.mxu0 0
        %1910 = vmatpush1.bf16.msra.mxu0 0
        %1911 = vmatprep.subr.bf16.mxu0 0
        %1912 = vmatpush1.bf16.msra.mxu0 0
        %1913 = vmatprep.subr.bf16.mxu0 0
        %1914 = vmatpush1.bf16.msra.mxu0 0
        %1915 = vmatprep.subr.bf16.mxu0 0
        %1916 = vmatpush1.bf16.msra.mxu0 0
        %1917 = vmatprep.subr.bf16.mxu0 0
        %1918 = vmatpush1.bf16.msra.mxu0 0
        %1919 = vmatprep.subr.bf16.mxu0 0
        %1920 = vmatpush1.bf16.msra.mxu0 0
        %1921 = vmatprep.subr.bf16.mxu0 0
        %1922 = vmatpush1.bf16.msra.mxu0 0
        %1923 = vmatprep.subr.bf16.mxu0 0
        %1924 = vmatpush1.bf16.msra.mxu0 0
        %1925 = vmatprep.subr.bf16.mxu0 0
        %1926 = vmatpush1.bf16.msra.mxu0 0
        %1927 = vmatprep.subr.bf16.mxu0 0
        %1928 = vmatpush1.bf16.msra.mxu0 0
        %1929 = vmatprep.subr.bf16.mxu0 0
        %1930 = vmatpush1.bf16.msra.mxu0 0
        %1931 = vmatprep.mubr.bf16.mxu0 0
        %1932 = vmatmul.mubr.bf16.gmra.mrb[0].mxu0 %v1897
        %v1933 = vpop.f32.mrb[0].mxu0
        %v1934 = vadd.f32 %v1882, %v1933
        %v1935 = vpop.f32.mrb[0].mxu0
        %v1936 = vpop.f32.mrb[0].mxu0
        %v1937 = vpop.f32.mrb[0].mxu0
        %1938 = vdwg.mxu0
        %v1939 = vmul.f32 %v1934, %v1934
        %v1940 = vmul.f32 %v1934, %v1939
        %v1941 = vmul.f32 %v1940, 0.044715
        %v1942 = vadd.f32 %v1934, %v1941
        %v1943 = vmul.f32 %v1942, 0.7978846
        %v1944 = vtanh.pop %v1943
        %v1945 = vadd.f32 %v1944, 1.0
        %v1946 = vmul.f32 %v1945, 0.5
        %v1947 = vmul.f32 %v1934, %v1946
        %v1948 = vpack.c.bf16 %v1947, %v1947
        %v1949 = vld [vmem:[%s12] sm:$0xf]
        %v1950 = vld [vmem:[%s12 + $0x4] sm:$0xf]
        %v1951 = vld [vmem:[%s12 + $0x8] sm:$0xf]
        %v1952 = vld [vmem:[%s12 + $0xc] sm:$0xf]
        %v1953 = vld [vmem:[%s12 + $0x10] sm:$0xf]
        %v1954 = vld [vmem:[%s12 + $0x14] sm:$0xf]
        %v1955 = vld [vmem:[%s12 + $0x18] sm:$0xf]
        %v1956 = vld [vmem:[%s12 + $0x1c] sm:$0xf]
        %v1957 = vld [vmem:[%s13] sm:$0x1]
        %v1959 = vlaneseq
        %v1960 = vshrl.u32 %v1959, 7
        %v1961 = vsub.s32 0, %v1960
        %v1962 = vrot.slane %v1957, %v1961
        %v1972 = vunpack.c.l.b16 %v1949
        %v1973 = vunpack.c.l.b16 %v1950
        %v1974 = vunpack.c.l.b16 %v1951
        %v1975 = vunpack.c.l.b16 %v1952
        %v1976 = vunpack.c.l.b16 %v1953
        %v1977 = vunpack.c.l.b16 %v1954
        %v1978 = vunpack.c.l.b16 %v1955
        %v1979 = vunpack.c.l.b16 %v1956
        %v1980 = vpack.c.b16 %v1973, %v1972
        %v1981 = vpack.c.b16 %v1975, %v1974
        %v1982 = vpack.c.b16 %v1977, %v1976
        %v1983 = vpack.c.b16 %v1979, %v1978
        %vm1988 = vcmask 523264
        %v1990 = vsel %vm1988, %v1948, 0
        %1992 = vmatprep.subr.bf16.mxu0 0
        %1993 = vmatpush1.bf16.msra.mxu0 %v1980
        %1994 = vmatprep.subr.bf16.mxu0 0
        %1995 = vmatpush1.bf16.msra.mxu0 %v1981
        %1996 = vmatprep.subr.bf16.mxu0 0
        %1997 = vmatpush1.bf16.msra.mxu0 %v1982
        %1998 = vmatprep.subr.bf16.mxu0 0
        %1999 = vmatpush1.bf16.msra.mxu0 %v1983
        %2000 = vmatprep.subr.bf16.mxu0 0
        %2001 = vmatpush1.bf16.msra.mxu0 0
        %2002 = vmatprep.subr.bf16.mxu0 0
        %2003 = vmatpush1.bf16.msra.mxu0 0
        %2004 = vmatprep.subr.bf16.mxu0 0
        %2005 = vmatpush1.bf16.msra.mxu0 0
        %2006 = vmatprep.subr.bf16.mxu0 0
        %2007 = vmatpush1.bf16.msra.mxu0 0
        %2008 = vmatprep.subr.bf16.mxu0 0
        %2009 = vmatpush1.bf16.msra.mxu0 0
        %2010 = vmatprep.subr.bf16.mxu0 0
        %2011 = vmatpush1.bf16.msra.mxu0 0
        %2012 = vmatprep.subr.bf16.mxu0 0
        %2013 = vmatpush1.bf16.msra.mxu0 0
        %2014 = vmatprep.subr.bf16.mxu0 0
        %2015 = vmatpush1.bf16.msra.mxu0 0
        %2016 = vmatprep.subr.bf16.mxu0 0
        %2017 = vmatpush1.bf16.msra.mxu0 0
        %2018 = vmatprep.subr.bf16.mxu0 0
        %2019 = vmatpush1.bf16.msra.mxu0 0
        %2020 = vmatprep.subr.bf16.mxu0 0
        %2021 = vmatpush1.bf16.msra.mxu0 0
        %2022 = vmatprep.subr.bf16.mxu0 0
        %2023 = vmatpush1.bf16.msra.mxu0 0
        %2024 = vmatprep.mubr.bf16.mxu0 0
        %2025 = vmatmul.mubr.bf16.gmra.mrb[0].mxu0 %v1990
        %v2026 = vpop.f32.mrb[0].mxu0
        %v2027 = vadd.f32 %v1962, %v2026
        %v2028 = vpop.f32.mrb[0].mxu0
        %v2029 = vpop.f32.mrb[0].mxu0
        %v2030 = vpop.f32.mrb[0].mxu0
        %2031 = vdwg.mxu0
        %v2032 = vadd.f32 %v2027, %v1871
        %v2033 = vld [vmem:[%s14] sm:$0x1]
        %v2034 = vld [vmem:[%s15] sm:$0x1]
        %v2035 = vsel %vm588, %v2032, 0.0
        %2036 = vadd.xlane.f32.xlu0 %v2035
        %v2037 = vpop.xlane.xlu0 %2036
        %v2038 = vmul.f32 %v2037, %v592
        %v2039 = vmul.f32 %v2032, %v2032
        %v2040 = vsel %vm588, %v2039, 0.0
        %2041 = vadd.xlane.f32.xlu0 %v2040
        %v2042 = vpop.xlane.xlu0 %2041
        %v2043 = vmul.f32 %v2042, %v592
        %v2044 = vmul.f32 %v2038, %v2038
        %v2045 = vsub.f32 %v2043, %v2044
        %v2046 = vsub.f32 %v2032, %v2038
        %v2047 = vadd.f32 %v2045, 1e-05
        %v2048 = vrsqrt.pop %v2047
        %v2049 = vmul.f32 %v2046, %v2048
        %v2051 = vlaneseq
        %v2052 = vshrl.u32 %v2051, 7
        %v2053 = vsub.s32 0, %v2052
        %v2054 = vrot.slane %v2033, %v2053
        %v2056 = vmul.f32 %v2049, %v2054
        %v2058 = vlaneseq
        %v2059 = vshrl.u32 %v2058, 7
        %v2060 = vsub.s32 0, %v2059
        %v2061 = vrot.slane %v2034, %v2060
        %v2063 = vadd.f32 %v2056, %v2061
        %v2064 = vpack.c.bf16 %v2063, %v2063
        %s2065 = scalar_lea.vmem %s4, 16
        %v2066 = vld [vmem:[%s2065] sm:$0xf]
        %v2067 = vld [vmem:[%s2065 + $0x4] sm:$0xf]
        %v2068 = vld [vmem:[%s2065 + $0x8] sm:$0xf]
        %v2069 = vld [vmem:[%s2065 + $0xc] sm:$0xf]
        %s2070 = scalar_lea.vmem %s5, 1
        %v2071 = vld [vmem:[%s2070] sm:$0x1]
        %v2073 = vlaneseq
        %v2074 = vshrl.u32 %v2073, 7
        %v2075 = vsub.s32 0, %v2074
        %v2076 = vrot.slane %v2071, %v2075
        %v2082 = vunpack.c.l.b16 %v2066
        %v2083 = vunpack.c.l.b16 %v2067
        %v2084 = vunpack.c.l.b16 %v2068
        %v2085 = vunpack.c.l.b16 %v2069
        %v2086 = vpack.c.b16 %v2083, %v2082
        %v2087 = vpack.c.b16 %v2085, %v2084
        %v2091 = vsel %vm588, %v2064, 0
        %2093 = vmatprep.subr.bf16.mxu0 0
        %2094 = vmatpush1.bf16.msra.mxu0 %v2086
        %2095 = vmatprep.subr.bf16.mxu0 0
        %2096 = vmatpush1.bf16.msra.mxu0 %v2087
        %2097 = vmatprep.subr.bf16.mxu0 0
        %2098 = vmatpush1.bf16.msra.mxu0 0
        %2099 = vmatprep.subr.bf16.mxu0 0
        %2100 = vmatpush1.bf16.msra.mxu0 0
        %2101 = vmatprep.subr.bf16.mxu0 0
        %2102 = vmatpush1.bf16.msra.mxu0 0
        %2103 = vmatprep.subr.bf16.mxu0 0
        %2104 = vmatpush1.bf16.msra.mxu0 0
        %2105 = vmatprep.subr.bf16.mxu0 0
        %2106 = vmatpush1.bf16.msra.mxu0 0
        %2107 = vmatprep.subr.bf16.mxu0 0
        %2108 = vmatpush1.bf16.msra.mxu0 0
        %2109 = vmatprep.subr.bf16.mxu0 0
        %2110 = vmatpush1.bf16.msra.mxu0 0
        %2111 = vmatprep.subr.bf16.mxu0 0
        %2112 = vmatpush1.bf16.msra.mxu0 0
        %2113 = vmatprep.subr.bf16.mxu0 0
        %2114 = vmatpush1.bf16.msra.mxu0 0
        %2115 = vmatprep.subr.bf16.mxu0 0
        %2116 = vmatpush1.bf16.msra.mxu0 0
        %2117 = vmatprep.subr.bf16.mxu0 0
        %2118 = vmatpush1.bf16.msra.mxu0 0
        %2119 = vmatprep.subr.bf16.mxu0 0
        %2120 = vmatpush1.bf16.msra.mxu0 0
        %2121 = vmatprep.subr.bf16.mxu0 0
        %2122 = vmatpush1.bf16.msra.mxu0 0
        %2123 = vmatprep.subr.bf16.mxu0 0
        %2124 = vmatpush1.bf16.msra.mxu0 0
        %2125 = vmatprep.mubr.bf16.mxu0 0
        %2126 = vmatmul.mubr.bf16.gmra.mrb[0].mxu0 %v2091
        %v2127 = vpop.f32.mrb[0].mxu0
        %v2128 = vadd.f32 %v2076, %v2127
        %v2129 = vpop.f32.mrb[0].mxu0
        %v2130 = vpop.f32.mrb[0].mxu0
        %v2131 = vpop.f32.mrb[0].mxu0
        %2132 = vdwg.mxu0
        %v2133 = vpack.c.bf16 %v2128, %v2128
        %2135 = vrot.lane.b32.xlu0 %v2133, 120
        %v2136 = vpop.permute.xlu0 %2135
        %2137 = vrot.lane.b32.xlu0 %v2133, 112
        %v2138 = vpop.permute.xlu0 %2137
        %2139 = vrot.lane.b32.xlu0 %v2133, 104
        %v2140 = vpop.permute.xlu0 %2139
        %v2142 = vunpack.c.l.s4 1983009808
        %v2143 = vunpack.c.0.s8 %v2142
        %v2144 = vlaneseq
        %v2145 = vshrl.u32 %v2144, 7
        %v2146 = vsub.s32 %v2143, %v2145
        %v2147 = vrot.slane %v2133, %v2146
        %v2150 = vunpack.c.l.s4 1983009808
        %v2151 = vunpack.c.0.s8 %v2150
        %v2152 = vlaneseq
        %v2153 = vshrl.u32 %v2152, 7
        %v2154 = vsub.s32 %v2151, %v2153
        %v2155 = vrot.slane %v2138, %v2154
        %v2156 = vcombine.low %v2147, %v2155
        %v2157 = vcombine.high %v2147, %v2155
        %v2159 = vunpack.c.l.s4 1934713408
        %v2160 = vunpack.c.0.s8 %v2159
        %v2161 = vlaneseq
        %v2162 = vshrl.u32 %v2161, 7
        %v2163 = vsub.s32 %v2160, %v2162
        %v2164 = vrot.slane %v2156, %v2163
        %v2166 = vunpack.c.l.s4 1934713408
        %v2167 = vunpack.c.0.s8 %v2166
        %v2168 = vlaneseq
        %v2169 = vshrl.u32 %v2168, 7
        %v2170 = vsub.s32 %v2167, %v2169
        %v2171 = vrot.slane %v2157, %v2170
        %v2172 = vcombine.high %v2164, 0
        %v2173 = vcombine.high %v2171, 0
        %v2176 = vunpack.c.l.s4 1983009808
        %v2177 = vunpack.c.0.s8 %v2176
        %v2178 = vlaneseq
        %v2179 = vshrl.u32 %v2178, 7
        %v2180 = vsub.s32 %v2177, %v2179
        %v2181 = vrot.slane %v2136, %v2180
        %v2184 = vunpack.c.l.s4 1983009808
        %v2185 = vunpack.c.0.s8 %v2184
        %v2186 = vlaneseq
        %v2187 = vshrl.u32 %v2186, 7
        %v2188 = vsub.s32 %v2185, %v2187
        %v2189 = vrot.slane %v2140, %v2188
        %v2190 = vcombine.low %v2181, %v2189
        %v2191 = vcombine.high %v2181, %v2189
        %v2193 = vunpack.c.l.s4 1934713408
        %v2194 = vunpack.c.0.s8 %v2193
        %v2195 = vlaneseq
        %v2196 = vshrl.u32 %v2195, 7
        %v2197 = vsub.s32 %v2194, %v2196
        %v2198 = vrot.slane %v2190, %v2197
        %v2200 = vunpack.c.l.s4 1934713408
        %v2201 = vunpack.c.0.s8 %v2200
        %v2202 = vlaneseq
        %v2203 = vshrl.u32 %v2202, 7
        %v2204 = vsub.s32 %v2201, %v2203
        %v2205 = vrot.slane %v2191, %v2204
        %v2206 = vcombine.high %v2198, 0
        %v2207 = vcombine.high %v2205, 0
        %v2210 = vpack.i.b16 %v2198, %v2164
        %v2212 = vshrl.u32 %v2164, 16
        %v2213 = vshrl.u32 %v2198, 16
        %v2214 = vpack.i.b16 %v2213, %v2212
        %v2218 = vpack.i.b16 %v2206, %v2172
        %v2220 = vshrl.u32 %v2172, 16
        %v2221 = vshrl.u32 %v2206, 16
        %v2222 = vpack.i.b16 %v2221, %v2220
        %v2226 = vpack.i.b16 %v2205, %v2171
        %v2228 = vshrl.u32 %v2171, 16
        %v2229 = vshrl.u32 %v2205, 16
        %v2230 = vpack.i.b16 %v2229, %v2228
        %v2234 = vpack.i.b16 %v2207, %v2173
        %v2236 = vshrl.u32 %v2173, 16
        %v2237 = vshrl.u32 %v2207, 16
        %v2238 = vpack.i.b16 %v2237, %v2236
        %v2240 = vcombine.low %v2210, %v2226
        %v2242 = vunpack.c.l.s4 1983009808
        %v2243 = vunpack.c.0.s8 %v2242
        %v2244 = vlaneseq
        %v2245 = vshrl.u32 %v2244, 7
        %v2246 = vsub.s32 %v2243, %v2245
        %v2247 = vrot.slane %v2240, %v2246
        %v2248 = vcombine.low %v2218, %v2234
        %v2250 = vunpack.c.l.s4 1983009808
        %v2251 = vunpack.c.0.s8 %v2250
        %v2252 = vlaneseq
        %v2253 = vshrl.u32 %v2252, 7
        %v2254 = vsub.s32 %v2251, %v2253
        %v2255 = vrot.slane %v2248, %v2254
        %v2256 = vcombine.low %v2247, %v2255
        %v2258 = vunpack.c.l.s4 1934713408
        %v2259 = vunpack.c.0.s8 %v2258
        %v2260 = vlaneseq
        %v2261 = vshrl.u32 %v2260, 7
        %v2262 = vsub.s32 %v2259, %v2261
        %v2263 = vrot.slane %v2256, %v2262
        %v2264 = vcombine.high %v2263, 0
        %v2265 = vcombine.low %v2214, %v2230
        %v2267 = vunpack.c.l.s4 1983009808
        %v2268 = vunpack.c.0.s8 %v2267
        %v2269 = vlaneseq
        %v2270 = vshrl.u32 %v2269, 7
        %v2271 = vsub.s32 %v2268, %v2270
        %v2272 = vrot.slane %v2265, %v2271
        %v2273 = vcombine.low %v2222, %v2238
        %v2275 = vunpack.c.l.s4 1983009808
        %v2276 = vunpack.c.0.s8 %v2275
        %v2277 = vlaneseq
        %v2278 = vshrl.u32 %v2277, 7
        %v2279 = vsub.s32 %v2276, %v2278
        %v2280 = vrot.slane %v2273, %v2279
        %v2281 = vcombine.low %v2272, %v2280
        %v2283 = vunpack.c.l.s4 1934713408
        %v2284 = vunpack.c.0.s8 %v2283
        %v2285 = vlaneseq
        %v2286 = vshrl.u32 %v2285, 7
        %v2287 = vsub.s32 %v2284, %v2286
        %v2288 = vrot.slane %v2281, %v2287
        %v2289 = vcombine.high %v2288, 0
        %v2292 = vpack.i.b16 %v2288, %v2263
        %v2293 = vshrl.u32 %v2263, 16
        %v2294 = vshrl.u32 %v2288, 16
        %v2295 = vpack.i.b16 %v2294, %v2293
        %v2298 = vpack.i.b16 %v2289, %v2264
        %v2299 = vshrl.u32 %v2264, 16
        %v2300 = vshrl.u32 %v2289, 16
        %v2301 = vpack.i.b16 %v2300, %v2299
        %2302 = vrot.lane.b32.xlu0 %v2133, 96
        %v2303 = vpop.permute.xlu0 %2302
        %2304 = vrot.lane.b32.xlu0 %v2136, 96
        %v2305 = vpop.permute.xlu0 %2304
        %2306 = vrot.lane.b32.xlu0 %v2138, 96
        %v2307 = vpop.permute.xlu0 %2306
        %2308 = vrot.lane.b32.xlu0 %v2140, 96
        %v2309 = vpop.permute.xlu0 %2308
        %v2312 = vunpack.c.l.s4 1983009808
        %v2313 = vunpack.c.0.s8 %v2312
        %v2314 = vlaneseq
        %v2315 = vshrl.u32 %v2314, 7
        %v2316 = vsub.s32 %v2313, %v2315
        %v2317 = vrot.slane %v2303, %v2316
        %v2320 = vunpack.c.l.s4 1983009808
        %v2321 = vunpack.c.0.s8 %v2320
        %v2322 = vlaneseq
        %v2323 = vshrl.u32 %v2322, 7
        %v2324 = vsub.s32 %v2321, %v2323
        %v2325 = vrot.slane %v2307, %v2324
        %v2326 = vcombine.low %v2317, %v2325
        %v2327 = vcombine.high %v2317, %v2325
        %v2329 = vunpack.c.l.s4 1934713408
        %v2330 = vunpack.c.0.s8 %v2329
        %v2331 = vlaneseq
        %v2332 = vshrl.u32 %v2331, 7
        %v2333 = vsub.s32 %v2330, %v2332
        %v2334 = vrot.slane %v2326, %v2333
        %v2336 = vunpack.c.l.s4 1934713408
        %v2337 = vunpack.c.0.s8 %v2336
        %v2338 = vlaneseq
        %v2339 = vshrl.u32 %v2338, 7
        %v2340 = vsub.s32 %v2337, %v2339
        %v2341 = vrot.slane %v2327, %v2340
        %v2342 = vcombine.high %v2334, 0
        %v2343 = vcombine.high %v2341, 0
        %v2346 = vunpack.c.l.s4 1983009808
        %v2347 = vunpack.c.0.s8 %v2346
        %v2348 = vlaneseq
        %v2349 = vshrl.u32 %v2348, 7
        %v2350 = vsub.s32 %v2347, %v2349
        %v2351 = vrot.slane %v2305, %v2350
        %v2354 = vunpack.c.l.s4 1983009808
        %v2355 = vunpack.c.0.s8 %v2354
        %v2356 = vlaneseq
        %v2357 = vshrl.u32 %v2356, 7
        %v2358 = vsub.s32 %v2355, %v2357
        %v2359 = vrot.slane %v2309, %v2358
        %v2360 = vcombine.low %v2351, %v2359
        %v2361 = vcombine.high %v2351, %v2359
        %v2363 = vunpack.c.l.s4 1934713408
        %v2364 = vunpack.c.0.s8 %v2363
        %v2365 = vlaneseq
        %v2366 = vshrl.u32 %v2365, 7
        %v2367 = vsub.s32 %v2364, %v2366
        %v2368 = vrot.slane %v2360, %v2367
        %v2370 = vunpack.c.l.s4 1934713408
        %v2371 = vunpack.c.0.s8 %v2370
        %v2372 = vlaneseq
        %v2373 = vshrl.u32 %v2372, 7
        %v2374 = vsub.s32 %v2371, %v2373
        %v2375 = vrot.slane %v2361, %v2374
        %v2376 = vcombine.high %v2368, 0
        %v2377 = vcombine.high %v2375, 0
        %v2380 = vpack.i.b16 %v2368, %v2334
        %v2382 = vshrl.u32 %v2334, 16
        %v2383 = vshrl.u32 %v2368, 16
        %v2384 = vpack.i.b16 %v2383, %v2382
        %v2388 = vpack.i.b16 %v2376, %v2342
        %v2390 = vshrl.u32 %v2342, 16
        %v2391 = vshrl.u32 %v2376, 16
        %v2392 = vpack.i.b16 %v2391, %v2390
        %v2396 = vpack.i.b16 %v2375, %v2341
        %v2398 = vshrl.u32 %v2341, 16
        %v2399 = vshrl.u32 %v2375, 16
        %v2400 = vpack.i.b16 %v2399, %v2398
        %v2404 = vpack.i.b16 %v2377, %v2343
        %v2406 = vshrl.u32 %v2343, 16
        %v2407 = vshrl.u32 %v2377, 16
        %v2408 = vpack.i.b16 %v2407, %v2406
        %v2410 = vcombine.low %v2380, %v2396
        %v2412 = vunpack.c.l.s4 1983009808
        %v2413 = vunpack.c.0.s8 %v2412
        %v2414 = vlaneseq
        %v2415 = vshrl.u32 %v2414, 7
        %v2416 = vsub.s32 %v2413, %v2415
        %v2417 = vrot.slane %v2410, %v2416
        %v2418 = vcombine.low %v2388, %v2404
        %v2420 = vunpack.c.l.s4 1983009808
        %v2421 = vunpack.c.0.s8 %v2420
        %v2422 = vlaneseq
        %v2423 = vshrl.u32 %v2422, 7
        %v2424 = vsub.s32 %v2421, %v2423
        %v2425 = vrot.slane %v2418, %v2424
        %v2426 = vcombine.low %v2417, %v2425
        %v2428 = vunpack.c.l.s4 1934713408
        %v2429 = vunpack.c.0.s8 %v2428
        %v2430 = vlaneseq
        %v2431 = vshrl.u32 %v2430, 7
        %v2432 = vsub.s32 %v2429, %v2431
        %v2433 = vrot.slane %v2426, %v2432
        %v2434 = vcombine.high %v2433, 0
        %v2435 = vcombine.low %v2384, %v2400
        %v2437 = vunpack.c.l.s4 1983009808
        %v2438 = vunpack.c.0.s8 %v2437
        %v2439 = vlaneseq
        %v2440 = vshrl.u32 %v2439, 7
        %v2441 = vsub.s32 %v2438, %v2440
        %v2442 = vrot.slane %v2435, %v2441
        %v2443 = vcombine.low %v2392, %v2408
        %v2445 = vunpack.c.l.s4 1983009808
        %v2446 = vunpack.c.0.s8 %v2445
        %v2447 = vlaneseq
        %v2448 = vshrl.u32 %v2447, 7
        %v2449 = vsub.s32 %v2446, %v2448
        %v2450 = vrot.slane %v2443, %v2449
        %v2451 = vcombine.low %v2442, %v2450
        %v2453 = vunpack.c.l.s4 1934713408
        %v2454 = vunpack.c.0.s8 %v2453
        %v2455 = vlaneseq
        %v2456 = vshrl.u32 %v2455, 7
        %v2457 = vsub.s32 %v2454, %v2456
        %v2458 = vrot.slane %v2451, %v2457
        %v2459 = vcombine.high %v2458, 0
        %v2462 = vpack.i.b16 %v2458, %v2433
        %v2463 = vshrl.u32 %v2433, 16
        %v2464 = vshrl.u32 %v2458, 16
        %v2465 = vpack.i.b16 %v2464, %v2463
        %v2468 = vpack.i.b16 %v2459, %v2434
        %v2469 = vshrl.u32 %v2434, 16
        %v2470 = vshrl.u32 %v2459, 16
        %v2471 = vpack.i.b16 %v2470, %v2469
        %2472 = vrot.lane.b32.xlu0 %v2133, 64
        %v2473 = vpop.permute.xlu0 %2472
        %2474 = vrot.lane.b32.xlu0 %v2136, 64
        %v2475 = vpop.permute.xlu0 %2474
        %2476 = vrot.lane.b32.xlu0 %v2138, 64
        %v2477 = vpop.permute.xlu0 %2476
        %2478 = vrot.lane.b32.xlu0 %v2140, 64
        %v2479 = vpop.permute.xlu0 %2478
        %v2482 = vunpack.c.l.s4 1983009808
        %v2483 = vunpack.c.0.s8 %v2482
        %v2484 = vlaneseq
        %v2485 = vshrl.u32 %v2484, 7
        %v2486 = vsub.s32 %v2483, %v2485
        %v2487 = vrot.slane %v2473, %v2486
        %v2490 = vunpack.c.l.s4 1983009808
        %v2491 = vunpack.c.0.s8 %v2490
        %v2492 = vlaneseq
        %v2493 = vshrl.u32 %v2492, 7
        %v2494 = vsub.s32 %v2491, %v2493
        %v2495 = vrot.slane %v2477, %v2494
        %v2496 = vcombine.low %v2487, %v2495
        %v2497 = vcombine.high %v2487, %v2495
        %v2499 = vunpack.c.l.s4 1934713408
        %v2500 = vunpack.c.0.s8 %v2499
        %v2501 = vlaneseq
        %v2502 = vshrl.u32 %v2501, 7
        %v2503 = vsub.s32 %v2500, %v2502
        %v2504 = vrot.slane %v2496, %v2503
        %v2506 = vunpack.c.l.s4 1934713408
        %v2507 = vunpack.c.0.s8 %v2506
        %v2508 = vlaneseq
        %v2509 = vshrl.u32 %v2508, 7
        %v2510 = vsub.s32 %v2507, %v2509
        %v2511 = vrot.slane %v2497, %v2510
        %v2512 = vcombine.high %v2504, 0
        %v2513 = vcombine.high %v2511, 0
        %v2516 = vunpack.c.l.s4 1983009808
        %v2517 = vunpack.c.0.s8 %v2516
        %v2518 = vlaneseq
        %v2519 = vshrl.u32 %v2518, 7
        %v2520 = vsub.s32 %v2517, %v2519
        %v2521 = vrot.slane %v2475, %v2520
        %v2524 = vunpack.c.l.s4 1983009808
        %v2525 = vunpack.c.0.s8 %v2524
        %v2526 = vlaneseq
        %v2527 = vshrl.u32 %v2526, 7
        %v2528 = vsub.s32 %v2525, %v2527
        %v2529 = vrot.slane %v2479, %v2528
        %v2530 = vcombine.low %v2521, %v2529
        %v2531 = vcombine.high %v2521, %v2529
        %v2533 = vunpack.c.l.s4 1934713408
        %v2534 = vunpack.c.0.s8 %v2533
        %v2535 = vlaneseq
        %v2536 = vshrl.u32 %v2535, 7
        %v2537 = vsub.s32 %v2534, %v2536
        %v2538 = vrot.slane %v2530, %v2537
        %v2540 = vunpack.c.l.s4 1934713408
        %v2541 = vunpack.c.0.s8 %v2540
        %v2542 = vlaneseq
        %v2543 = vshrl.u32 %v2542, 7
        %v2544 = vsub.s32 %v2541, %v2543
        %v2545 = vrot.slane %v2531, %v2544
        %v2546 = vcombine.high %v2538, 0
        %v2547 = vcombine.high %v2545, 0
        %v2550 = vpack.i.b16 %v2538, %v2504
        %v2552 = vshrl.u32 %v2504, 16
        %v2553 = vshrl.u32 %v2538, 16
        %v2554 = vpack.i.b16 %v2553, %v2552
        %v2558 = vpack.i.b16 %v2546, %v2512
        %v2560 = vshrl.u32 %v2512, 16
        %v2561 = vshrl.u32 %v2546, 16
        %v2562 = vpack.i.b16 %v2561, %v2560
        %v2566 = vpack.i.b16 %v2545, %v2511
        %v2568 = vshrl.u32 %v2511, 16
        %v2569 = vshrl.u32 %v2545, 16
        %v2570 = vpack.i.b16 %v2569, %v2568
        %v2574 = vpack.i.b16 %v2547, %v2513
        %v2576 = vshrl.u32 %v2513, 16
        %v2577 = vshrl.u32 %v2547, 16
        %v2578 = vpack.i.b16 %v2577, %v2576
        %v2580 = vcombine.low %v2550, %v2566
        %v2582 = vunpack.c.l.s4 1983009808
        %v2583 = vunpack.c.0.s8 %v2582
        %v2584 = vlaneseq
        %v2585 = vshrl.u32 %v2584, 7
        %v2586 = vsub.s32 %v2583, %v2585
        %v2587 = vrot.slane %v2580, %v2586
        %v2588 = vcombine.low %v2558, %v2574
        %v2590 = vunpack.c.l.s4 1983009808
        %v2591 = vunpack.c.0.s8 %v2590
        %v2592 = vlaneseq
        %v2593 = vshrl.u32 %v2592, 7
        %v2594 = vsub.s32 %v2591, %v2593
        %v2595 = vrot.slane %v2588, %v2594
        %v2596 = vcombine.low %v2587, %v2595
        %v2598 = vunpack.c.l.s4 1934713408
        %v2599 = vunpack.c.0.s8 %v2598
        %v2600 = vlaneseq
        %v2601 = vshrl.u32 %v2600, 7
        %v2602 = vsub.s32 %v2599, %v2601
        %v2603 = vrot.slane %v2596, %v2602
        %v2604 = vcombine.high %v2603, 0
        %v2605 = vcombine.low %v2554, %v2570
        %v2607 = vunpack.c.l.s4 1983009808
        %v2608 = vunpack.c.0.s8 %v2607
        %v2609 = vlaneseq
        %v2610 = vshrl.u32 %v2609, 7
        %v2611 = vsub.s32 %v2608, %v2610
        %v2612 = vrot.slane %v2605, %v2611
        %v2613 = vcombine.low %v2562, %v2578
        %v2615 = vunpack.c.l.s4 1983009808
        %v2616 = vunpack.c.0.s8 %v2615
        %v2617 = vlaneseq
        %v2618 = vshrl.u32 %v2617, 7
        %v2619 = vsub.s32 %v2616, %v2618
        %v2620 = vrot.slane %v2613, %v2619
        %v2621 = vcombine.low %v2612, %v2620
        %v2623 = vunpack.c.l.s4 1934713408
        %v2624 = vunpack.c.0.s8 %v2623
        %v2625 = vlaneseq
        %v2626 = vshrl.u32 %v2625, 7
        %v2627 = vsub.s32 %v2624, %v2626
        %v2628 = vrot.slane %v2621, %v2627
        %v2629 = vcombine.high %v2628, 0
        %v2632 = vpack.i.b16 %v2628, %v2603
        %v2633 = vshrl.u32 %v2603, 16
        %v2634 = vshrl.u32 %v2628, 16
        %v2635 = vpack.i.b16 %v2634, %v2633
        %v2638 = vpack.i.b16 %v2629, %v2604
        %v2639 = vshrl.u32 %v2604, 16
        %v2640 = vshrl.u32 %v2629, 16
        %v2641 = vpack.i.b16 %v2640, %v2639
        %v2643 = vsel %vm1202, %v2292, 0
        %v2646 = vsel %vm1202, %v2462, 0
        %2648 = vmatprep.subr.bf16.mxu0 0
        %2649 = vmatpush1.bf16.xpose.msra.mxu0 %v2646
        %2650 = vmatprep.subr.bf16.mxu0 0
        %2651 = vmatpush1.bf16.xpose.msra.mxu0 0
        %2652 = vmatprep.subr.bf16.mxu0 0
        %2653 = vmatpush1.bf16.xpose.msra.mxu0 0
        %2654 = vmatprep.subr.bf16.mxu0 0
        %2655 = vmatpush1.bf16.xpose.msra.mxu0 0
        %2656 = vmatprep.subr.bf16.mxu0 0
        %2657 = vmatpush1.bf16.xpose.msra.mxu0 0
        %2658 = vmatprep.subr.bf16.mxu0 0
        %2659 = vmatpush1.bf16.xpose.msra.mxu0 0
        %2660 = vmatprep.subr.bf16.mxu0 0
        %2661 = vmatpush1.bf16.xpose.msra.mxu0 0
        %2662 = vmatprep.subr.bf16.mxu0 0
        %2663 = vmatpush1.bf16.xpose.msra.mxu0 0
        %2664 = vmatprep.subr.bf16.mxu0 0
        %2665 = vmatpush1.bf16.xpose.msra.mxu0 0
        %2666 = vmatprep.subr.bf16.mxu0 0
        %2667 = vmatpush1.bf16.xpose.msra.mxu0 0
        %2668 = vmatprep.subr.bf16.mxu0 0
        %2669 = vmatpush1.bf16.xpose.msra.mxu0 0
        %2670 = vmatprep.subr.bf16.mxu0 0
        %2671 = vmatpush1.bf16.xpose.msra.mxu0 0
        %2672 = vmatprep.subr.bf16.mxu0 0
        %2673 = vmatpush1.bf16.xpose.msra.mxu0 0
        %2674 = vmatprep.subr.bf16.mxu0 0
        %2675 = vmatpush1.bf16.xpose.msra.mxu0 0
        %2676 = vmatprep.subr.bf16.mxu0 0
        %2677 = vmatpush1.bf16.xpose.msra.mxu0 0
        %2678 = vmatprep.subr.bf16.mxu0 0
        %2679 = vmatpush1.bf16.xpose.msra.mxu0 0
        %2680 = vmatprep.mubr.bf16.mxu0 0
        %2681 = vmatmul.mubr.bf16.gmra.mrb[0].mxu0 %v2643
        %v2682 = vpop.f32.mrb[0].mxu0
        %v2683 = vadd.f32 %v1200, %v2682
        %v2684 = vpop.f32.mrb[0].mxu0
        %v2685 = vpop.f32.mrb[0].mxu0
        %v2686 = vpop.f32.mrb[0].mxu0
        %2687 = vdwg.mxu0
        %v2689 = vsel %vm1202, %v2295, 0
        %v2692 = vsel %vm1202, %v2465, 0
        %2694 = vmatprep.subr.bf16.mxu0 0
        %2695 = vmatpush1.bf16.xpose.msra.mxu0 %v2692
        %2696 = vmatprep.subr.bf16.mxu0 0
        %2697 = vmatpush1.bf16.xpose.msra.mxu0 0
        %2698 = vmatprep.subr.bf16.mxu0 0
        %2699 = vmatpush1.bf16.xpose.msra.mxu0 0
        %2700 = vmatprep.subr.bf16.mxu0 0
        %2701 = vmatpush1.bf16.xpose.msra.mxu0 0
        %2702 = vmatprep.subr.bf16.mxu0 0
        %2703 = vmatpush1.bf16.xpose.msra.mxu0 0
        %2704 = vmatprep.subr.bf16.mxu0 0
        %2705 = vmatpush1.bf16.xpose.msra.mxu0 0
        %2706 = vmatprep.subr.bf16.mxu0 0
        %2707 = vmatpush1.bf16.xpose.msra.mxu0 0
        %2708 = vmatprep.subr.bf16.mxu0 0
        %2709 = vmatpush1.bf16.xpose.msra.mxu0 0
        %2710 = vmatprep.subr.bf16.mxu0 0
        %2711 = vmatpush1.bf16.xpose.msra.mxu0 0
        %2712 = vmatprep.subr.bf16.mxu0 0
        %2713 = vmatpush1.bf16.xpose.msra.mxu0 0
        %2714 = vmatprep.subr.bf16.mxu0 0
        %2715 = vmatpush1.bf16.xpose.msra.mxu0 0
        %2716 = vmatprep.subr.bf16.mxu0 0
        %2717 = vmatpush1.bf16.xpose.msra.mxu0 0
        %2718 = vmatprep.subr.bf16.mxu0 0
        %2719 = vmatpush1.bf16.xpose.msra.mxu0 0
        %2720 = vmatprep.subr.bf16.mxu0 0
        %2721 = vmatpush1.bf16.xpose.msra.mxu0 0
        %2722 = vmatprep.subr.bf16.mxu0 0
        %2723 = vmatpush1.bf16.xpose.msra.mxu0 0
        %2724 = vmatprep.subr.bf16.mxu0 0
        %2725 = vmatpush1.bf16.xpose.msra.mxu0 0
        %2726 = vmatprep.mubr.bf16.mxu0 0
        %2727 = vmatmul.mubr.bf16.gmra.mrb[0].mxu0 %v2689
        %v2728 = vpop.f32.mrb[0].mxu0
        %v2729 = vadd.f32 %v1200, %v2728
        %v2730 = vpop.f32.mrb[0].mxu0
        %v2731 = vpop.f32.mrb[0].mxu0
        %v2732 = vpop.f32.mrb[0].mxu0
        %2733 = vdwg.mxu0
        %v2735 = vsel %vm1202, %v2298, 0
        %v2738 = vsel %vm1202, %v2468, 0
        %2740 = vmatprep.subr.bf16.mxu0 0
        %2741 = vmatpush1.bf16.xpose.msra.mxu0 %v2738
        %2742 = vmatprep.subr.bf16.mxu0 0
        %2743 = vmatpush1.bf16.xpose.msra.mxu0 0
        %2744 = vmatprep.subr.bf16.mxu0 0
        %2745 = vmatpush1.bf16.xpose.msra.mxu0 0
        %2746 = vmatprep.subr.bf16.mxu0 0
        %2747 = vmatpush1.bf16.xpose.msra.mxu0 0
        %2748 = vmatprep.subr.bf16.mxu0 0
        %2749 = vmatpush1.bf16.xpose.msra.mxu0 0
        %2750 = vmatprep.subr.bf16.mxu0 0
        %2751 = vmatpush1.bf16.xpose.msra.mxu0 0
        %2752 = vmatprep.subr.bf16.mxu0 0
        %2753 = vmatpush1.bf16.xpose.msra.mxu0 0
        %2754 = vmatprep.subr.bf16.mxu0 0
        %2755 = vmatpush1.bf16.xpose.msra.mxu0 0
        %2756 = vmatprep.subr.bf16.mxu0 0
        %2757 = vmatpush1.bf16.xpose.msra.mxu0 0
        %2758 = vmatprep.subr.bf16.mxu0 0
        %2759 = vmatpush1.bf16.xpose.msra.mxu0 0
        %2760 = vmatprep.subr.bf16.mxu0 0
        %2761 = vmatpush1.bf16.xpose.msra.mxu0 0
        %2762 = vmatprep.subr.bf16.mxu0 0
        %2763 = vmatpush1.bf16.xpose.msra.mxu0 0
        %2764 = vmatprep.subr.bf16.mxu0 0
        %2765 = vmatpush1.bf16.xpose.msra.mxu0 0
        %2766 = vmatprep.subr.bf16.mxu0 0
        %2767 = vmatpush1.bf16.xpose.msra.mxu0 0
        %2768 = vmatprep.subr.bf16.mxu0 0
        %2769 = vmatpush1.bf16.xpose.msra.mxu0 0
        %2770 = vmatprep.subr.bf16.mxu0 0
        %2771 = vmatpush1.bf16.xpose.msra.mxu0 0
        %2772 = vmatprep.mubr.bf16.mxu0 0
        %2773 = vmatmul.mubr.bf16.gmra.mrb[0].mxu0 %v2735
        %v2774 = vpop.f32.mrb[0].mxu0
        %v2775 = vadd.f32 %v1200, %v2774
        %v2776 = vpop.f32.mrb[0].mxu0
        %v2777 = vpop.f32.mrb[0].mxu0
        %v2778 = vpop.f32.mrb[0].mxu0
        %2779 = vdwg.mxu0
        %v2781 = vsel %vm1202, %v2301, 0
        %v2784 = vsel %vm1202, %v2471, 0
        %2786 = vmatprep.subr.bf16.mxu0 0
        %2787 = vmatpush1.bf16.xpose.msra.mxu0 %v2784
        %2788 = vmatprep.subr.bf16.mxu0 0
        %2789 = vmatpush1.bf16.xpose.msra.mxu0 0
        %2790 = vmatprep.subr.bf16.mxu0 0
        %2791 = vmatpush1.bf16.xpose.msra.mxu0 0
        %2792 = vmatprep.subr.bf16.mxu0 0
        %2793 = vmatpush1.bf16.xpose.msra.mxu0 0
        %2794 = vmatprep.subr.bf16.mxu0 0
        %2795 = vmatpush1.bf16.xpose.msra.mxu0 0
        %2796 = vmatprep.subr.bf16.mxu0 0
        %2797 = vmatpush1.bf16.xpose.msra.mxu0 0
        %2798 = vmatprep.subr.bf16.mxu0 0
        %2799 = vmatpush1.bf16.xpose.msra.mxu0 0
        %2800 = vmatprep.subr.bf16.mxu0 0
        %2801 = vmatpush1.bf16.xpose.msra.mxu0 0
        %2802 = vmatprep.subr.bf16.mxu0 0
        %2803 = vmatpush1.bf16.xpose.msra.mxu0 0
        %2804 = vmatprep.subr.bf16.mxu0 0
        %2805 = vmatpush1.bf16.xpose.msra.mxu0 0
        %2806 = vmatprep.subr.bf16.mxu0 0
        %2807 = vmatpush1.bf16.xpose.msra.mxu0 0
        %2808 = vmatprep.subr.bf16.mxu0 0
        %2809 = vmatpush1.bf16.xpose.msra.mxu0 0
        %2810 = vmatprep.subr.bf16.mxu0 0
        %2811 = vmatpush1.bf16.xpose.msra.mxu0 0
        %2812 = vmatprep.subr.bf16.mxu0 0
        %2813 = vmatpush1.bf16.xpose.msra.mxu0 0
        %2814 = vmatprep.subr.bf16.mxu0 0
        %2815 = vmatpush1.bf16.xpose.msra.mxu0 0
        %2816 = vmatprep.subr.bf16.mxu0 0
        %2817 = vmatpush1.bf16.xpose.msra.mxu0 0
        %2818 = vmatprep.mubr.bf16.mxu0 0
        %2819 = vmatmul.mubr.bf16.gmra.mrb[0].mxu0 %v2781
        %v2820 = vpop.f32.mrb[0].mxu0
        %v2821 = vadd.f32 %v1200, %v2820
        %v2822 = vpop.f32.mrb[0].mxu0
        %v2823 = vpop.f32.mrb[0].mxu0
        %v2824 = vpop.f32.mrb[0].mxu0
        %2825 = vdwg.mxu0
        %v2826 = vsel %vm1202, %v2683, -inf
        %2827 = vmax.xlane.f32.xlu0 %v2826
        %v2828 = vpop.xlane.xlu0 %2827
        %v2829 = vsel %vm1202, %v2729, -inf
        %2830 = vmax.xlane.f32.xlu0 %v2829
        %v2831 = vpop.xlane.xlu0 %2830
        %v2832 = vsel %vm1202, %v2775, -inf
        %2833 = vmax.xlane.f32.xlu0 %v2832
        %v2834 = vpop.xlane.xlu0 %2833
        %v2835 = vsel %vm1202, %v2821, -inf
        %2836 = vmax.xlane.f32.xlu0 %v2835
        %v2837 = vpop.xlane.xlu0 %2836
        %v2838 = vsub.f32 %v2683, %v2828
        %v2839 = vsub.f32 %v2729, %v2831
        %v2840 = vsub.f32 %v2775, %v2834
        %v2841 = vsub.f32 %v2821, %v2837
        %v2842 = vmul.f32 %v2838, 1.442695
        %v2843 = vpow.pop %v2842
        %v2844 = vmul.f32 %v2839, 1.442695
        %v2845 = vpow.pop %v2844
        %v2846 = vmul.f32 %v2840, 1.442695
        %v2847 = vpow.pop %v2846
        %v2848 = vmul.f32 %v2841, 1.442695
        %v2849 = vpow.pop %v2848
        %v2850 = vsel %vm1202, %v2843, 0.0
        %2851 = vadd.xlane.f32.xlu0 %v2850
        %v2852 = vpop.xlane.xlu0 %2851
        %v2853 = vsel %vm1202, %v2845, 0.0
        %2854 = vadd.xlane.f32.xlu0 %v2853
        %v2855 = vpop.xlane.xlu0 %2854
        %v2856 = vsel %vm1202, %v2847, 0.0
        %2857 = vadd.xlane.f32.xlu0 %v2856
        %v2858 = vpop.xlane.xlu0 %2857
        %v2859 = vsel %vm1202, %v2849, 0.0
        %2860 = vadd.xlane.f32.xlu0 %v2859
        %v2861 = vpop.xlane.xlu0 %2860
        %v2862 = vrcp.pop %v2852
        %v2863 = vmul.f32 %v2843, %v2862
        %v2864 = vrcp.pop %v2855
        %v2865 = vmul.f32 %v2845, %v2864
        %v2866 = vrcp.pop %v2858
        %v2867 = vmul.f32 %v2847, %v2866
        %v2868 = vrcp.pop %v2861
        %v2869 = vmul.f32 %v2849, %v2868
        %v2870 = vpack.c.bf16 %v2863, %v2863
        %v2871 = vpack.c.bf16 %v2865, %v2865
        %v2872 = vpack.c.bf16 %v2867, %v2867
        %v2873 = vpack.c.bf16 %v2869, %v2869
        %v2875 = vsel %vm1202, %v2870, 0
        %v2878 = vsel %vm1438, %v2632, 0
        %2880 = vmatprep.subr.bf16.mxu0 0
        %2881 = vmatpush1.bf16.msra.mxu0 %v2878
        %2882 = vmatprep.subr.bf16.mxu0 0
        %2883 = vmatpush1.bf16.msra.mxu0 0
        %2884 = vmatprep.subr.bf16.mxu0 0
        %2885 = vmatpush1.bf16.msra.mxu0 0
        %2886 = vmatprep.subr.bf16.mxu0 0
        %2887 = vmatpush1.bf16.msra.mxu0 0
        %2888 = vmatprep.subr.bf16.mxu0 0
        %2889 = vmatpush1.bf16.msra.mxu0 0
        %2890 = vmatprep.subr.bf16.mxu0 0
        %2891 = vmatpush1.bf16.msra.mxu0 0
        %2892 = vmatprep.subr.bf16.mxu0 0
        %2893 = vmatpush1.bf16.msra.mxu0 0
        %2894 = vmatprep.subr.bf16.mxu0 0
        %2895 = vmatpush1.bf16.msra.mxu0 0
        %2896 = vmatprep.subr.bf16.mxu0 0
        %2897 = vmatpush1.bf16.msra.mxu0 0
        %2898 = vmatprep.subr.bf16.mxu0 0
        %2899 = vmatpush1.bf16.msra.mxu0 0
        %2900 = vmatprep.subr.bf16.mxu0 0
        %2901 = vmatpush1.bf16.msra.mxu0 0
        %2902 = vmatprep.subr.bf16.mxu0 0
        %2903 = vmatpush1.bf16.msra.mxu0 0
        %2904 = vmatprep.subr.bf16.mxu0 0
        %2905 = vmatpush1.bf16.msra.mxu0 0
        %2906 = vmatprep.subr.bf16.mxu0 0
        %2907 = vmatpush1.bf16.msra.mxu0 0
        %2908 = vmatprep.subr.bf16.mxu0 0
        %2909 = vmatpush1.bf16.msra.mxu0 0
        %2910 = vmatprep.subr.bf16.mxu0 0
        %2911 = vmatpush1.bf16.msra.mxu0 0
        %2912 = vmatprep.mubr.bf16.mxu0 0
        %2913 = vmatmul.mubr.bf16.gmra.mrb[0].mxu0 %v2875
        %v2914 = vpop.f32.mrb[0].mxu0
        %v2915 = vadd.f32 0.0, %v2914
        %v2916 = vpop.f32.mrb[0].mxu0
        %v2917 = vpop.f32.mrb[0].mxu0
        %v2918 = vpop.f32.mrb[0].mxu0
        %2919 = vdwg.mxu0
        %v2921 = vsel %vm1202, %v2871, 0
        %v2924 = vsel %vm1438, %v2635, 0
        %2926 = vmatprep.subr.bf16.mxu0 0
        %2927 = vmatpush1.bf16.msra.mxu0 %v2924
        %2928 = vmatprep.subr.bf16.mxu0 0
        %2929 = vmatpush1.bf16.msra.mxu0 0
        %2930 = vmatprep.subr.bf16.mxu0 0
        %2931 = vmatpush1.bf16.msra.mxu0 0
        %2932 = vmatprep.subr.bf16.mxu0 0
        %2933 = vmatpush1.bf16.msra.mxu0 0
        %2934 = vmatprep.subr.bf16.mxu0 0
        %2935 = vmatpush1.bf16.msra.mxu0 0
        %2936 = vmatprep.subr.bf16.mxu0 0
        %2937 = vmatpush1.bf16.msra.mxu0 0
        %2938 = vmatprep.subr.bf16.mxu0 0
        %2939 = vmatpush1.bf16.msra.mxu0 0
        %2940 = vmatprep.subr.bf16.mxu0 0
        %2941 = vmatpush1.bf16.msra.mxu0 0
        %2942 = vmatprep.subr.bf16.mxu0 0
        %2943 = vmatpush1.bf16.msra.mxu0 0
        %2944 = vmatprep.subr.bf16.mxu0 0
        %2945 = vmatpush1.bf16.msra.mxu0 0
        %2946 = vmatprep.subr.bf16.mxu0 0
        %2947 = vmatpush1.bf16.msra.mxu0 0
        %2948 = vmatprep.subr.bf16.mxu0 0
        %2949 = vmatpush1.bf16.msra.mxu0 0
        %2950 = vmatprep.subr.bf16.mxu0 0
        %2951 = vmatpush1.bf16.msra.mxu0 0
        %2952 = vmatprep.subr.bf16.mxu0 0
        %2953 = vmatpush1.bf16.msra.mxu0 0
        %2954 = vmatprep.subr.bf16.mxu0 0
        %2955 = vmatpush1.bf16.msra.mxu0 0
        %2956 = vmatprep.subr.bf16.mxu0 0
        %2957 = vmatpush1.bf16.msra.mxu0 0
        %2958 = vmatprep.mubr.bf16.mxu0 0
        %2959 = vmatmul.mubr.bf16.gmra.mrb[0].mxu0 %v2921
        %v2960 = vpop.f32.mrb[0].mxu0
        %v2961 = vadd.f32 0.0, %v2960
        %v2962 = vpop.f32.mrb[0].mxu0
        %v2963 = vpop.f32.mrb[0].mxu0
        %v2964 = vpop.f32.mrb[0].mxu0
        %2965 = vdwg.mxu0
        %v2967 = vsel %vm1202, %v2872, 0
        %v2970 = vsel %vm1438, %v2638, 0
        %2972 = vmatprep.subr.bf16.mxu0 0
        %2973 = vmatpush1.bf16.msra.mxu0 %v2970
        %2974 = vmatprep.subr.bf16.mxu0 0
        %2975 = vmatpush1.bf16.msra.mxu0 0
        %2976 = vmatprep.subr.bf16.mxu0 0
        %2977 = vmatpush1.bf16.msra.mxu0 0
        %2978 = vmatprep.subr.bf16.mxu0 0
        %2979 = vmatpush1.bf16.msra.mxu0 0
        %2980 = vmatprep.subr.bf16.mxu0 0
        %2981 = vmatpush1.bf16.msra.mxu0 0
        %2982 = vmatprep.subr.bf16.mxu0 0
        %2983 = vmatpush1.bf16.msra.mxu0 0
        %2984 = vmatprep.subr.bf16.mxu0 0
        %2985 = vmatpush1.bf16.msra.mxu0 0
        %2986 = vmatprep.subr.bf16.mxu0 0
        %2987 = vmatpush1.bf16.msra.mxu0 0
        %2988 = vmatprep.subr.bf16.mxu0 0
        %2989 = vmatpush1.bf16.msra.mxu0 0
        %2990 = vmatprep.subr.bf16.mxu0 0
        %2991 = vmatpush1.bf16.msra.mxu0 0
        %2992 = vmatprep.subr.bf16.mxu0 0
        %2993 = vmatpush1.bf16.msra.mxu0 0
        %2994 = vmatprep.subr.bf16.mxu0 0
        %2995 = vmatpush1.bf16.msra.mxu0 0
        %2996 = vmatprep.subr.bf16.mxu0 0
        %2997 = vmatpush1.bf16.msra.mxu0 0
        %2998 = vmatprep.subr.bf16.mxu0 0
        %2999 = vmatpush1.bf16.msra.mxu0 0
        %3000 = vmatprep.subr.bf16.mxu0 0
        %3001 = vmatpush1.bf16.msra.mxu0 0
        %3002 = vmatprep.subr.bf16.mxu0 0
        %3003 = vmatpush1.bf16.msra.mxu0 0
        %3004 = vmatprep.mubr.bf16.mxu0 0
        %3005 = vmatmul.mubr.bf16.gmra.mrb[0].mxu0 %v2967
        %v3006 = vpop.f32.mrb[0].mxu0
        %v3007 = vadd.f32 0.0, %v3006
        %v3008 = vpop.f32.mrb[0].mxu0
        %v3009 = vpop.f32.mrb[0].mxu0
        %v3010 = vpop.f32.mrb[0].mxu0
        %3011 = vdwg.mxu0
        %v3013 = vsel %vm1202, %v2873, 0
        %v3016 = vsel %vm1438, %v2641, 0
        %3018 = vmatprep.subr.bf16.mxu0 0
        %3019 = vmatpush1.bf16.msra.mxu0 %v3016
        %3020 = vmatprep.subr.bf16.mxu0 0
        %3021 = vmatpush1.bf16.msra.mxu0 0
        %3022 = vmatprep.subr.bf16.mxu0 0
        %3023 = vmatpush1.bf16.msra.mxu0 0
        %3024 = vmatprep.subr.bf16.mxu0 0
        %3025 = vmatpush1.bf16.msra.mxu0 0
        %3026 = vmatprep.subr.bf16.mxu0 0
        %3027 = vmatpush1.bf16.msra.mxu0 0
        %3028 = vmatprep.subr.bf16.mxu0 0
        %3029 = vmatpush1.bf16.msra.mxu0 0
        %3030 = vmatprep.subr.bf16.mxu0 0
        %3031 = vmatpush1.bf16.msra.mxu0 0
        %3032 = vmatprep.subr.bf16.mxu0 0
        %3033 = vmatpush1.bf16.msra.mxu0 0
        %3034 = vmatprep.subr.bf16.mxu0 0
        %3035 = vmatpush1.bf16.msra.mxu0 0
        %3036 = vmatprep.subr.bf16.mxu0 0
        %3037 = vmatpush1.bf16.msra.mxu0 0
        %3038 = vmatprep.subr.bf16.mxu0 0
        %3039 = vmatpush1.bf16.msra.mxu0 0
        %3040 = vmatprep.subr.bf16.mxu0 0
        %3041 = vmatpush1.bf16.msra.mxu0 0
        %3042 = vmatprep.subr.bf16.mxu0 0
        %3043 = vmatpush1.bf16.msra.mxu0 0
        %3044 = vmatprep.subr.bf16.mxu0 0
        %3045 = vmatpush1.bf16.msra.mxu0 0
        %3046 = vmatprep.subr.bf16.mxu0 0
        %3047 = vmatpush1.bf16.msra.mxu0 0
        %3048 = vmatprep.subr.bf16.mxu0 0
        %3049 = vmatpush1.bf16.msra.mxu0 0
        %3050 = vmatprep.mubr.bf16.mxu0 0
        %3051 = vmatmul.mubr.bf16.gmra.mrb[0].mxu0 %v3013
        %v3052 = vpop.f32.mrb[0].mxu0
        %v3053 = vadd.f32 0.0, %v3052
        %v3054 = vpop.f32.mrb[0].mxu0
        %v3055 = vpop.f32.mrb[0].mxu0
        %v3056 = vpop.f32.mrb[0].mxu0
        %3057 = vdwg.mxu0
        %v3058 = vcombine.low %v2915, %v3007
        %v3059 = vcombine.high %v2915, %v3007
        %v3061 = vunpack.c.l.s4 1983009808
        %v3062 = vunpack.c.0.s8 %v3061
        %v3063 = vlaneseq
        %v3064 = vshrl.u32 %v3063, 7
        %v3065 = vsub.s32 %v3062, %v3064
        %v3066 = vrot.slane %v3058, %v3065
        %v3068 = vunpack.c.l.s4 1983009808
        %v3069 = vunpack.c.0.s8 %v3068
        %v3070 = vlaneseq
        %v3071 = vshrl.u32 %v3070, 7
        %v3072 = vsub.s32 %v3069, %v3071
        %v3073 = vrot.slane %v3059, %v3072
        %v3074 = vcombine.low %v2961, %v3053
        %v3075 = vcombine.high %v2961, %v3053
        %v3077 = vunpack.c.l.s4 1983009808
        %v3078 = vunpack.c.0.s8 %v3077
        %v3079 = vlaneseq
        %v3080 = vshrl.u32 %v3079, 7
        %v3081 = vsub.s32 %v3078, %v3080
        %v3082 = vrot.slane %v3074, %v3081
        %v3084 = vunpack.c.l.s4 1983009808
        %v3085 = vunpack.c.0.s8 %v3084
        %v3086 = vlaneseq
        %v3087 = vshrl.u32 %v3086, 7
        %v3088 = vsub.s32 %v3085, %v3087
        %v3089 = vrot.slane %v3075, %v3088
        %v3090 = vcombine.low %v3066, %v3082
        %v3091 = vcombine.high %v3066, %v3082
        %v3093 = vunpack.c.l.s4 1934713408
        %v3094 = vunpack.c.0.s8 %v3093
        %v3095 = vlaneseq
        %v3096 = vshrl.u32 %v3095, 7
        %v3097 = vsub.s32 %v3094, %v3096
        %v3098 = vrot.slane %v3090, %v3097
        %v3100 = vunpack.c.l.s4 1934713408
        %v3101 = vunpack.c.0.s8 %v3100
        %v3102 = vlaneseq
        %v3103 = vshrl.u32 %v3102, 7
        %v3104 = vsub.s32 %v3101, %v3103
        %v3105 = vrot.slane %v3091, %v3104
        %v3106 = vcombine.low %v3073, %v3089
        %v3107 = vcombine.high %v3073, %v3089
        %v3109 = vunpack.c.l.s4 1934713408
        %v3110 = vunpack.c.0.s8 %v3109
        %v3111 = vlaneseq
        %v3112 = vshrl.u32 %v3111, 7
        %v3113 = vsub.s32 %v3110, %v3112
        %v3114 = vrot.slane %v3106, %v3113
        %v3116 = vunpack.c.l.s4 1934713408
        %v3117 = vunpack.c.0.s8 %v3116
        %v3118 = vlaneseq
        %v3119 = vshrl.u32 %v3118, 7
        %v3120 = vsub.s32 %v3117, %v3119
        %v3121 = vrot.slane %v3107, %v3120
        %v3122 = vcombine.high %v3098, 0.0
        %v3123 = vcombine.high %v3105, 0.0
        %v3124 = vcombine.high %v3114, 0.0
        %v3125 = vcombine.high %v3121, 0.0
        %v3126 = vcombine.low %v3098, %v3105
        %v3128 = vunpack.c.l.s4 1983009808
        %v3129 = vunpack.c.0.s8 %v3128
        %v3130 = vlaneseq
        %v3131 = vshrl.u32 %v3130, 7
        %v3132 = vsub.s32 %v3129, %v3131
        %v3133 = vrot.slane %v3126, %v3132
        %v3134 = vcombine.low %v3122, %v3123
        %v3136 = vunpack.c.l.s4 1983009808
        %v3137 = vunpack.c.0.s8 %v3136
        %v3138 = vlaneseq
        %v3139 = vshrl.u32 %v3138, 7
        %v3140 = vsub.s32 %v3137, %v3139
        %v3141 = vrot.slane %v3134, %v3140
        %v3142 = vcombine.low %v3114, %v3121
        %v3144 = vunpack.c.l.s4 1983009808
        %v3145 = vunpack.c.0.s8 %v3144
        %v3146 = vlaneseq
        %v3147 = vshrl.u32 %v3146, 7
        %v3148 = vsub.s32 %v3145, %v3147
        %v3149 = vrot.slane %v3142, %v3148
        %v3150 = vcombine.low %v3124, %v3125
        %v3152 = vunpack.c.l.s4 1983009808
        %v3153 = vunpack.c.0.s8 %v3152
        %v3154 = vlaneseq
        %v3155 = vshrl.u32 %v3154, 7
        %v3156 = vsub.s32 %v3153, %v3155
        %v3157 = vrot.slane %v3150, %v3156
        %v3158 = vcombine.low %v3133, %v3141
        %v3159 = vcombine.high %v3133, %v3141
        %v3161 = vunpack.c.l.s4 1934713408
        %v3162 = vunpack.c.0.s8 %v3161
        %v3163 = vlaneseq
        %v3164 = vshrl.u32 %v3163, 7
        %v3165 = vsub.s32 %v3162, %v3164
        %v3166 = vrot.slane %v3158, %v3165
        %v3168 = vunpack.c.l.s4 1934713408
        %v3169 = vunpack.c.0.s8 %v3168
        %v3170 = vlaneseq
        %v3171 = vshrl.u32 %v3170, 7
        %v3172 = vsub.s32 %v3169, %v3171
        %v3173 = vrot.slane %v3159, %v3172
        %v3174 = vcombine.low %v3149, %v3157
        %v3175 = vcombine.high %v3149, %v3157
        %v3177 = vunpack.c.l.s4 1934713408
        %v3178 = vunpack.c.0.s8 %v3177
        %v3179 = vlaneseq
        %v3180 = vshrl.u32 %v3179, 7
        %v3181 = vsub.s32 %v3178, %v3180
        %v3182 = vrot.slane %v3174, %v3181
        %v3184 = vunpack.c.l.s4 1934713408
        %v3185 = vunpack.c.0.s8 %v3184
        %v3186 = vlaneseq
        %v3187 = vshrl.u32 %v3186, 7
        %v3188 = vsub.s32 %v3185, %v3187
        %v3189 = vrot.slane %v3175, %v3188
        %v3190 = vcombine.low %v3166, %v3182
        %v3191 = vcombine.high %v3166, %v3182
        %v3192 = vcombine.low %v3173, %v3189
        %v3193 = vcombine.high %v3173, %v3189
        %3195 = vrot.lane.b32.xlu0 %v3191, 8
        %v3196 = vpop.permute.xlu0 %3195
        %3199 = vrot.lane.b32.xlu0 %v3192, 16
        %v3200 = vpop.permute.xlu0 %3199
        %3203 = vrot.lane.b32.xlu0 %v3193, 24
        %v3204 = vpop.permute.xlu0 %3203
        %v3206 = vsel %vm1202, %v3190, %v3196
        %v3207 = vsel %vm1769, %v3206, %v3200
        %v3208 = vsel %vm1771, %v3207, %v3204
        %v3209 = vpack.c.bf16 %v3208, %v3208
        %s3210 = scalar_lea.vmem %s6, 16
        %v3211 = vld [vmem:[%s3210] sm:$0xf]
        %v3212 = vld [vmem:[%s3210 + $0x4] sm:$0xf]
        %v3213 = vld [vmem:[%s3210 + $0x8] sm:$0xf]
        %v3214 = vld [vmem:[%s3210 + $0xc] sm:$0xf]
        %s3215 = scalar_lea.vmem %s7, 1
        %v3216 = vld [vmem:[%s3215] sm:$0x1]
        %v3218 = vlaneseq
        %v3219 = vshrl.u32 %v3218, 7
        %v3220 = vsub.s32 0, %v3219
        %v3221 = vrot.slane %v3216, %v3220
        %v3227 = vunpack.c.l.b16 %v3211
        %v3228 = vunpack.c.l.b16 %v3212
        %v3229 = vunpack.c.l.b16 %v3213
        %v3230 = vunpack.c.l.b16 %v3214
        %v3231 = vpack.c.b16 %v3228, %v3227
        %v3232 = vpack.c.b16 %v3230, %v3229
        %v3236 = vsel %vm588, %v3209, 0
        %3238 = vmatprep.subr.bf16.mxu0 0
        %3239 = vmatpush1.bf16.msra.mxu0 %v3231
        %3240 = vmatprep.subr.bf16.mxu0 0
        %3241 = vmatpush1.bf16.msra.mxu0 %v3232
        %3242 = vmatprep.subr.bf16.mxu0 0
        %3243 = vmatpush1.bf16.msra.mxu0 0
        %3244 = vmatprep.subr.bf16.mxu0 0
        %3245 = vmatpush1.bf16.msra.mxu0 0
        %3246 = vmatprep.subr.bf16.mxu0 0
        %3247 = vmatpush1.bf16.msra.mxu0 0
        %3248 = vmatprep.subr.bf16.mxu0 0
        %3249 = vmatpush1.bf16.msra.mxu0 0
        %3250 = vmatprep.subr.bf16.mxu0 0
        %3251 = vmatpush1.bf16.msra.mxu0 0
        %3252 = vmatprep.subr.bf16.mxu0 0
        %3253 = vmatpush1.bf16.msra.mxu0 0
        %3254 = vmatprep.subr.bf16.mxu0 0
        %3255 = vmatpush1.bf16.msra.mxu0 0
        %3256 = vmatprep.subr.bf16.mxu0 0
        %3257 = vmatpush1.bf16.msra.mxu0 0
        %3258 = vmatprep.subr.bf16.mxu0 0
        %3259 = vmatpush1.bf16.msra.mxu0 0
        %3260 = vmatprep.subr.bf16.mxu0 0
        %3261 = vmatpush1.bf16.msra.mxu0 0
        %3262 = vmatprep.subr.bf16.mxu0 0
        %3263 = vmatpush1.bf16.msra.mxu0 0
        %3264 = vmatprep.subr.bf16.mxu0 0
        %3265 = vmatpush1.bf16.msra.mxu0 0
        %3266 = vmatprep.subr.bf16.mxu0 0
        %3267 = vmatpush1.bf16.msra.mxu0 0
        %3268 = vmatprep.subr.bf16.mxu0 0
        %3269 = vmatpush1.bf16.msra.mxu0 0
        %3270 = vmatprep.mubr.bf16.mxu0 0
        %3271 = vmatmul.mubr.bf16.gmra.mrb[0].mxu0 %v3236
        %v3272 = vpop.f32.mrb[0].mxu0
        %v3273 = vadd.f32 %v3221, %v3272
        %v3274 = vpop.f32.mrb[0].mxu0
        %v3275 = vpop.f32.mrb[0].mxu0
        %v3276 = vpop.f32.mrb[0].mxu0
        %3277 = vdwg.mxu0
        %v3278 = vadd.f32 %v3273, %v2063
        %s3279 = scalar_lea.vmem %s8, 1
        %v3280 = vld [vmem:[%s3279] sm:$0x1]
        %s3281 = scalar_lea.vmem %s9, 1
        %v3282 = vld [vmem:[%s3281] sm:$0x1]
        %v3283 = vsel %vm588, %v3278, 0.0
        %3284 = vadd.xlane.f32.xlu0 %v3283
        %v3285 = vpop.xlane.xlu0 %3284
        %v3286 = vmul.f32 %v3285, %v592
        %v3287 = vmul.f32 %v3278, %v3278
        %v3288 = vsel %vm588, %v3287, 0.0
        %3289 = vadd.xlane.f32.xlu0 %v3288
        %v3290 = vpop.xlane.xlu0 %3289
        %v3291 = vmul.f32 %v3290, %v592
        %v3292 = vmul.f32 %v3286, %v3286
        %v3293 = vsub.f32 %v3291, %v3292
        %v3294 = vsub.f32 %v3278, %v3286
        %v3295 = vadd.f32 %v3293, 1e-05
        %v3296 = vrsqrt.pop %v3295
        %v3297 = vmul.f32 %v3294, %v3296
        %v3299 = vlaneseq
        %v3300 = vshrl.u32 %v3299, 7
        %v3301 = vsub.s32 0, %v3300
        %v3302 = vrot.slane %v3280, %v3301
        %v3304 = vmul.f32 %v3297, %v3302
        %v3306 = vlaneseq
        %v3307 = vshrl.u32 %v3306, 7
        %v3308 = vsub.s32 0, %v3307
        %v3309 = vrot.slane %v3282, %v3308
        %v3311 = vadd.f32 %v3304, %v3309
        %v3312 = vpack.c.bf16 %v3311, %v3311
        %s3313 = scalar_lea.vmem %s10, 16
        %v3314 = vld [vmem:[%s3313] sm:$0xf]
        %v3315 = vld [vmem:[%s3313 + $0x4] sm:$0xf]
        %v3316 = vld [vmem:[%s3313 + $0x8] sm:$0xf]
        %v3317 = vld [vmem:[%s3313 + $0xc] sm:$0xf]
        %s3318 = scalar_lea.vmem %s11, 1
        %v3319 = vld [vmem:[%s3318] sm:$0x1]
        %v3321 = vlaneseq
        %v3322 = vshrl.u32 %v3321, 7
        %v3323 = vsub.s32 0, %v3322
        %v3324 = vrot.slane %v3319, %v3323
        %v3330 = vunpack.c.l.b16 %v3314
        %v3331 = vunpack.c.l.b16 %v3315
        %v3332 = vunpack.c.l.b16 %v3316
        %v3333 = vunpack.c.l.b16 %v3317
        %v3334 = vpack.c.b16 %v3331, %v3330
        %v3335 = vpack.c.b16 %v3333, %v3332
        %v3339 = vsel %vm588, %v3312, 0
        %3341 = vmatprep.subr.bf16.mxu0 0
        %3342 = vmatpush1.bf16.msra.mxu0 %v3334
        %3343 = vmatprep.subr.bf16.mxu0 0
        %3344 = vmatpush1.bf16.msra.mxu0 %v3335
        %3345 = vmatprep.subr.bf16.mxu0 0
        %3346 = vmatpush1.bf16.msra.mxu0 0
        %3347 = vmatprep.subr.bf16.mxu0 0
        %3348 = vmatpush1.bf16.msra.mxu0 0
        %3349 = vmatprep.subr.bf16.mxu0 0
        %3350 = vmatpush1.bf16.msra.mxu0 0
        %3351 = vmatprep.subr.bf16.mxu0 0
        %3352 = vmatpush1.bf16.msra.mxu0 0
        %3353 = vmatprep.subr.bf16.mxu0 0
        %3354 = vmatpush1.bf16.msra.mxu0 0
        %3355 = vmatprep.subr.bf16.mxu0 0
        %3356 = vmatpush1.bf16.msra.mxu0 0
        %3357 = vmatprep.subr.bf16.mxu0 0
        %3358 = vmatpush1.bf16.msra.mxu0 0
        %3359 = vmatprep.subr.bf16.mxu0 0
        %3360 = vmatpush1.bf16.msra.mxu0 0
        %3361 = vmatprep.subr.bf16.mxu0 0
        %3362 = vmatpush1.bf16.msra.mxu0 0
        %3363 = vmatprep.subr.bf16.mxu0 0
        %3364 = vmatpush1.bf16.msra.mxu0 0
        %3365 = vmatprep.subr.bf16.mxu0 0
        %3366 = vmatpush1.bf16.msra.mxu0 0
        %3367 = vmatprep.subr.bf16.mxu0 0
        %3368 = vmatpush1.bf16.msra.mxu0 0
        %3369 = vmatprep.subr.bf16.mxu0 0
        %3370 = vmatpush1.bf16.msra.mxu0 0
        %3371 = vmatprep.subr.bf16.mxu0 0
        %3372 = vmatpush1.bf16.msra.mxu0 0
        %3373 = vmatprep.mubr.bf16.mxu0 0
        %3374 = vmatmul.mubr.bf16.gmra.mrb[0].mxu0 %v3339
        %v3375 = vpop.f32.mrb[0].mxu0
        %v3376 = vadd.f32 %v3324, %v3375
        %v3377 = vpop.f32.mrb[0].mxu0
        %v3378 = vpop.f32.mrb[0].mxu0
        %v3379 = vpop.f32.mrb[0].mxu0
        %3380 = vdwg.mxu0
        %v3381 = vmul.f32 %v3376, %v3376
        %v3382 = vmul.f32 %v3376, %v3381
        %v3383 = vmul.f32 %v3382, 0.044715
        %v3384 = vadd.f32 %v3376, %v3383
        %v3385 = vmul.f32 %v3384, 0.7978846
        %v3386 = vtanh.pop %v3385
        %v3387 = vadd.f32 %v3386, 1.0
        %v3388 = vmul.f32 %v3387, 0.5
        %v3389 = vmul.f32 %v3376, %v3388
        %v3390 = vpack.c.bf16 %v3389, %v3389
        %s3391 = scalar_lea.vmem %s12, 32
        %v3392 = vld [vmem:[%s3391] sm:$0xf]
        %v3393 = vld [vmem:[%s3391 + $0x4] sm:$0xf]
        %v3394 = vld [vmem:[%s3391 + $0x8] sm:$0xf]
        %v3395 = vld [vmem:[%s3391 + $0xc] sm:$0xf]
        %v3396 = vld [vmem:[%s3391 + $0x10] sm:$0xf]
        %v3397 = vld [vmem:[%s3391 + $0x14] sm:$0xf]
        %v3398 = vld [vmem:[%s3391 + $0x18] sm:$0xf]
        %v3399 = vld [vmem:[%s3391 + $0x1c] sm:$0xf]
        %s3400 = scalar_lea.vmem %s13, 1
        %v3401 = vld [vmem:[%s3400] sm:$0x1]
        %v3403 = vlaneseq
        %v3404 = vshrl.u32 %v3403, 7
        %v3405 = vsub.s32 0, %v3404
        %v3406 = vrot.slane %v3401, %v3405
        %v3416 = vunpack.c.l.b16 %v3392
        %v3417 = vunpack.c.l.b16 %v3393
        %v3418 = vunpack.c.l.b16 %v3394
        %v3419 = vunpack.c.l.b16 %v3395
        %v3420 = vunpack.c.l.b16 %v3396
        %v3421 = vunpack.c.l.b16 %v3397
        %v3422 = vunpack.c.l.b16 %v3398
        %v3423 = vunpack.c.l.b16 %v3399
        %v3424 = vpack.c.b16 %v3417, %v3416
        %v3425 = vpack.c.b16 %v3419, %v3418
        %v3426 = vpack.c.b16 %v3421, %v3420
        %v3427 = vpack.c.b16 %v3423, %v3422
        %v3433 = vsel %vm1988, %v3390, 0
        %3435 = vmatprep.subr.bf16.mxu0 0
        %3436 = vmatpush1.bf16.msra.mxu0 %v3424
        %3437 = vmatprep.subr.bf16.mxu0 0
        %3438 = vmatpush1.bf16.msra.mxu0 %v3425
        %3439 = vmatprep.subr.bf16.mxu0 0
        %3440 = vmatpush1.bf16.msra.mxu0 %v3426
        %3441 = vmatprep.subr.bf16.mxu0 0
        %3442 = vmatpush1.bf16.msra.mxu0 %v3427
        %3443 = vmatprep.subr.bf16.mxu0 0
        %3444 = vmatpush1.bf16.msra.mxu0 0
        %3445 = vmatprep.subr.bf16.mxu0 0
        %3446 = vmatpush1.bf16.msra.mxu0 0
        %3447 = vmatprep.subr.bf16.mxu0 0
        %3448 = vmatpush1.bf16.msra.mxu0 0
        %3449 = vmatprep.subr.bf16.mxu0 0
        %3450 = vmatpush1.bf16.msra.mxu0 0
        %3451 = vmatprep.subr.bf16.mxu0 0
        %3452 = vmatpush1.bf16.msra.mxu0 0
        %3453 = vmatprep.subr.bf16.mxu0 0
        %3454 = vmatpush1.bf16.msra.mxu0 0
        %3455 = vmatprep.subr.bf16.mxu0 0
        %3456 = vmatpush1.bf16.msra.mxu0 0
        %3457 = vmatprep.subr.bf16.mxu0 0
        %3458 = vmatpush1.bf16.msra.mxu0 0
        %3459 = vmatprep.subr.bf16.mxu0 0
        %3460 = vmatpush1.bf16.msra.mxu0 0
        %3461 = vmatprep.subr.bf16.mxu0 0
        %3462 = vmatpush1.bf16.msra.mxu0 0
        %3463 = vmatprep.subr.bf16.mxu0 0
        %3464 = vmatpush1.bf16.msra.mxu0 0
        %3465 = vmatprep.subr.bf16.mxu0 0
        %3466 = vmatpush1.bf16.msra.mxu0 0
        %3467 = vmatprep.mubr.bf16.mxu0 0
        %3468 = vmatmul.mubr.bf16.gmra.mrb[0].mxu0 %v3433
        %v3469 = vpop.f32.mrb[0].mxu0
        %v3470 = vadd.f32 %v3406, %v3469
        %v3471 = vpop.f32.mrb[0].mxu0
        %v3472 = vpop.f32.mrb[0].mxu0
        %v3473 = vpop.f32.mrb[0].mxu0
        %3474 = vdwg.mxu0
        %v3475 = vadd.f32 %v3470, %v3311
        %s3476 = scalar_lea.vmem %s14, 1
        %v3477 = vld [vmem:[%s3476] sm:$0x1]
        %s3478 = scalar_lea.vmem %s15, 1
        %v3479 = vld [vmem:[%s3478] sm:$0x1]
        %v3480 = vsel %vm588, %v3475, 0.0
        %3481 = vadd.xlane.f32.xlu0 %v3480
        %v3482 = vpop.xlane.xlu0 %3481
        %v3483 = vmul.f32 %v3482, %v592
        %v3484 = vmul.f32 %v3475, %v3475
        %v3485 = vsel %vm588, %v3484, 0.0
        %3486 = vadd.xlane.f32.xlu0 %v3485
        %v3487 = vpop.xlane.xlu0 %3486
        %v3488 = vmul.f32 %v3487, %v592
        %v3489 = vmul.f32 %v3483, %v3483
        %v3490 = vsub.f32 %v3488, %v3489
        %v3491 = vsub.f32 %v3475, %v3483
        %v3492 = vadd.f32 %v3490, 1e-05
        %v3493 = vrsqrt.pop %v3492
        %v3494 = vmul.f32 %v3491, %v3493
        %v3496 = vlaneseq
        %v3497 = vshrl.u32 %v3496, 7
        %v3498 = vsub.s32 0, %v3497
        %v3499 = vrot.slane %v3477, %v3498
        %v3501 = vmul.f32 %v3494, %v3499
        %v3503 = vlaneseq
        %v3504 = vshrl.u32 %v3503, 7
        %v3505 = vsub.s32 0, %v3504
        %v3506 = vrot.slane %v3479, %v3505
        %v3508 = vadd.f32 %v3501, %v3506
        %v3509 = vpack.c.bf16 %v3508, %v3508
        %v3510 = vld [vmem:[%s16] sm:$0xf]
        %v3511 = vld [vmem:[%s16 + $0x4] sm:$0xf]
        %v3512 = vld [vmem:[%s16 + $0x8] sm:$0xf]
        %v3513 = vld [vmem:[%s16 + $0xc] sm:$0xf]
        %v3514 = vld [vmem:[%s17] sm:$0x1]
        %v3519 = vunpack.c.l.b16 %v3510
        %v3520 = vunpack.c.l.b16 %v3511
        %v3521 = vunpack.c.l.b16 %v3512
        %v3522 = vunpack.c.l.b16 %v3513
        %v3523 = vpack.c.b16 %v3520, %v3519
        %v3524 = vpack.c.b16 %v3522, %v3521
        %v3528 = vsel %vm588, %v3509, 0
        %3530 = vmatprep.subr.bf16.mxu0 0
        %3531 = vmatpush1.bf16.msra.mxu0 %v3523
        %3532 = vmatprep.subr.bf16.mxu0 0
        %3533 = vmatpush1.bf16.msra.mxu0 %v3524
        %3534 = vmatprep.subr.bf16.mxu0 0
        %3535 = vmatpush1.bf16.msra.mxu0 0
        %3536 = vmatprep.subr.bf16.mxu0 0
        %3537 = vmatpush1.bf16.msra.mxu0 0
        %3538 = vmatprep.subr.bf16.mxu0 0
        %3539 = vmatpush1.bf16.msra.mxu0 0
        %3540 = vmatprep.subr.bf16.mxu0 0
        %3541 = vmatpush1.bf16.msra.mxu0 0
        %3542 = vmatprep.subr.bf16.mxu0 0
        %3543 = vmatpush1.bf16.msra.mxu0 0
        %3544 = vmatprep.subr.bf16.mxu0 0
        %3545 = vmatpush1.bf16.msra.mxu0 0
        %3546 = vmatprep.subr.bf16.mxu0 0
        %3547 = vmatpush1.bf16.msra.mxu0 0
        %3548 = vmatprep.subr.bf16.mxu0 0
        %3549 = vmatpush1.bf16.msra.mxu0 0
        %3550 = vmatprep.subr.bf16.mxu0 0
        %3551 = vmatpush1.bf16.msra.mxu0 0
        %3552 = vmatprep.subr.bf16.mxu0 0
        %3553 = vmatpush1.bf16.msra.mxu0 0
        %3554 = vmatprep.subr.bf16.mxu0 0
        %3555 = vmatpush1.bf16.msra.mxu0 0
        %3556 = vmatprep.subr.bf16.mxu0 0
        %3557 = vmatpush1.bf16.msra.mxu0 0
        %3558 = vmatprep.subr.bf16.mxu0 0
        %3559 = vmatpush1.bf16.msra.mxu0 0
        %3560 = vmatprep.subr.bf16.mxu0 0
        %3561 = vmatpush1.bf16.msra.mxu0 0
        %3562 = vmatprep.mubr.bf16.mxu0 0
        %3563 = vmatmul.mubr.bf16.gmra.mrb[0].mxu0 %v3528
        %v3564 = vpop.f32.mrb[0].mxu0
        %v3565 = vadd.f32 %v3514, %v3564
        %v3566 = vpop.f32.mrb[0].mxu0
        %v3567 = vpop.f32.mrb[0].mxu0
        %v3568 = vpop.f32.mrb[0].mxu0
        %3569 = vdwg.mxu0
        %3570 = vst [vmem:[%s576] sm:$0x1] %v3565
        %s3571 = sand.u32 %s428, 1
        %s3572 = scalar_lea.sflag [#allocation3], %s3571
        %s3573 = sand.u32 %s428, 1
        %s3574 = scalar_lea.vmem [#allocation2], %s3573
        // Predicated region
        $region93: #{phobert_classifier_forward.1} parent=91 // pred_check
          %p3575 = pneg %p438
        $region94: #{phobert_classifier_forward.1} parent=91 // pred_check_branch
          %3577 = sbr.rel (%p3575) target = $region96
        $region95: #{phobert_classifier_forward.1} parent=91 // pred_region
          %s3579 = ssub.s32 16, 16
          %3580 = vsyncadd %s3572, %s3579
          %s3581 = smul.addr %s32, 16
          %s3582 = scalar_lea.hbm %s18, %s3581
          %s3584 = sshll.u32 %s3574, 4
          %s3585 = int_to_ptr.vmem [resolvable:$true] %s3584
          %3587 = dma.vmem_to_hbm [thread:$0]  %s3585, 16, %s3582, %s3572
        $region96: #{phobert_classifier_forward.1} parent=91 // pred_fallthru
          _
      $region92: #{phobert_classifier_forward.1} parent=5 // pred_fallthru
        _
      %p3588 = scmp.le.s32.totalorder 2, %s27
      // Predicated region
      $region97: #{phobert_classifier_forward.1} parent=5 // pred_check
        %p3589 = pneg %p3588
      $region98: #{phobert_classifier_forward.1} parent=5 // pred_check_branch
        %3591 = sbr.rel (%p3589) target = $region100
      $region99: #{phobert_classifier_forward.1} parent=5 // pred_region
        %s3592 = ssub.s32 %s27, 2
        // Predicated region
        $region101: #{phobert_classifier_forward.1} parent=99 // pred_check
          %p3593 = pneg %p444
        $region102: #{phobert_classifier_forward.1} parent=99 // pred_check_branch
          %3595 = sbr.rel (%p3593) target = $region104
        $region103: #{phobert_classifier_forward.1} parent=99 // pred_region
          %s3596 = sand.u32 %s429, 1
          %s3597 = scalar_lea.sflag [#allocation3], %s3596
          %s3598 = sand.u32 %s429, 1
          %s3599 = scalar_lea.vmem [#allocation2], %s3598
          %3600 = dma.done %s3597, 16
        $region104: #{phobert_classifier_forward.1} parent=99 // pred_fallthru
          _
      $region100: #{phobert_classifier_forward.1} parent=5 // pred_fallthru
        _
    $region6: #{phobert_classifier_forward.1} parent=1 // loop_footer
      %s31 = sadd.s32 1, %s27
    $region7: #{phobert_classifier_forward.1} parent=1 // loop_footer_branch
      %26 = sbr.rel target = $region3
    $region8: #{phobert_classifier_forward.1} parent=1 // loop_exit
      _
    %3601 = vsyncpa [#allocation3], 1
    %s3602 = scalar_lea.sflag [#allocation3], 1
    %3603 = vsyncpa %s3602, 1

</llo_original>
